<compile_context>
chip_gen: v5e
topology: v5e:2x2
jax: 0.10.0
libtpu: 0.0.40
codegen_flags: <defaults>
</compile_context>

<pallas_src>
import functools

import jax
import jax.numpy as jnp
from jax.experimental import pallas as pl
from jax.experimental.pallas import tpu as pltpu


def visit_mlp_kernel(feat_ref,    # (TN, 128)      f32
                     w_in_ref,    # (2, 128, 256)  bf16  : [W0, W5_feat_half]
                     w_hid_ref,   # (7, 256, 256)  bf16  : [W1..W4, W5_h_half, W6, W7]
                     b_ref,       # (8, 256)       f32   : [b0..b7]
                     wl_ref,      # (256, 3)       bf16
                     bl_ref,      # (1, 3)         f32
                     out_ref):    # (TN, 3)        f32
    bf16 = jnp.bfloat16
    feat = feat_ref[...].astype(bf16)          # kept live for the skip connection

    def bias(i):                               # (1, 256) f32
        return b_ref[pl.ds(i, 1), :]

    def dense_relu(x_bf16, w_bf16, b_f32):     # bf16 matmul, f32 accumulate/epilogue
        y = jnp.dot(x_bf16, w_bf16, preferred_element_type=jnp.float32) + b_f32
        return jnp.maximum(y, 0.0)

    # layer 0: 128 -> 256
    h = dense_relu(feat, w_in_ref[0], bias(0))
    # layers 1..4: 256 -> 256
    for li in range(1, 5):
        h = dense_relu(h.astype(bf16), w_hid_ref[li - 1], bias(li))

    # skip layer 5: cat([feat, h], -1) @ W5  ==  feat @ W5f + h @ W5h
    y = (jnp.dot(feat, w_in_ref[1], preferred_element_type=jnp.float32)
         + jnp.dot(h.astype(bf16), w_hid_ref[4], preferred_element_type=jnp.float32)
         + bias(5))
    h = jnp.maximum(y, 0.0)

    # layers 6, 7: 256 -> 256
    h = dense_relu(h.astype(bf16), w_hid_ref[5], bias(6))
    h = dense_relu(h.astype(bf16), w_hid_ref[6], bias(7))

    # last_linear + sigmoid: 256 -> 3
    logits = (jnp.dot(h.astype(bf16), wl_ref[...],
                      preferred_element_type=jnp.float32) + bl_ref[...])
    out_ref[...] = jax.nn.sigmoid(logits).astype(out_ref.dtype)


def visit_pallas(features, params, *, tn=1024, vmem_limit_bytes=32 * 1024 * 1024):
    """features: (N, 128) f32; params: 19-tuple of (in,out) weights + (1,out) biases.

    tn: points per grid step. Sweep 512-2048 on v6e/v7x, <=1024 on v5e.
    For v7x, pick tn so N/tn is >= 2 and a multiple of 2 (2-TC balance).
    """
    (w0, b0, w1, b1, w2, b2, w3, b3, w4, b4,
     w5f, w5h, b5, w6, b6, w7, b7, wl, bl) = params

    n, input_ch = features.shape
    out_ch = wl.shape[1]
    hidden = wl.shape[0]

    # --- pad N up to a multiple of tn (handles ragged N) ---------------------
    grid_n = -(-n // tn)
    n_pad = grid_n * tn
    feats_p = features if n_pad == n else jnp.pad(features, ((0, n_pad - n), (0, 0)))

    # --- pack + cast constants (bf16 weights, f32 biases) --------------------
    bf16 = jnp.bfloat16
    w_in = jnp.stack([w0, w5f]).astype(bf16)                         # (2, 128, 256)
    w_hid = jnp.stack([w1, w2, w3, w4, w5h, w6, w7]).astype(bf16)    # (7, 256, 256)
    b_all = jnp.concatenate([b0, b1, b2, b3, b4, b5, b6, b7], 0)     # (8, 256) f32
    b_all = b_all.astype(jnp.float32)
    wl_b = wl.astype(bf16)                                           # (256, 3)
    bl_f = bl.astype(jnp.float32)                                    # (1, 3)

    def const_spec(a):
        nd = a.ndim
        return pl.BlockSpec(a.shape, lambda i, _nd=nd: (0,) * _nd)

    in_specs = [pl.BlockSpec((tn, input_ch), lambda i: (i, 0)),
                const_spec(w_in), const_spec(w_hid), const_spec(b_all),
                const_spec(wl_b), const_spec(bl_f)]
    out_specs = pl.BlockSpec((tn, out_ch), lambda i: (i, 0))

    # --- advisory cost estimate ----------------------------------------------
    flops_per_pt = 2 * (input_ch * hidden            # layer 0
                        + 4 * hidden * hidden        # layers 1-4
                        + (input_ch + hidden) * hidden   # skip layer 5
                        + 2 * hidden * hidden        # layers 6-7
                        + hidden * out_ch)           # last linear
    const_bytes = sum(int(a.size) * a.dtype.itemsize
                      for a in (w_in, w_hid, b_all, wl_b, bl_f))
    cost = pl.CostEstimate(
        flops=int(n_pad) * int(flops_per_pt),
        transcendentals=int(n_pad) * int(out_ch),
        bytes_accessed=int(n_pad) * (input_ch + out_ch) * 4 + const_bytes)

    out = pl.pallas_call(
        visit_mlp_kernel,
        out_shape=jax.ShapeDtypeStruct((n_pad, out_ch), jnp.float32),
        grid=(grid_n,),
        in_specs=in_specs,
        out_specs=out_specs,
        compiler_params=pltpu.CompilerParams(
            dimension_semantics=("parallel",),
            vmem_limit_bytes=vmem_limit_bytes),
        cost_estimate=cost,
    )(feats_p, w_in, w_hid, b_all, wl_b, bl_f)

    return out[:n] if n_pad != n else out


def visit_reference(features, params, compute_dtype=None):
    """Pure-JAX mirror of Visit.forward (weights stored as (in, out)).

    compute_dtype=None      -> plain f32 math.
    compute_dtype=bfloat16  -> mirrors the kernel's bf16-operand / f32-accum path.
    """
    (w0, b0, w1, b1, w2, b2, w3, b3, w4, b4,
     w5f, w5h, b5, w6, b6, w7, b7, wl, bl) = params
    w5 = jnp.concatenate([w5f, w5h], axis=0)             # (128+256, 256)
    layer_ws = [w0, w1, w2, w3, w4, w5, w6, w7]
    layer_bs = [b0, b1, b2, b3, b4, b5, b6, b7]

    def mm(x, w):
        if compute_dtype is None:
            return x @ w
        return jnp.dot(x.astype(compute_dtype), w.astype(compute_dtype),
                       preferred_element_type=jnp.float32)

    h = features
    for i, (w, b) in enumerate(zip(layer_ws, layer_bs)):
        h = jnp.maximum(mm(h, w) + b, 0.0)
        if i == 4:                                       # skips=[4]
            h = jnp.concatenate([features, h], axis=-1)
    return jax.nn.sigmoid(mm(h, wl) + bl)


def init_visit_params(key, input_ch=128, W=256, output_ch=3):
    """PyTorch-default-style uniform init, weights laid out (in, out).

    Specialized to D=8, skips=[4] (module defaults), matching the kernel.
    """
    def dense(k, fan_in, fan_out):
        kw, kb = jax.random.split(k)
        bound = 1.0 / jnp.sqrt(float(fan_in))
        w = jax.random.uniform(kw, (fan_in, fan_out), jnp.float32, -bound, bound)
        b = jax.random.uniform(kb, (1, fan_out), jnp.float32, -bound, bound)
        return w, b

    ks = jax.random.split(key, 10)
    w0, b0 = dense(ks[0], input_ch, W)
    w1, b1 = dense(ks[1], W, W)
    w2, b2 = dense(ks[2], W, W)
    w3, b3 = dense(ks[3], W, W)
    w4, b4 = dense(ks[4], W, W)
    w5, b5 = dense(ks[5], W + input_ch, W)               # skip layer: 384 -> 256
    w5f, w5h = w5[:input_ch, :], w5[input_ch:, :]        # split for concat-free matmul
    w6, b6 = dense(ks[6], W, W)
    w7, b7 = dense(ks[7], W, W)
    wl, bl = dense(ks[8], W, output_ch)
    return (w0, b0, w1, b1, w2, b2, w3, b3, w4, b4,
            w5f, w5h, b5, w6, b6, w7, b7, wl, bl)


if __name__ == "__main__":
    INPUT_CH = 128
    W = 256
    OUT_CH = 3
    N = 1024          # sample points (small smoke-test size)
    TN = 256          # -> grid=(4,): even and >= 2 for v7x 2-TC balance

    key = jax.random.PRNGKey(0)
    kp, kf = jax.random.split(key)

    params = init_visit_params(kp, INPUT_CH, W, OUT_CH)
    features = jax.random.uniform(kf, (N, INPUT_CH), dtype=jnp.float32)

    run = jax.jit(functools.partial(visit_pallas, tn=TN))
    out = jax.block_until_ready(run(features, params))

    ref_bf16 = jax.block_until_ready(
        visit_reference(features, params, compute_dtype=jnp.bfloat16))
    ref_f32 = jax.block_until_ready(visit_reference(features, params))

    assert out.shape == (N, OUT_CH) and out.dtype == jnp.float32
    err_b = float(jnp.max(jnp.abs(out - ref_bf16)))
    err_f = float(jnp.max(jnp.abs(out - ref_f32)))
    # Tight check against the bf16-operand reference (same math path as kernel).
    assert jnp.allclose(out, ref_bf16, atol=5e-3, rtol=5e-3), f"bf16-ref max err {err_b}"
    # Loose structural check against the pure-f32 reference (bf16 rounding only).
    assert jnp.allclose(out, ref_f32, atol=5e-2, rtol=5e-2), f"f32-ref max err {err_f}"
    print("KERNEL_OK")
</pallas_src>

<mosaic_0001>
module attributes {stable_mosaic.version = 11 : i64} {
  func.func @visit_mlp_kernel(%arg0: i32, %arg1: memref<256x128xf32, #tpu.memory_space<vmem>>, %arg2: memref<2x128x256xbf16, #tpu.memory_space<vmem>>, %arg3: memref<7x256x256xbf16, #tpu.memory_space<vmem>>, %arg4: memref<8x256xf32, #tpu.memory_space<vmem>>, %arg5: memref<256x3xbf16, #tpu.memory_space<vmem>>, %arg6: memref<1x3xf32, #tpu.memory_space<vmem>>, %arg7: memref<256x3xf32, #tpu.memory_space<vmem>>) attributes {dimension_semantics = [#tpu.dimension_semantics<parallel>], iteration_bounds = array<i64: 4>, scalar_prefetch = 0 : i64, scratch_operands = 0 : i64, tpu.core_type = #tpu.core_type<tc>, window_params = [{transform_indices = @transform_0, window_bounds = array<i64: 256, 128>}, {pipeline_mode = #tpu.pipeline_mode<synchronous>, transform_indices = @transform_1, window_bounds = array<i64: 2, 128, 256>}, {pipeline_mode = #tpu.pipeline_mode<synchronous>, transform_indices = @transform_2, window_bounds = array<i64: 7, 256, 256>}, {pipeline_mode = #tpu.pipeline_mode<synchronous>, transform_indices = @transform_3, window_bounds = array<i64: 8, 256>}, {pipeline_mode = #tpu.pipeline_mode<synchronous>, transform_indices = @transform_4, window_bounds = array<i64: 256, 3>}, {pipeline_mode = #tpu.pipeline_mode<synchronous>, transform_indices = @transform_5, window_bounds = array<i64: 1, 3>}, {transform_indices = @transform_6, window_bounds = array<i64: 256, 3>}]} {
    %c0 = arith.constant 0 : index
    %c0_0 = arith.constant 0 : index
    %0 = vector.load %arg1[%c0, %c0_0] : memref<256x128xf32, #tpu.memory_space<vmem>>, vector<256x128xf32>
    %1 = arith.truncf %0 : vector<256x128xf32> to vector<256x128xbf16>
    %c0_1 = arith.constant 0 : index
    %c0_2 = arith.constant 0 : index
    %c0_3 = arith.constant 0 : index
    %2 = vector.load %arg2[%c0_1, %c0_2, %c0_3] : memref<2x128x256xbf16, #tpu.memory_space<vmem>>, vector<1x128x256xbf16>
    %3 = vector.shape_cast %2 : vector<1x128x256xbf16> to vector<128x256xbf16>
    %c0_4 = arith.constant 0 : index
    %c0_5 = arith.constant 0 : index
    %4 = vector.load %arg4[%c0_4, %c0_5] : memref<8x256xf32, #tpu.memory_space<vmem>>, vector<1x256xf32>
    %cst = arith.constant dense<0.000000e+00> : vector<256x256xf32>
    %5 = tpu.matmul %1, %3, %cst {dimension_numbers = #tpu.dot_dimension_numbers<[1], [0], [0], [1], [0, 0, 1, 1], [], []>} : vector<256x128xbf16>, vector<128x256xbf16>, vector<256x256xf32> -> vector<256x256xf32>
    %6 = vector.broadcast %4 : vector<1x256xf32> to vector<256x256xf32>
    %7 = arith.addf %5, %6 : vector<256x256xf32>
    %cst_6 = arith.constant 0.000000e+00 : f32
    %8 = vector.broadcast %cst_6 : f32 to vector<256x256xf32>
    %9 = arith.maximumf %7, %8 : vector<256x256xf32>
    %10 = arith.truncf %9 : vector<256x256xf32> to vector<256x256xbf16>
    %c0_7 = arith.constant 0 : index
    %c0_8 = arith.constant 0 : index
    %c0_9 = arith.constant 0 : index
    %11 = vector.load %arg3[%c0_7, %c0_8, %c0_9] : memref<7x256x256xbf16, #tpu.memory_space<vmem>>, vector<1x256x256xbf16>
    %12 = vector.shape_cast %11 : vector<1x256x256xbf16> to vector<256x256xbf16>
    %c1 = arith.constant 1 : index
    %c0_10 = arith.constant 0 : index
    %13 = vector.load %arg4[%c1, %c0_10] : memref<8x256xf32, #tpu.memory_space<vmem>>, vector<1x256xf32>
    %cst_11 = arith.constant dense<0.000000e+00> : vector<256x256xf32>
    %14 = tpu.matmul %10, %12, %cst_11 {dimension_numbers = #tpu.dot_dimension_numbers<[1], [0], [0], [1], [0, 0, 1, 1], [], []>} : vector<256x256xbf16>, vector<256x256xbf16>, vector<256x256xf32> -> vector<256x256xf32>
    %15 = vector.broadcast %13 : vector<1x256xf32> to vector<256x256xf32>
    %16 = arith.addf %14, %15 : vector<256x256xf32>
    %cst_12 = arith.constant 0.000000e+00 : f32
    %17 = vector.broadcast %cst_12 : f32 to vector<256x256xf32>
    %18 = arith.maximumf %16, %17 : vector<256x256xf32>
    %19 = arith.truncf %18 : vector<256x256xf32> to vector<256x256xbf16>
    %c1_13 = arith.constant 1 : index
    %c0_14 = arith.constant 0 : index
    %c0_15 = arith.constant 0 : index
    %20 = vector.load %arg3[%c1_13, %c0_14, %c0_15] : memref<7x256x256xbf16, #tpu.memory_space<vmem>>, vector<1x256x256xbf16>
    %21 = vector.shape_cast %20 : vector<1x256x256xbf16> to vector<256x256xbf16>
    %c2 = arith.constant 2 : index
    %c0_16 = arith.constant 0 : index
    %22 = vector.load %arg4[%c2, %c0_16] : memref<8x256xf32, #tpu.memory_space<vmem>>, vector<1x256xf32>
    %cst_17 = arith.constant dense<0.000000e+00> : vector<256x256xf32>
    %23 = tpu.matmul %19, %21, %cst_17 {dimension_numbers = #tpu.dot_dimension_numbers<[1], [0], [0], [1], [0, 0, 1, 1], [], []>} : vector<256x256xbf16>, vector<256x256xbf16>, vector<256x256xf32> -> vector<256x256xf32>
    %24 = vector.broadcast %22 : vector<1x256xf32> to vector<256x256xf32>
    %25 = arith.addf %23, %24 : vector<256x256xf32>
    %cst_18 = arith.constant 0.000000e+00 : f32
    %26 = vector.broadcast %cst_18 : f32 to vector<256x256xf32>
    %27 = arith.maximumf %25, %26 : vector<256x256xf32>
    %28 = arith.truncf %27 : vector<256x256xf32> to vector<256x256xbf16>
    %c2_19 = arith.constant 2 : index
    %c0_20 = arith.constant 0 : index
    %c0_21 = arith.constant 0 : index
    %29 = vector.load %arg3[%c2_19, %c0_20, %c0_21] : memref<7x256x256xbf16, #tpu.memory_space<vmem>>, vector<1x256x256xbf16>
    %30 = vector.shape_cast %29 : vector<1x256x256xbf16> to vector<256x256xbf16>
    %c3 = arith.constant 3 : index
    %c0_22 = arith.constant 0 : index
    %31 = vector.load %arg4[%c3, %c0_22] : memref<8x256xf32, #tpu.memory_space<vmem>>, vector<1x256xf32>
    %cst_23 = arith.constant dense<0.000000e+00> : vector<256x256xf32>
    %32 = tpu.matmul %28, %30, %cst_23 {dimension_numbers = #tpu.dot_dimension_numbers<[1], [0], [0], [1], [0, 0, 1, 1], [], []>} : vector<256x256xbf16>, vector<256x256xbf16>, vector<256x256xf32> -> vector<256x256xf32>
    %33 = vector.broadcast %31 : vector<1x256xf32> to vector<256x256xf32>
    %34 = arith.addf %32, %33 : vector<256x256xf32>
    %cst_24 = arith.constant 0.000000e+00 : f32
    %35 = vector.broadcast %cst_24 : f32 to vector<256x256xf32>
    %36 = arith.maximumf %34, %35 : vector<256x256xf32>
    %37 = arith.truncf %36 : vector<256x256xf32> to vector<256x256xbf16>
    %c3_25 = arith.constant 3 : index
    %c0_26 = arith.constant 0 : index
    %c0_27 = arith.constant 0 : index
    %38 = vector.load %arg3[%c3_25, %c0_26, %c0_27] : memref<7x256x256xbf16, #tpu.memory_space<vmem>>, vector<1x256x256xbf16>
    %39 = vector.shape_cast %38 : vector<1x256x256xbf16> to vector<256x256xbf16>
    %c4 = arith.constant 4 : index
    %c0_28 = arith.constant 0 : index
    %40 = vector.load %arg4[%c4, %c0_28] : memref<8x256xf32, #tpu.memory_space<vmem>>, vector<1x256xf32>
    %cst_29 = arith.constant dense<0.000000e+00> : vector<256x256xf32>
    %41 = tpu.matmul %37, %39, %cst_29 {dimension_numbers = #tpu.dot_dimension_numbers<[1], [0], [0], [1], [0, 0, 1, 1], [], []>} : vector<256x256xbf16>, vector<256x256xbf16>, vector<256x256xf32> -> vector<256x256xf32>
    %42 = vector.broadcast %40 : vector<1x256xf32> to vector<256x256xf32>
    %43 = arith.addf %41, %42 : vector<256x256xf32>
    %cst_30 = arith.constant 0.000000e+00 : f32
    %44 = vector.broadcast %cst_30 : f32 to vector<256x256xf32>
    %45 = arith.maximumf %43, %44 : vector<256x256xf32>
    %c1_31 = arith.constant 1 : index
    %c0_32 = arith.constant 0 : index
    %c0_33 = arith.constant 0 : index
    %46 = vector.load %arg2[%c1_31, %c0_32, %c0_33] : memref<2x128x256xbf16, #tpu.memory_space<vmem>>, vector<1x128x256xbf16>
    %47 = vector.shape_cast %46 : vector<1x128x256xbf16> to vector<128x256xbf16>
    %cst_34 = arith.constant dense<0.000000e+00> : vector<256x256xf32>
    %48 = tpu.matmul %1, %47, %cst_34 {dimension_numbers = #tpu.dot_dimension_numbers<[1], [0], [0], [1], [0, 0, 1, 1], [], []>} : vector<256x128xbf16>, vector<128x256xbf16>, vector<256x256xf32> -> vector<256x256xf32>
    %49 = arith.truncf %45 : vector<256x256xf32> to vector<256x256xbf16>
    %c4_35 = arith.constant 4 : index
    %c0_36 = arith.constant 0 : index
    %c0_37 = arith.constant 0 : index
    %50 = vector.load %arg3[%c4_35, %c0_36, %c0_37] : memref<7x256x256xbf16, #tpu.memory_space<vmem>>, vector<1x256x256xbf16>
    %51 = vector.shape_cast %50 : vector<1x256x256xbf16> to vector<256x256xbf16>
    %cst_38 = arith.constant dense<0.000000e+00> : vector<256x256xf32>
    %52 = tpu.matmul %49, %51, %cst_38 {dimension_numbers = #tpu.dot_dimension_numbers<[1], [0], [0], [1], [0, 0, 1, 1], [], []>} : vector<256x256xbf16>, vector<256x256xbf16>, vector<256x256xf32> -> vector<256x256xf32>
    %53 = arith.addf %48, %52 : vector<256x256xf32>
    %c5 = arith.constant 5 : index
    %c0_39 = arith.constant 0 : index
    %54 = vector.load %arg4[%c5, %c0_39] : memref<8x256xf32, #tpu.memory_space<vmem>>, vector<1x256xf32>
    %55 = vector.broadcast %54 : vector<1x256xf32> to vector<256x256xf32>
    %56 = arith.addf %53, %55 : vector<256x256xf32>
    %cst_40 = arith.constant 0.000000e+00 : f32
    %57 = vector.broadcast %cst_40 : f32 to vector<256x256xf32>
    %58 = arith.maximumf %56, %57 : vector<256x256xf32>
    %59 = arith.truncf %58 : vector<256x256xf32> to vector<256x256xbf16>
    %c5_41 = arith.constant 5 : index
    %c0_42 = arith.constant 0 : index
    %c0_43 = arith.constant 0 : index
    %60 = vector.load %arg3[%c5_41, %c0_42, %c0_43] : memref<7x256x256xbf16, #tpu.memory_space<vmem>>, vector<1x256x256xbf16>
    %61 = vector.shape_cast %60 : vector<1x256x256xbf16> to vector<256x256xbf16>
    %c6 = arith.constant 6 : index
    %c0_44 = arith.constant 0 : index
    %62 = vector.load %arg4[%c6, %c0_44] : memref<8x256xf32, #tpu.memory_space<vmem>>, vector<1x256xf32>
    %cst_45 = arith.constant dense<0.000000e+00> : vector<256x256xf32>
    %63 = tpu.matmul %59, %61, %cst_45 {dimension_numbers = #tpu.dot_dimension_numbers<[1], [0], [0], [1], [0, 0, 1, 1], [], []>} : vector<256x256xbf16>, vector<256x256xbf16>, vector<256x256xf32> -> vector<256x256xf32>
    %64 = vector.broadcast %62 : vector<1x256xf32> to vector<256x256xf32>
    %65 = arith.addf %63, %64 : vector<256x256xf32>
    %cst_46 = arith.constant 0.000000e+00 : f32
    %66 = vector.broadcast %cst_46 : f32 to vector<256x256xf32>
    %67 = arith.maximumf %65, %66 : vector<256x256xf32>
    %68 = arith.truncf %67 : vector<256x256xf32> to vector<256x256xbf16>
    %c6_47 = arith.constant 6 : index
    %c0_48 = arith.constant 0 : index
    %c0_49 = arith.constant 0 : index
    %69 = vector.load %arg3[%c6_47, %c0_48, %c0_49] : memref<7x256x256xbf16, #tpu.memory_space<vmem>>, vector<1x256x256xbf16>
    %70 = vector.shape_cast %69 : vector<1x256x256xbf16> to vector<256x256xbf16>
    %c7 = arith.constant 7 : index
    %c0_50 = arith.constant 0 : index
    %71 = vector.load %arg4[%c7, %c0_50] : memref<8x256xf32, #tpu.memory_space<vmem>>, vector<1x256xf32>
    %cst_51 = arith.constant dense<0.000000e+00> : vector<256x256xf32>
    %72 = tpu.matmul %68, %70, %cst_51 {dimension_numbers = #tpu.dot_dimension_numbers<[1], [0], [0], [1], [0, 0, 1, 1], [], []>} : vector<256x256xbf16>, vector<256x256xbf16>, vector<256x256xf32> -> vector<256x256xf32>
    %73 = vector.broadcast %71 : vector<1x256xf32> to vector<256x256xf32>
    %74 = arith.addf %72, %73 : vector<256x256xf32>
    %cst_52 = arith.constant 0.000000e+00 : f32
    %75 = vector.broadcast %cst_52 : f32 to vector<256x256xf32>
    %76 = arith.maximumf %74, %75 : vector<256x256xf32>
    %77 = arith.truncf %76 : vector<256x256xf32> to vector<256x256xbf16>
    %c0_53 = arith.constant 0 : index
    %c0_54 = arith.constant 0 : index
    %78 = vector.load %arg5[%c0_53, %c0_54] : memref<256x3xbf16, #tpu.memory_space<vmem>>, vector<256x3xbf16>
    %cst_55 = arith.constant dense<0.000000e+00> : vector<256x3xf32>
    %79 = tpu.matmul %77, %78, %cst_55 {dimension_numbers = #tpu.dot_dimension_numbers<[1], [0], [0], [1], [0, 0, 1, 1], [], []>} : vector<256x256xbf16>, vector<256x3xbf16>, vector<256x3xf32> -> vector<256x3xf32>
    %c0_56 = arith.constant 0 : index
    %c0_57 = arith.constant 0 : index
    %80 = vector.load %arg6[%c0_56, %c0_57] : memref<1x3xf32, #tpu.memory_space<vmem>>, vector<1x3xf32>
    %81 = vector.broadcast %80 : vector<1x3xf32> to vector<256x3xf32>
    %82 = arith.addf %79, %81 : vector<256x3xf32>
    %83 = arith.negf %82 : vector<256x3xf32>
    %84 = math.exp %83 : vector<256x3xf32>
    %cst_58 = arith.constant 1.000000e+00 : f32
    %85 = vector.broadcast %cst_58 : f32 to vector<256x3xf32>
    %86 = arith.addf %85, %84 : vector<256x3xf32>
    %87 = arith.divf %85, %86 : vector<256x3xf32>
    %c0_59 = arith.constant 0 : index
    %c0_60 = arith.constant 0 : index
    %88 = vector.load %arg7[%c0_59, %c0_60] : memref<256x3xf32, #tpu.memory_space<vmem>>, vector<256x3xf32>
    tpu.vector_store %arg7[%c0_59, %c0_60], %87 {strides = array<i32>} : memref<256x3xf32, #tpu.memory_space<vmem>>, vector<256x3xf32>,
    return
  }
  func.func @transform_0(%arg0: i32) -> (i32, i32) {
    %c0_i32 = arith.constant 0 : i32
    %c0_i32_0 = arith.constant 0 : i32
    return %arg0, %c0_i32 : i32, i32
  }
  func.func @transform_1(%arg0: i32) -> (i32, i32, i32) {
    %c0_i32 = arith.constant 0 : i32
    %c0_i32_0 = arith.constant 0 : i32
    %c0_i32_1 = arith.constant 0 : i32
    %c0_i32_2 = arith.constant 0 : i32
    return %c0_i32, %c0_i32_0, %c0_i32_1 : i32, i32, i32
  }
  func.func @transform_2(%arg0: i32) -> (i32, i32, i32) {
    %c0_i32 = arith.constant 0 : i32
    %c0_i32_0 = arith.constant 0 : i32
    %c0_i32_1 = arith.constant 0 : i32
    %c0_i32_2 = arith.constant 0 : i32
    return %c0_i32, %c0_i32_0, %c0_i32_1 : i32, i32, i32
  }
  func.func @transform_3(%arg0: i32) -> (i32, i32) {
    %c0_i32 = arith.constant 0 : i32
    %c0_i32_0 = arith.constant 0 : i32
    %c0_i32_1 = arith.constant 0 : i32
    return %c0_i32, %c0_i32_0 : i32, i32
  }
  func.func @transform_4(%arg0: i32) -> (i32, i32) {
    %c0_i32 = arith.constant 0 : i32
    %c0_i32_0 = arith.constant 0 : i32
    %c0_i32_1 = arith.constant 0 : i32
    return %c0_i32, %c0_i32_0 : i32, i32
  }
  func.func @transform_5(%arg0: i32) -> (i32, i32) {
    %c0_i32 = arith.constant 0 : i32
    %c0_i32_0 = arith.constant 0 : i32
    %c0_i32_1 = arith.constant 0 : i32
    return %c0_i32, %c0_i32_0 : i32, i32
  }
  func.func @transform_6(%arg0: i32) -> (i32, i32) {
    %c0_i32 = arith.constant 0 : i32
    %c0_i32_0 = arith.constant 0 : i32
    return %arg0, %c0_i32 : i32, i32
  }
}

</mosaic_0001>

<llo_original>
// kernel: visit_pallas.1
$region0: #{visit_pallas.1}
  #allocation0 [shape = 'u32[]', space=smem, size = 0x4, offset = 0x4, fixed_abs, tag = 'smem constant byte address 0x4 - core index']
  #allocation1 [shape = 'u32[72,128]{1,0:T(1,128)}', space=vmem, size = 0x9000, scoped, tag = 'internal scratch']
  %s0 = inlined_call_operand.hbm [shape: f32[1024,128], index: 0, kind: input, shape index: {}]
  %s1 = inlined_call_operand.vmem [shape: bf16[2,128,256], index: 1, kind: input, shape index: {}]
  %s2 = inlined_call_operand.vmem [shape: bf16[7,256,256], index: 2, kind: input, shape index: {}]
  %s3 = inlined_call_operand.vmem [shape: f32[8,256], index: 3, kind: input, shape index: {}]
  %s4 = inlined_call_operand.vmem [shape: bf16[256,3], index: 4, kind: input, shape index: {}]
  %s5 = inlined_call_operand.vmem [shape: f32[1,3], index: 5, kind: input, shape index: {}]
  %s6 = inlined_call_operand.vmem [shape: f32[1024,3], index: 6, kind: output, shape index: {}]
  %s7 = sld [smem:[#allocation0]]
  $region61: #{visit_pallas.1} parent=0
    _
  %s9 = ssub.s32 1, %s7
  %s10 = scalar_select 0, %s9, %s7
  $region1: #{visit_pallas.1} parent=0
    #allocation2 [shape = 'u8[262144]{0}', space=vmem, size = 0x40000, scoped, tag = 'input window, operand 0']
    #allocation3 [shape = 's32[2]{0}', space=sflag, size = 0x8, scoped, tag = 'scoped memory for visit_pallas.1']
    %11 = vsyncpa [#allocation3], 0
    %s12 = scalar_lea.sflag [#allocation3], 1
    %13 = vsyncpa %s12, 0
    loop: start=0, step=1, limit=6
    $region2: #{visit_pallas.1} parent=1 // loop_pre_header
      _
    $region3: #{visit_pallas.1} parent=1 // loop_header
      %s15 = sphi 0, %s19
      %p16 = scmp.ge.s32.totalorder %s15, 6
      %s25 = sphi 0, %s27
      %s28 = sphi 0, %s25
      %s29 = sphi 0, %s28
      %s45 = sphi 0, %s29
      %s49 = sphi 0, %s49
      %s51 = sphi 0, %s49
      %s52 = sphi 0, %s51
      %s66 = sphi 0, %s52
      %s70 = sphi 0, %s70
      %s72 = sphi 0, %s70
      %s73 = sphi 0, %s72
      %s87 = sphi 0, %s73
      %s91 = sphi 0, %s91
      %s93 = sphi 0, %s91
      %s94 = sphi 0, %s93
      %s108 = sphi 0, %s94
      %s112 = sphi 0, %s112
      %s114 = sphi 0, %s112
      %s115 = sphi 0, %s114
      %s129 = sphi 0, %s115
      %s133 = sphi 0, %s133
      %s135 = sphi 0, %s133
      %s136 = sphi 0, %s135
      %s150 = sphi 0, %s136
      %s156 = sphi 0, %s158
      %s159 = sphi 0, %s156
      %s160 = sphi 0, %s159
      %s176 = sphi 0, %s160
    $region4: #{visit_pallas.1} parent=1 // loop_header_branch
      %18 = sbr.rel (%p16) target = $region8
    $region5: #{visit_pallas.1} parent=1 // loop_body
      %s20 = ssub.s32 %s15, 1
      %s21 = ssub.s32 %s15, 2
      %s22 = sadd.s32 %s15, 1
      %s23 = ssub.s32 %s15, %s22
      %p24 = scmp.eq.s32.totalorder %s23, 0
      %s26 = sadd.s32 %s25, 1
      %s27 = scalar_select %p24, %s25, %s26
      %p30 = pneg %p24
      %p31 = scmp.eq.s32.totalorder %s15, 3
      %p32 = por %p30, %p31
      %p33 = scmp.ne.s32.totalorder %s25, %s28
      %p34 = scmp.eq.s32.totalorder %s15, 0
      %p35 = por %p33, %p34
      %p36 = scmp.ne.s32.totalorder %s25, %s28
      %p37 = scmp.eq.s32.totalorder %s20, 3
      %p38 = por %p36, %p37
      %p39 = scmp.ne.s32.totalorder %s28, %s29
      %p40 = scmp.eq.s32.totalorder %s20, 0
      %p41 = por %p39, %p40
      %p42 = scmp.ne.s32.totalorder %s28, %s29
      %p43 = scmp.eq.s32.totalorder %s21, 3
      %p44 = por %p42, %p43
      %p46 = scmp.ne.s32.totalorder %s29, %s45
      %p47 = scmp.eq.s32.totalorder %s21, 0
      %p48 = por %p46, %p47
      %s50 = sadd.s32 %s49, 1
      %p53 = scmp.eq.s32.totalorder %s15, 3
      %p54 = scmp.ne.s32.totalorder %s49, %s51
      %p55 = scmp.eq.s32.totalorder %s15, 0
      %p56 = por %p54, %p55
      %p57 = scmp.ne.s32.totalorder %s49, %s51
      %p58 = scmp.eq.s32.totalorder %s20, 3
      %p59 = por %p57, %p58
      %p60 = scmp.ne.s32.totalorder %s51, %s52
      %p61 = scmp.eq.s32.totalorder %s20, 0
      %p62 = por %p60, %p61
      %p63 = scmp.ne.s32.totalorder %s51, %s52
      %p64 = scmp.eq.s32.totalorder %s21, 3
      %p65 = por %p63, %p64
      %p67 = scmp.ne.s32.totalorder %s52, %s66
      %p68 = scmp.eq.s32.totalorder %s21, 0
      %p69 = por %p67, %p68
      %s71 = sadd.s32 %s70, 1
      %p74 = scmp.eq.s32.totalorder %s15, 3
      %p75 = scmp.ne.s32.totalorder %s70, %s72
      %p76 = scmp.eq.s32.totalorder %s15, 0
      %p77 = por %p75, %p76
      %p78 = scmp.ne.s32.totalorder %s70, %s72
      %p79 = scmp.eq.s32.totalorder %s20, 3
      %p80 = por %p78, %p79
      %p81 = scmp.ne.s32.totalorder %s72, %s73
      %p82 = scmp.eq.s32.totalorder %s20, 0
      %p83 = por %p81, %p82
      %p84 = scmp.ne.s32.totalorder %s72, %s73
      %p85 = scmp.eq.s32.totalorder %s21, 3
      %p86 = por %p84, %p85
      %p88 = scmp.ne.s32.totalorder %s73, %s87
      %p89 = scmp.eq.s32.totalorder %s21, 0
      %p90 = por %p88, %p89
      %s92 = sadd.s32 %s91, 1
      %p95 = scmp.eq.s32.totalorder %s15, 3
      %p96 = scmp.ne.s32.totalorder %s91, %s93
      %p97 = scmp.eq.s32.totalorder %s15, 0
      %p98 = por %p96, %p97
      %p99 = scmp.ne.s32.totalorder %s91, %s93
      %p100 = scmp.eq.s32.totalorder %s20, 3
      %p101 = por %p99, %p100
      %p102 = scmp.ne.s32.totalorder %s93, %s94
      %p103 = scmp.eq.s32.totalorder %s20, 0
      %p104 = por %p102, %p103
      %p105 = scmp.ne.s32.totalorder %s93, %s94
      %p106 = scmp.eq.s32.totalorder %s21, 3
      %p107 = por %p105, %p106
      %p109 = scmp.ne.s32.totalorder %s94, %s108
      %p110 = scmp.eq.s32.totalorder %s21, 0
      %p111 = por %p109, %p110
      %s113 = sadd.s32 %s112, 1
      %p116 = scmp.eq.s32.totalorder %s15, 3
      %p117 = scmp.ne.s32.totalorder %s112, %s114
      %p118 = scmp.eq.s32.totalorder %s15, 0
      %p119 = por %p117, %p118
      %p120 = scmp.ne.s32.totalorder %s112, %s114
      %p121 = scmp.eq.s32.totalorder %s20, 3
      %p122 = por %p120, %p121
      %p123 = scmp.ne.s32.totalorder %s114, %s115
      %p124 = scmp.eq.s32.totalorder %s20, 0
      %p125 = por %p123, %p124
      %p126 = scmp.ne.s32.totalorder %s114, %s115
      %p127 = scmp.eq.s32.totalorder %s21, 3
      %p128 = por %p126, %p127
      %p130 = scmp.ne.s32.totalorder %s115, %s129
      %p131 = scmp.eq.s32.totalorder %s21, 0
      %p132 = por %p130, %p131
      %s134 = sadd.s32 %s133, 1
      %p137 = scmp.eq.s32.totalorder %s15, 3
      %p138 = scmp.ne.s32.totalorder %s133, %s135
      %p139 = scmp.eq.s32.totalorder %s15, 0
      %p140 = por %p138, %p139
      %p141 = scmp.ne.s32.totalorder %s133, %s135
      %p142 = scmp.eq.s32.totalorder %s20, 3
      %p143 = por %p141, %p142
      %p144 = scmp.ne.s32.totalorder %s135, %s136
      %p145 = scmp.eq.s32.totalorder %s20, 0
      %p146 = por %p144, %p145
      %p147 = scmp.ne.s32.totalorder %s135, %s136
      %p148 = scmp.eq.s32.totalorder %s21, 3
      %p149 = por %p147, %p148
      %p151 = scmp.ne.s32.totalorder %s136, %s150
      %p152 = scmp.eq.s32.totalorder %s21, 0
      %p153 = por %p151, %p152
      %s154 = ssub.s32 %s15, %s22
      %p155 = scmp.eq.s32.totalorder %s154, 0
      %s157 = sadd.s32 %s156, 1
      %s158 = scalar_select %p155, %s156, %s157
      %p161 = pneg %p155
      %p162 = scmp.eq.s32.totalorder %s15, 3
      %p163 = por %p161, %p162
      %p164 = scmp.ne.s32.totalorder %s156, %s159
      %p165 = scmp.eq.s32.totalorder %s15, 0
      %p166 = por %p164, %p165
      %p167 = scmp.ne.s32.totalorder %s156, %s159
      %p168 = scmp.eq.s32.totalorder %s20, 3
      %p169 = por %p167, %p168
      %p170 = scmp.ne.s32.totalorder %s159, %s160
      %p171 = scmp.eq.s32.totalorder %s20, 0
      %p172 = por %p170, %p171
      %p173 = scmp.ne.s32.totalorder %s159, %s160
      %p174 = scmp.eq.s32.totalorder %s21, 3
      %p175 = por %p173, %p174
      %p177 = scmp.ne.s32.totalorder %s160, %s176
      %p178 = scmp.eq.s32.totalorder %s21, 0
      %p179 = por %p177, %p178
      %p180 = scmp.le.s32.totalorder 1, %s15
      %p181 = scmp.lt.s32.totalorder %s15, 5
      %p182 = pnand %p180, %p181
      %p183 = pneg %p182
      // Predicated region
      $region9: #{visit_pallas.1} parent=5 // pred_check
        _
      $region10: #{visit_pallas.1} parent=5 // pred_check_branch
        %185 = sbr.rel (%p182) target = $region12
      $region11: #{visit_pallas.1} parent=5 // pred_region
        %s186 = ssub.s32 %s15, 1
        // Predicated region
        $region13: #{visit_pallas.1} parent=11 // pred_check
          %p187 = pneg %p62
        $region14: #{visit_pallas.1} parent=11 // pred_check_branch
          %189 = sbr.rel (%p187) target = $region16
        $region15: #{visit_pallas.1} parent=11 // pred_region
          _
        $region16: #{visit_pallas.1} parent=11 // pred_fallthru
          _
        // Predicated region
        $region17: #{visit_pallas.1} parent=11 // pred_check
          %p190 = pneg %p83
        $region18: #{visit_pallas.1} parent=11 // pred_check_branch
          %192 = sbr.rel (%p190) target = $region20
        $region19: #{visit_pallas.1} parent=11 // pred_region
          _
        $region20: #{visit_pallas.1} parent=11 // pred_fallthru
          _
        // Predicated region
        $region21: #{visit_pallas.1} parent=11 // pred_check
          %p193 = pneg %p104
        $region22: #{visit_pallas.1} parent=11 // pred_check_branch
          %195 = sbr.rel (%p193) target = $region24
        $region23: #{visit_pallas.1} parent=11 // pred_region
          _
        $region24: #{visit_pallas.1} parent=11 // pred_fallthru
          _
        // Predicated region
        $region25: #{visit_pallas.1} parent=11 // pred_check
          %p196 = pneg %p125
        $region26: #{visit_pallas.1} parent=11 // pred_check_branch
          %198 = sbr.rel (%p196) target = $region28
        $region27: #{visit_pallas.1} parent=11 // pred_region
          _
        $region28: #{visit_pallas.1} parent=11 // pred_fallthru
          _
        // Predicated region
        $region29: #{visit_pallas.1} parent=11 // pred_check
          %p199 = pneg %p146
        $region30: #{visit_pallas.1} parent=11 // pred_check_branch
          %201 = sbr.rel (%p199) target = $region32
        $region31: #{visit_pallas.1} parent=11 // pred_region
          _
        $region32: #{visit_pallas.1} parent=11 // pred_fallthru
          _
      $region12: #{visit_pallas.1} parent=5 // pred_fallthru
        _
      %p202 = scmp.lt.s32.totalorder %s15, 4
      // Predicated region
      $region33: #{visit_pallas.1} parent=5 // pred_check
        %p203 = pneg %p202
      $region34: #{visit_pallas.1} parent=5 // pred_check_branch
        %205 = sbr.rel (%p203) target = $region36
      $region35: #{visit_pallas.1} parent=5 // pred_region
        // Predicated region
        $region37: #{visit_pallas.1} parent=35 // pred_check
          %p206 = pneg %p35
        $region38: #{visit_pallas.1} parent=35 // pred_check_branch
          %208 = sbr.rel (%p206) target = $region40
        $region39: #{visit_pallas.1} parent=35 // pred_region
          %s209 = sand.u32 %s25, 1
          %s210 = scalar_lea.sflag [#allocation3], %s209
          %s211 = sand.u32 %s25, 1
          %s212 = smul.addr %s211, 256
          %s213 = scalar_lea.vmem [#allocation2], %s212
          %s214 = smul.u32 32, %s15
          %216 = vsyncadd %s210, 0
          %s217 = smul.addr %s214, 8
          %s218 = scalar_lea.hbm %s0, %s217
          %s219 = sshll.u32 %s218, 4
          %s220 = int_to_ptr.hbm [resolvable:$true] %s219
          %s221 = sshll.u32 %s213, 4
          %s222 = int_to_ptr.vmem [resolvable:$true] %s221
          %227 = dma.hbm_to_vmem [thread:$0]  %s220, 4096, %s222, %s210, 128, 128, 8
        $region40: #{visit_pallas.1} parent=35 // pred_fallthru
          _
      $region36: #{visit_pallas.1} parent=5 // pred_fallthru
        _
      %p228 = scmp.le.s32.totalorder 1, %s15
      %p229 = scmp.lt.s32.totalorder %s15, 5
      %p230 = pnand %p228, %p229
      %p231 = pneg %p230
      // Predicated region
      $region41: #{visit_pallas.1} parent=5 // pred_check
        _
      $region42: #{visit_pallas.1} parent=5 // pred_check_branch
        %233 = sbr.rel (%p230) target = $region44
      $region43: #{visit_pallas.1} parent=5 // pred_region
        %s234 = ssub.s32 %s15, 1
        %s235 = sand.u32 %s28, 1
        %s236 = scalar_lea.sflag [#allocation3], %s235
        %s237 = sand.u32 %s28, 1
        %s238 = smul.addr %s237, 256
        %s239 = scalar_lea.vmem [#allocation2], %s238
        // Predicated region
        $region45: #{visit_pallas.1} parent=43 // pred_check
          %p240 = pneg %p41
        $region46: #{visit_pallas.1} parent=43 // pred_check_branch
          %242 = sbr.rel (%p240) target = $region48
        $region47: #{visit_pallas.1} parent=43 // pred_region
          %244 = dma.done %s236, 4096
        $region48: #{visit_pallas.1} parent=43 // pred_fallthru
          _
        %s245 = sand.u32 %s28, 1
        %s246 = scalar_lea.sflag [#allocation3], %s245
        %s247 = sand.u32 %s28, 1
        %s248 = smul.addr %s247, 256
        %s249 = scalar_lea.vmem [#allocation2], %s248
        %p250 = pneg %p41
        %p251 = pneg %p38
        %p252 = pneg %p62
        %p253 = pneg %p59
        %p254 = pneg %p83
        %p255 = pneg %p80
        %p256 = pneg %p104
        %p257 = pneg %p101
        %p258 = pneg %p125
        %p259 = pneg %p122
        %p260 = pneg %p146
        %p261 = pneg %p143
        %p262 = pneg %p172
        %p263 = pneg %p169
        %s264 = smul.u32 32, %s20
        %p265 = scmp.lt.s32.totalorder %s264, 127
        %s266 = scalar_select %p265, %s264, 127
        %s267 = smul.addr %s266, 8
        %s268 = scalar_lea.vmem %s6, %s267
        %s269 = smul.u32 32, %s20
        %s270 = smul.u32 32, %s20
        %p271 = scmp.lt.s32.totalorder %s270, 127
        %s272 = scalar_select %p271, %s270, 127
        %s273 = smul.addr %s272, 8
        %s274 = scalar_lea.vmem %s6, %s273
        %s275 = smul.u32 32, %s20
        %v276 = vld [vmem:[%s239] sm:$0xff]
        %v277 = vld [vmem:[%s239 + $0x8] sm:$0xff]
        %v278 = vld [vmem:[%s239 + $0x10] sm:$0xff]
        %v279 = vld [vmem:[%s239 + $0x18] sm:$0xff]
        %v280 = vld [vmem:[%s239 + $0x20] sm:$0xff]
        %v281 = vld [vmem:[%s239 + $0x28] sm:$0xff]
        %v282 = vld [vmem:[%s239 + $0x30] sm:$0xff]
        %v283 = vld [vmem:[%s239 + $0x38] sm:$0xff]
        %v284 = vld [vmem:[%s239 + $0x40] sm:$0xff]
        %v285 = vld [vmem:[%s239 + $0x48] sm:$0xff]
        %v286 = vld [vmem:[%s239 + $0x50] sm:$0xff]
        %v287 = vld [vmem:[%s239 + $0x58] sm:$0xff]
        %v288 = vld [vmem:[%s239 + $0x60] sm:$0xff]
        %v289 = vld [vmem:[%s239 + $0x68] sm:$0xff]
        %v290 = vld [vmem:[%s239 + $0x70] sm:$0xff]
        %v291 = vld [vmem:[%s239 + $0x78] sm:$0xff]
        %v292 = vld [vmem:[%s239 + $0x80] sm:$0xff]
        %v293 = vld [vmem:[%s239 + $0x88] sm:$0xff]
        %v294 = vld [vmem:[%s239 + $0x90] sm:$0xff]
        %v295 = vld [vmem:[%s239 + $0x98] sm:$0xff]
        %v296 = vld [vmem:[%s239 + $0xa0] sm:$0xff]
        %v297 = vld [vmem:[%s239 + $0xa8] sm:$0xff]
        %v298 = vld [vmem:[%s239 + $0xb0] sm:$0xff]
        %v299 = vld [vmem:[%s239 + $0xb8] sm:$0xff]
        %v300 = vld [vmem:[%s239 + $0xc0] sm:$0xff]
        %v301 = vld [vmem:[%s239 + $0xc8] sm:$0xff]
        %v302 = vld [vmem:[%s239 + $0xd0] sm:$0xff]
        %v303 = vld [vmem:[%s239 + $0xd8] sm:$0xff]
        %v304 = vld [vmem:[%s239 + $0xe0] sm:$0xff]
        %v305 = vld [vmem:[%s239 + $0xe8] sm:$0xff]
        %v306 = vld [vmem:[%s239 + $0xf0] sm:$0xff]
        %v307 = vld [vmem:[%s239 + $0xf8] sm:$0xff]
        %v308 = vpack.c.bf16 %v277, %v276
        %v309 = vpack.c.bf16 %v279, %v278
        %v310 = vpack.c.bf16 %v281, %v280
        %v311 = vpack.c.bf16 %v283, %v282
        %v312 = vpack.c.bf16 %v285, %v284
        %v313 = vpack.c.bf16 %v287, %v286
        %v314 = vpack.c.bf16 %v289, %v288
        %v315 = vpack.c.bf16 %v291, %v290
        %v316 = vpack.c.bf16 %v293, %v292
        %v317 = vpack.c.bf16 %v295, %v294
        %v318 = vpack.c.bf16 %v297, %v296
        %v319 = vpack.c.bf16 %v299, %v298
        %v320 = vpack.c.bf16 %v301, %v300
        %v321 = vpack.c.bf16 %v303, %v302
        %v322 = vpack.c.bf16 %v305, %v304
        %v323 = vpack.c.bf16 %v307, %v306
        %v324 = vld [vmem:[%s1] sm:$0xff]
        %v325 = vld [vmem:[%s1 + $0x8] sm:$0xff]
        %v326 = vld [vmem:[%s1 + $0x10] sm:$0xff]
        %v327 = vld [vmem:[%s1 + $0x18] sm:$0xff]
        %v328 = vld [vmem:[%s1 + $0x20] sm:$0xff]
        %v329 = vld [vmem:[%s1 + $0x28] sm:$0xff]
        %v330 = vld [vmem:[%s1 + $0x30] sm:$0xff]
        %v331 = vld [vmem:[%s1 + $0x38] sm:$0xff]
        %v332 = vld [vmem:[%s1 + $0x40] sm:$0xff]
        %v333 = vld [vmem:[%s1 + $0x48] sm:$0xff]
        %v334 = vld [vmem:[%s1 + $0x50] sm:$0xff]
        %v335 = vld [vmem:[%s1 + $0x58] sm:$0xff]
        %v336 = vld [vmem:[%s1 + $0x60] sm:$0xff]
        %v337 = vld [vmem:[%s1 + $0x68] sm:$0xff]
        %v338 = vld [vmem:[%s1 + $0x70] sm:$0xff]
        %v339 = vld [vmem:[%s1 + $0x78] sm:$0xff]
        %v340 = vld [vmem:[%s3] ss:$8 sm:$0x3]
        %v342 = vperm.slane %v340, 0
        %v343 = vperm.slane %v340, 1
        %v362 = vunpack.c.l.b16 %v324
        %v363 = vunpack.c.h.b16 %v324
        %v364 = vunpack.c.l.b16 %v325
        %v365 = vunpack.c.h.b16 %v325
        %v366 = vunpack.c.l.b16 %v326
        %v367 = vunpack.c.h.b16 %v326
        %v368 = vunpack.c.l.b16 %v327
        %v369 = vunpack.c.h.b16 %v327
        %v370 = vunpack.c.l.b16 %v328
        %v371 = vunpack.c.h.b16 %v328
        %v372 = vunpack.c.l.b16 %v329
        %v373 = vunpack.c.h.b16 %v329
        %v374 = vunpack.c.l.b16 %v330
        %v375 = vunpack.c.h.b16 %v330
        %v376 = vunpack.c.l.b16 %v331
        %v377 = vunpack.c.h.b16 %v331
        %v378 = vunpack.c.l.b16 %v332
        %v379 = vunpack.c.h.b16 %v332
        %v380 = vunpack.c.l.b16 %v333
        %v381 = vunpack.c.h.b16 %v333
        %v382 = vunpack.c.l.b16 %v334
        %v383 = vunpack.c.h.b16 %v334
        %v384 = vunpack.c.l.b16 %v335
        %v385 = vunpack.c.h.b16 %v335
        %v386 = vunpack.c.l.b16 %v336
        %v387 = vunpack.c.h.b16 %v336
        %v388 = vunpack.c.l.b16 %v337
        %v389 = vunpack.c.h.b16 %v337
        %v390 = vunpack.c.l.b16 %v338
        %v391 = vunpack.c.h.b16 %v338
        %v392 = vunpack.c.l.b16 %v339
        %v393 = vunpack.c.h.b16 %v339
        %v394 = vpack.c.b16 %v364, %v362
        %v395 = vpack.c.b16 %v365, %v363
        %v396 = vpack.c.b16 %v368, %v366
        %v397 = vpack.c.b16 %v369, %v367
        %v398 = vpack.c.b16 %v372, %v370
        %v399 = vpack.c.b16 %v373, %v371
        %v400 = vpack.c.b16 %v376, %v374
        %v401 = vpack.c.b16 %v377, %v375
        %v402 = vpack.c.b16 %v380, %v378
        %v403 = vpack.c.b16 %v381, %v379
        %v404 = vpack.c.b16 %v384, %v382
        %v405 = vpack.c.b16 %v385, %v383
        %v406 = vpack.c.b16 %v388, %v386
        %v407 = vpack.c.b16 %v389, %v387
        %v408 = vpack.c.b16 %v392, %v390
        %v409 = vpack.c.b16 %v393, %v391
        %426 = vmatpush.bf16.msra.mxu0 %v408
        %427 = vmatpush.bf16.msra.mxu0 %v406
        %428 = vmatpush.bf16.msra.mxu0 %v404
        %429 = vmatpush.bf16.msra.mxu0 %v402
        %430 = vmatpush.bf16.msra.mxu0 %v400
        %431 = vmatpush.bf16.msra.mxu0 %v398
        %432 = vmatpush.bf16.msra.mxu0 %v396
        %433 = vmatpush.bf16.msra.mxu0 %v394
        %434 = vmatmul.bf16.gmra.mxu0 %v308
        %v435 = vpop.f32.mrf.mxu0
        %v436 = vadd.f32 %v342, %v435
        %v437 = vpop.f32.mrf.mxu0
        %v438 = vadd.f32 %v342, %v437
        %439 = vmatmul.bf16.gmra.mxu0 %v309
        %v440 = vpop.f32.mrf.mxu0
        %v441 = vadd.f32 %v342, %v440
        %v442 = vpop.f32.mrf.mxu0
        %v443 = vadd.f32 %v342, %v442
        %444 = vmatmul.bf16.gmra.mxu0 %v310
        %v445 = vpop.f32.mrf.mxu0
        %v446 = vadd.f32 %v342, %v445
        %v447 = vpop.f32.mrf.mxu0
        %v448 = vadd.f32 %v342, %v447
        %449 = vmatmul.bf16.gmra.mxu0 %v311
        %v450 = vpop.f32.mrf.mxu0
        %v451 = vadd.f32 %v342, %v450
        %v452 = vpop.f32.mrf.mxu0
        %v453 = vadd.f32 %v342, %v452
        %454 = vmatmul.bf16.gmra.mxu0 %v312
        %v455 = vpop.f32.mrf.mxu0
        %v456 = vadd.f32 %v342, %v455
        %v457 = vpop.f32.mrf.mxu0
        %v458 = vadd.f32 %v342, %v457
        %459 = vmatmul.bf16.gmra.mxu0 %v313
        %v460 = vpop.f32.mrf.mxu0
        %v461 = vadd.f32 %v342, %v460
        %v462 = vpop.f32.mrf.mxu0
        %v463 = vadd.f32 %v342, %v462
        %464 = vmatmul.bf16.gmra.mxu0 %v314
        %v465 = vpop.f32.mrf.mxu0
        %v466 = vadd.f32 %v342, %v465
        %v467 = vpop.f32.mrf.mxu0
        %v468 = vadd.f32 %v342, %v467
        %469 = vmatmul.bf16.gmra.mxu0 %v315
        %v470 = vpop.f32.mrf.mxu0
        %v471 = vadd.f32 %v342, %v470
        %v472 = vpop.f32.mrf.mxu0
        %v473 = vadd.f32 %v342, %v472
        %474 = vmatmul.bf16.gmra.mxu0 %v316
        %v475 = vpop.f32.mrf.mxu0
        %v476 = vadd.f32 %v342, %v475
        %v477 = vpop.f32.mrf.mxu0
        %v478 = vadd.f32 %v342, %v477
        %479 = vmatmul.bf16.gmra.mxu0 %v317
        %v480 = vpop.f32.mrf.mxu0
        %v481 = vadd.f32 %v342, %v480
        %v482 = vpop.f32.mrf.mxu0
        %v483 = vadd.f32 %v342, %v482
        %484 = vmatmul.bf16.gmra.mxu0 %v318
        %v485 = vpop.f32.mrf.mxu0
        %v486 = vadd.f32 %v342, %v485
        %v487 = vpop.f32.mrf.mxu0
        %v488 = vadd.f32 %v342, %v487
        %489 = vmatmul.bf16.gmra.mxu0 %v319
        %v490 = vpop.f32.mrf.mxu0
        %v491 = vadd.f32 %v342, %v490
        %v492 = vpop.f32.mrf.mxu0
        %v493 = vadd.f32 %v342, %v492
        %494 = vmatmul.bf16.gmra.mxu0 %v320
        %v495 = vpop.f32.mrf.mxu0
        %v496 = vadd.f32 %v342, %v495
        %v497 = vpop.f32.mrf.mxu0
        %v498 = vadd.f32 %v342, %v497
        %499 = vmatmul.bf16.gmra.mxu0 %v321
        %v500 = vpop.f32.mrf.mxu0
        %v501 = vadd.f32 %v342, %v500
        %v502 = vpop.f32.mrf.mxu0
        %v503 = vadd.f32 %v342, %v502
        %504 = vmatmul.bf16.gmra.mxu0 %v322
        %v505 = vpop.f32.mrf.mxu0
        %v506 = vadd.f32 %v342, %v505
        %v507 = vpop.f32.mrf.mxu0
        %v508 = vadd.f32 %v342, %v507
        %509 = vmatmul.bf16.gmra.mxu0 %v323
        %v510 = vpop.f32.mrf.mxu0
        %v511 = vadd.f32 %v342, %v510
        %v512 = vpop.f32.mrf.mxu0
        %v513 = vadd.f32 %v342, %v512
        %514 = vdwg.mxu0
        %515 = vmatpush.bf16.msra.mxu0 %v409
        %516 = vmatpush.bf16.msra.mxu0 %v407
        %517 = vmatpush.bf16.msra.mxu0 %v405
        %518 = vmatpush.bf16.msra.mxu0 %v403
        %519 = vmatpush.bf16.msra.mxu0 %v401
        %520 = vmatpush.bf16.msra.mxu0 %v399
        %521 = vmatpush.bf16.msra.mxu0 %v397
        %522 = vmatpush.bf16.msra.mxu0 %v395
        %523 = vmatmul.bf16.gmra.mxu0 %v308
        %v524 = vpop.f32.mrf.mxu0
        %v525 = vadd.f32 %v343, %v524
        %v526 = vpop.f32.mrf.mxu0
        %v527 = vadd.f32 %v343, %v526
        %528 = vmatmul.bf16.gmra.mxu0 %v309
        %v529 = vpop.f32.mrf.mxu0
        %v530 = vadd.f32 %v343, %v529
        %v531 = vpop.f32.mrf.mxu0
        %v532 = vadd.f32 %v343, %v531
        %533 = vmatmul.bf16.gmra.mxu0 %v310
        %v534 = vpop.f32.mrf.mxu0
        %v535 = vadd.f32 %v343, %v534
        %v536 = vpop.f32.mrf.mxu0
        %v537 = vadd.f32 %v343, %v536
        %538 = vmatmul.bf16.gmra.mxu0 %v311
        %v539 = vpop.f32.mrf.mxu0
        %v540 = vadd.f32 %v343, %v539
        %v541 = vpop.f32.mrf.mxu0
        %v542 = vadd.f32 %v343, %v541
        %543 = vmatmul.bf16.gmra.mxu0 %v312
        %v544 = vpop.f32.mrf.mxu0
        %v545 = vadd.f32 %v343, %v544
        %v546 = vpop.f32.mrf.mxu0
        %v547 = vadd.f32 %v343, %v546
        %548 = vmatmul.bf16.gmra.mxu0 %v313
        %v549 = vpop.f32.mrf.mxu0
        %v550 = vadd.f32 %v343, %v549
        %v551 = vpop.f32.mrf.mxu0
        %v552 = vadd.f32 %v343, %v551
        %553 = vmatmul.bf16.gmra.mxu0 %v314
        %v554 = vpop.f32.mrf.mxu0
        %v555 = vadd.f32 %v343, %v554
        %v556 = vpop.f32.mrf.mxu0
        %v557 = vadd.f32 %v343, %v556
        %558 = vmatmul.bf16.gmra.mxu0 %v315
        %v559 = vpop.f32.mrf.mxu0
        %v560 = vadd.f32 %v343, %v559
        %v561 = vpop.f32.mrf.mxu0
        %v562 = vadd.f32 %v343, %v561
        %563 = vmatmul.bf16.gmra.mxu0 %v316
        %v564 = vpop.f32.mrf.mxu0
        %v565 = vadd.f32 %v343, %v564
        %v566 = vpop.f32.mrf.mxu0
        %v567 = vadd.f32 %v343, %v566
        %568 = vmatmul.bf16.gmra.mxu0 %v317
        %v569 = vpop.f32.mrf.mxu0
        %v570 = vadd.f32 %v343, %v569
        %v571 = vpop.f32.mrf.mxu0
        %v572 = vadd.f32 %v343, %v571
        %573 = vmatmul.bf16.gmra.mxu0 %v318
        %v574 = vpop.f32.mrf.mxu0
        %v575 = vadd.f32 %v343, %v574
        %v576 = vpop.f32.mrf.mxu0
        %v577 = vadd.f32 %v343, %v576
        %578 = vmatmul.bf16.gmra.mxu0 %v319
        %v579 = vpop.f32.mrf.mxu0
        %v580 = vadd.f32 %v343, %v579
        %v581 = vpop.f32.mrf.mxu0
        %v582 = vadd.f32 %v343, %v581
        %583 = vmatmul.bf16.gmra.mxu0 %v320
        %v584 = vpop.f32.mrf.mxu0
        %v585 = vadd.f32 %v343, %v584
        %v586 = vpop.f32.mrf.mxu0
        %v587 = vadd.f32 %v343, %v586
        %588 = vmatmul.bf16.gmra.mxu0 %v321
        %v589 = vpop.f32.mrf.mxu0
        %v590 = vadd.f32 %v343, %v589
        %v591 = vpop.f32.mrf.mxu0
        %v592 = vadd.f32 %v343, %v591
        %593 = vmatmul.bf16.gmra.mxu0 %v322
        %v594 = vpop.f32.mrf.mxu0
        %v595 = vadd.f32 %v343, %v594
        %v596 = vpop.f32.mrf.mxu0
        %v597 = vadd.f32 %v343, %v596
        %598 = vmatmul.bf16.gmra.mxu0 %v323
        %v599 = vpop.f32.mrf.mxu0
        %v600 = vadd.f32 %v343, %v599
        %v601 = vpop.f32.mrf.mxu0
        %v602 = vadd.f32 %v343, %v601
        %603 = vdwg.mxu0
        %v604 = vmax.f32 %v436, 0.0
        %v605 = vmax.f32 %v525, 0.0
        %v606 = vmax.f32 %v438, 0.0
        %v607 = vmax.f32 %v527, 0.0
        %v608 = vmax.f32 %v441, 0.0
        %v609 = vmax.f32 %v530, 0.0
        %v610 = vmax.f32 %v443, 0.0
        %v611 = vmax.f32 %v532, 0.0
        %v612 = vmax.f32 %v446, 0.0
        %v613 = vmax.f32 %v535, 0.0
        %v614 = vmax.f32 %v448, 0.0
        %v615 = vmax.f32 %v537, 0.0
        %v616 = vmax.f32 %v451, 0.0
        %v617 = vmax.f32 %v540, 0.0
        %v618 = vmax.f32 %v453, 0.0
        %v619 = vmax.f32 %v542, 0.0
        %v620 = vmax.f32 %v456, 0.0
        %v621 = vmax.f32 %v545, 0.0
        %v622 = vmax.f32 %v458, 0.0
        %v623 = vmax.f32 %v547, 0.0
        %v624 = vmax.f32 %v461, 0.0
        %v625 = vmax.f32 %v550, 0.0
        %v626 = vmax.f32 %v463, 0.0
        %v627 = vmax.f32 %v552, 0.0
        %v628 = vmax.f32 %v466, 0.0
        %v629 = vmax.f32 %v555, 0.0
        %v630 = vmax.f32 %v468, 0.0
        %v631 = vmax.f32 %v557, 0.0
        %v632 = vmax.f32 %v471, 0.0
        %v633 = vmax.f32 %v560, 0.0
        %v634 = vmax.f32 %v473, 0.0
        %v635 = vmax.f32 %v562, 0.0
        %v636 = vmax.f32 %v476, 0.0
        %v637 = vmax.f32 %v565, 0.0
        %v638 = vmax.f32 %v478, 0.0
        %v639 = vmax.f32 %v567, 0.0
        %v640 = vmax.f32 %v481, 0.0
        %v641 = vmax.f32 %v570, 0.0
        %v642 = vmax.f32 %v483, 0.0
        %v643 = vmax.f32 %v572, 0.0
        %v644 = vmax.f32 %v486, 0.0
        %v645 = vmax.f32 %v575, 0.0
        %v646 = vmax.f32 %v488, 0.0
        %v647 = vmax.f32 %v577, 0.0
        %v648 = vmax.f32 %v491, 0.0
        %v649 = vmax.f32 %v580, 0.0
        %v650 = vmax.f32 %v493, 0.0
        %v651 = vmax.f32 %v582, 0.0
        %v652 = vmax.f32 %v496, 0.0
        %v653 = vmax.f32 %v585, 0.0
        %v654 = vmax.f32 %v498, 0.0
        %v655 = vmax.f32 %v587, 0.0
        %v656 = vmax.f32 %v501, 0.0
        %v657 = vmax.f32 %v590, 0.0
        %v658 = vmax.f32 %v503, 0.0
        %v659 = vmax.f32 %v592, 0.0
        %v660 = vmax.f32 %v506, 0.0
        %v661 = vmax.f32 %v595, 0.0
        %v662 = vmax.f32 %v508, 0.0
        %v663 = vmax.f32 %v597, 0.0
        %v664 = vmax.f32 %v511, 0.0
        %v665 = vmax.f32 %v600, 0.0
        %v666 = vmax.f32 %v513, 0.0
        %v667 = vmax.f32 %v602, 0.0
        %v668 = vpack.c.bf16 %v606, %v604
        %v669 = vpack.c.bf16 %v607, %v605
        %v670 = vpack.c.bf16 %v610, %v608
        %v671 = vpack.c.bf16 %v611, %v609
        %v672 = vpack.c.bf16 %v614, %v612
        %v673 = vpack.c.bf16 %v615, %v613
        %v674 = vpack.c.bf16 %v618, %v616
        %v675 = vpack.c.bf16 %v619, %v617
        %v676 = vpack.c.bf16 %v622, %v620
        %v677 = vpack.c.bf16 %v623, %v621
        %v678 = vpack.c.bf16 %v626, %v624
        %v679 = vpack.c.bf16 %v627, %v625
        %v680 = vpack.c.bf16 %v630, %v628
        %v681 = vpack.c.bf16 %v631, %v629
        %v682 = vpack.c.bf16 %v634, %v632
        %v683 = vpack.c.bf16 %v635, %v633
        %v684 = vpack.c.bf16 %v638, %v636
        %v685 = vpack.c.bf16 %v639, %v637
        %v686 = vpack.c.bf16 %v642, %v640
        %v687 = vpack.c.bf16 %v643, %v641
        %v688 = vpack.c.bf16 %v646, %v644
        %v689 = vpack.c.bf16 %v647, %v645
        %v690 = vpack.c.bf16 %v650, %v648
        %v691 = vpack.c.bf16 %v651, %v649
        %v692 = vpack.c.bf16 %v654, %v652
        %v693 = vpack.c.bf16 %v655, %v653
        %v694 = vpack.c.bf16 %v658, %v656
        %v695 = vpack.c.bf16 %v659, %v657
        %v696 = vpack.c.bf16 %v662, %v660
        %v697 = vpack.c.bf16 %v663, %v661
        %v698 = vpack.c.bf16 %v666, %v664
        %v699 = vpack.c.bf16 %v667, %v665
        %v700 = vld [vmem:[%s2] sm:$0xff]
        %v701 = vld [vmem:[%s2 + $0x8] sm:$0xff]
        %v702 = vld [vmem:[%s2 + $0x10] sm:$0xff]
        %v703 = vld [vmem:[%s2 + $0x18] sm:$0xff]
        %v704 = vld [vmem:[%s2 + $0x20] sm:$0xff]
        %v705 = vld [vmem:[%s2 + $0x28] sm:$0xff]
        %v706 = vld [vmem:[%s2 + $0x30] sm:$0xff]
        %v707 = vld [vmem:[%s2 + $0x38] sm:$0xff]
        %v708 = vld [vmem:[%s2 + $0x40] sm:$0xff]
        %v709 = vld [vmem:[%s2 + $0x48] sm:$0xff]
        %v710 = vld [vmem:[%s2 + $0x50] sm:$0xff]
        %v711 = vld [vmem:[%s2 + $0x58] sm:$0xff]
        %v712 = vld [vmem:[%s2 + $0x60] sm:$0xff]
        %v713 = vld [vmem:[%s2 + $0x68] sm:$0xff]
        %v714 = vld [vmem:[%s2 + $0x70] sm:$0xff]
        %v715 = vld [vmem:[%s2 + $0x78] sm:$0xff]
        %v716 = vld [vmem:[%s2 + $0x80] sm:$0xff]
        %v717 = vld [vmem:[%s2 + $0x88] sm:$0xff]
        %v718 = vld [vmem:[%s2 + $0x90] sm:$0xff]
        %v719 = vld [vmem:[%s2 + $0x98] sm:$0xff]
        %v720 = vld [vmem:[%s2 + $0xa0] sm:$0xff]
        %v721 = vld [vmem:[%s2 + $0xa8] sm:$0xff]
        %v722 = vld [vmem:[%s2 + $0xb0] sm:$0xff]
        %v723 = vld [vmem:[%s2 + $0xb8] sm:$0xff]
        %v724 = vld [vmem:[%s2 + $0xc0] sm:$0xff]
        %v725 = vld [vmem:[%s2 + $0xc8] sm:$0xff]
        %v726 = vld [vmem:[%s2 + $0xd0] sm:$0xff]
        %v727 = vld [vmem:[%s2 + $0xd8] sm:$0xff]
        %v728 = vld [vmem:[%s2 + $0xe0] sm:$0xff]
        %v729 = vld [vmem:[%s2 + $0xe8] sm:$0xff]
        %v730 = vld [vmem:[%s2 + $0xf0] sm:$0xff]
        %v731 = vld [vmem:[%s2 + $0xf8] sm:$0xff]
        %s732 = scalar_lea.vmem %s3, 1
        %v733 = vld [vmem:[%s732] ss:$8 sm:$0x3]
        %v735 = vperm.slane %v733, 0
        %v736 = vperm.slane %v733, 1
        %v771 = vunpack.c.l.b16 %v700
        %v772 = vunpack.c.h.b16 %v700
        %v773 = vunpack.c.l.b16 %v701
        %v774 = vunpack.c.h.b16 %v701
        %v775 = vunpack.c.l.b16 %v702
        %v776 = vunpack.c.h.b16 %v702
        %v777 = vunpack.c.l.b16 %v703
        %v778 = vunpack.c.h.b16 %v703
        %v779 = vunpack.c.l.b16 %v704
        %v780 = vunpack.c.h.b16 %v704
        %v781 = vunpack.c.l.b16 %v705
        %v782 = vunpack.c.h.b16 %v705
        %v783 = vunpack.c.l.b16 %v706
        %v784 = vunpack.c.h.b16 %v706
        %v785 = vunpack.c.l.b16 %v707
        %v786 = vunpack.c.h.b16 %v707
        %v787 = vunpack.c.l.b16 %v708
        %v788 = vunpack.c.h.b16 %v708
        %v789 = vunpack.c.l.b16 %v709
        %v790 = vunpack.c.h.b16 %v709
        %v791 = vunpack.c.l.b16 %v710
        %v792 = vunpack.c.h.b16 %v710
        %v793 = vunpack.c.l.b16 %v711
        %v794 = vunpack.c.h.b16 %v711
        %v795 = vunpack.c.l.b16 %v712
        %v796 = vunpack.c.h.b16 %v712
        %v797 = vunpack.c.l.b16 %v713
        %v798 = vunpack.c.h.b16 %v713
        %v799 = vunpack.c.l.b16 %v714
        %v800 = vunpack.c.h.b16 %v714
        %v801 = vunpack.c.l.b16 %v715
        %v802 = vunpack.c.h.b16 %v715
        %v803 = vunpack.c.l.b16 %v716
        %v804 = vunpack.c.h.b16 %v716
        %v805 = vunpack.c.l.b16 %v717
        %v806 = vunpack.c.h.b16 %v717
        %v807 = vunpack.c.l.b16 %v718
        %v808 = vunpack.c.h.b16 %v718
        %v809 = vunpack.c.l.b16 %v719
        %v810 = vunpack.c.h.b16 %v719
        %v811 = vunpack.c.l.b16 %v720
        %v812 = vunpack.c.h.b16 %v720
        %v813 = vunpack.c.l.b16 %v721
        %v814 = vunpack.c.h.b16 %v721
        %v815 = vunpack.c.l.b16 %v722
        %v816 = vunpack.c.h.b16 %v722
        %v817 = vunpack.c.l.b16 %v723
        %v818 = vunpack.c.h.b16 %v723
        %v819 = vunpack.c.l.b16 %v724
        %v820 = vunpack.c.h.b16 %v724
        %v821 = vunpack.c.l.b16 %v725
        %v822 = vunpack.c.h.b16 %v725
        %v823 = vunpack.c.l.b16 %v726
        %v824 = vunpack.c.h.b16 %v726
        %v825 = vunpack.c.l.b16 %v727
        %v826 = vunpack.c.h.b16 %v727
        %v827 = vunpack.c.l.b16 %v728
        %v828 = vunpack.c.h.b16 %v728
        %v829 = vunpack.c.l.b16 %v729
        %v830 = vunpack.c.h.b16 %v729
        %v831 = vunpack.c.l.b16 %v730
        %v832 = vunpack.c.h.b16 %v730
        %v833 = vunpack.c.l.b16 %v731
        %v834 = vunpack.c.h.b16 %v731
        %v835 = vpack.c.b16 %v773, %v771
        %v836 = vpack.c.b16 %v774, %v772
        %v837 = vpack.c.b16 %v777, %v775
        %v838 = vpack.c.b16 %v778, %v776
        %v839 = vpack.c.b16 %v781, %v779
        %v840 = vpack.c.b16 %v782, %v780
        %v841 = vpack.c.b16 %v785, %v783
        %v842 = vpack.c.b16 %v786, %v784
        %v843 = vpack.c.b16 %v789, %v787
        %v844 = vpack.c.b16 %v790, %v788
        %v845 = vpack.c.b16 %v793, %v791
        %v846 = vpack.c.b16 %v794, %v792
        %v847 = vpack.c.b16 %v797, %v795
        %v848 = vpack.c.b16 %v798, %v796
        %v849 = vpack.c.b16 %v801, %v799
        %v850 = vpack.c.b16 %v802, %v800
        %v851 = vpack.c.b16 %v805, %v803
        %v852 = vpack.c.b16 %v806, %v804
        %v853 = vpack.c.b16 %v809, %v807
        %v854 = vpack.c.b16 %v810, %v808
        %v855 = vpack.c.b16 %v813, %v811
        %v856 = vpack.c.b16 %v814, %v812
        %v857 = vpack.c.b16 %v817, %v815
        %v858 = vpack.c.b16 %v818, %v816
        %v859 = vpack.c.b16 %v821, %v819
        %v860 = vpack.c.b16 %v822, %v820
        %v861 = vpack.c.b16 %v825, %v823
        %v862 = vpack.c.b16 %v826, %v824
        %v863 = vpack.c.b16 %v829, %v827
        %v864 = vpack.c.b16 %v830, %v828
        %v865 = vpack.c.b16 %v833, %v831
        %v866 = vpack.c.b16 %v834, %v832
        %899 = vmatpush.bf16.msra.mxu0 %v849
        %900 = vmatpush.bf16.msra.mxu0 %v847
        %901 = vmatpush.bf16.msra.mxu0 %v845
        %902 = vmatpush.bf16.msra.mxu0 %v843
        %903 = vmatpush.bf16.msra.mxu0 %v841
        %904 = vmatpush.bf16.msra.mxu0 %v839
        %905 = vmatpush.bf16.msra.mxu0 %v837
        %906 = vmatpush.bf16.msra.mxu0 %v835
        %907 = vmatmul.bf16.gmra.mxu0 %v668
        %v908 = vpop.f32.mrf.mxu0
        %v909 = vadd.f32 %v735, %v908
        %v910 = vpop.f32.mrf.mxu0
        %v911 = vadd.f32 %v735, %v910
        %912 = vmatmul.bf16.gmra.mxu0 %v670
        %v913 = vpop.f32.mrf.mxu0
        %v914 = vadd.f32 %v735, %v913
        %v915 = vpop.f32.mrf.mxu0
        %v916 = vadd.f32 %v735, %v915
        %917 = vmatmul.bf16.gmra.mxu0 %v672
        %v918 = vpop.f32.mrf.mxu0
        %v919 = vadd.f32 %v735, %v918
        %v920 = vpop.f32.mrf.mxu0
        %v921 = vadd.f32 %v735, %v920
        %922 = vmatmul.bf16.gmra.mxu0 %v674
        %v923 = vpop.f32.mrf.mxu0
        %v924 = vadd.f32 %v735, %v923
        %v925 = vpop.f32.mrf.mxu0
        %v926 = vadd.f32 %v735, %v925
        %927 = vmatmul.bf16.gmra.mxu0 %v676
        %v928 = vpop.f32.mrf.mxu0
        %v929 = vadd.f32 %v735, %v928
        %v930 = vpop.f32.mrf.mxu0
        %v931 = vadd.f32 %v735, %v930
        %932 = vmatmul.bf16.gmra.mxu0 %v678
        %v933 = vpop.f32.mrf.mxu0
        %v934 = vadd.f32 %v735, %v933
        %v935 = vpop.f32.mrf.mxu0
        %v936 = vadd.f32 %v735, %v935
        %937 = vmatmul.bf16.gmra.mxu0 %v680
        %v938 = vpop.f32.mrf.mxu0
        %v939 = vadd.f32 %v735, %v938
        %v940 = vpop.f32.mrf.mxu0
        %v941 = vadd.f32 %v735, %v940
        %942 = vmatmul.bf16.gmra.mxu0 %v682
        %v943 = vpop.f32.mrf.mxu0
        %v944 = vadd.f32 %v735, %v943
        %v945 = vpop.f32.mrf.mxu0
        %v946 = vadd.f32 %v735, %v945
        %947 = vmatmul.bf16.gmra.mxu0 %v684
        %v948 = vpop.f32.mrf.mxu0
        %v949 = vadd.f32 %v735, %v948
        %v950 = vpop.f32.mrf.mxu0
        %v951 = vadd.f32 %v735, %v950
        %952 = vmatmul.bf16.gmra.mxu0 %v686
        %v953 = vpop.f32.mrf.mxu0
        %v954 = vadd.f32 %v735, %v953
        %v955 = vpop.f32.mrf.mxu0
        %v956 = vadd.f32 %v735, %v955
        %957 = vmatmul.bf16.gmra.mxu0 %v688
        %v958 = vpop.f32.mrf.mxu0
        %v959 = vadd.f32 %v735, %v958
        %v960 = vpop.f32.mrf.mxu0
        %v961 = vadd.f32 %v735, %v960
        %962 = vmatmul.bf16.gmra.mxu0 %v690
        %v963 = vpop.f32.mrf.mxu0
        %v964 = vadd.f32 %v735, %v963
        %v965 = vpop.f32.mrf.mxu0
        %v966 = vadd.f32 %v735, %v965
        %967 = vmatmul.bf16.gmra.mxu0 %v692
        %v968 = vpop.f32.mrf.mxu0
        %v969 = vadd.f32 %v735, %v968
        %v970 = vpop.f32.mrf.mxu0
        %v971 = vadd.f32 %v735, %v970
        %972 = vmatmul.bf16.gmra.mxu0 %v694
        %v973 = vpop.f32.mrf.mxu0
        %v974 = vadd.f32 %v735, %v973
        %v975 = vpop.f32.mrf.mxu0
        %v976 = vadd.f32 %v735, %v975
        %977 = vmatmul.bf16.gmra.mxu0 %v696
        %v978 = vpop.f32.mrf.mxu0
        %v979 = vadd.f32 %v735, %v978
        %v980 = vpop.f32.mrf.mxu0
        %v981 = vadd.f32 %v735, %v980
        %982 = vmatmul.bf16.gmra.mxu0 %v698
        %v983 = vpop.f32.mrf.mxu0
        %v984 = vadd.f32 %v735, %v983
        %v985 = vpop.f32.mrf.mxu0
        %v986 = vadd.f32 %v735, %v985
        %987 = vdwg.mxu0
        %988 = vmatpush.bf16.msra.mxu0 %v865
        %989 = vmatpush.bf16.msra.mxu0 %v863
        %990 = vmatpush.bf16.msra.mxu0 %v861
        %991 = vmatpush.bf16.msra.mxu0 %v859
        %992 = vmatpush.bf16.msra.mxu0 %v857
        %993 = vmatpush.bf16.msra.mxu0 %v855
        %994 = vmatpush.bf16.msra.mxu0 %v853
        %995 = vmatpush.bf16.msra.mxu0 %v851
        %996 = vmatmul.bf16.gmra.mxu0 %v669
        %v997 = vpop.f32.mrf.mxu0
        %v998 = vadd.f32 %v909, %v997
        %v999 = vpop.f32.mrf.mxu0
        %v1000 = vadd.f32 %v911, %v999
        %1001 = vmatmul.bf16.gmra.mxu0 %v671
        %v1002 = vpop.f32.mrf.mxu0
        %v1003 = vadd.f32 %v914, %v1002
        %v1004 = vpop.f32.mrf.mxu0
        %v1005 = vadd.f32 %v916, %v1004
        %1006 = vmatmul.bf16.gmra.mxu0 %v673
        %v1007 = vpop.f32.mrf.mxu0
        %v1008 = vadd.f32 %v919, %v1007
        %v1009 = vpop.f32.mrf.mxu0
        %v1010 = vadd.f32 %v921, %v1009
        %1011 = vmatmul.bf16.gmra.mxu0 %v675
        %v1012 = vpop.f32.mrf.mxu0
        %v1013 = vadd.f32 %v924, %v1012
        %v1014 = vpop.f32.mrf.mxu0
        %v1015 = vadd.f32 %v926, %v1014
        %1016 = vmatmul.bf16.gmra.mxu0 %v677
        %v1017 = vpop.f32.mrf.mxu0
        %v1018 = vadd.f32 %v929, %v1017
        %v1019 = vpop.f32.mrf.mxu0
        %v1020 = vadd.f32 %v931, %v1019
        %1021 = vmatmul.bf16.gmra.mxu0 %v679
        %v1022 = vpop.f32.mrf.mxu0
        %v1023 = vadd.f32 %v934, %v1022
        %v1024 = vpop.f32.mrf.mxu0
        %v1025 = vadd.f32 %v936, %v1024
        %1026 = vmatmul.bf16.gmra.mxu0 %v681
        %v1027 = vpop.f32.mrf.mxu0
        %v1028 = vadd.f32 %v939, %v1027
        %v1029 = vpop.f32.mrf.mxu0
        %v1030 = vadd.f32 %v941, %v1029
        %1031 = vmatmul.bf16.gmra.mxu0 %v683
        %v1032 = vpop.f32.mrf.mxu0
        %v1033 = vadd.f32 %v944, %v1032
        %v1034 = vpop.f32.mrf.mxu0
        %v1035 = vadd.f32 %v946, %v1034
        %1036 = vmatmul.bf16.gmra.mxu0 %v685
        %v1037 = vpop.f32.mrf.mxu0
        %v1038 = vadd.f32 %v949, %v1037
        %v1039 = vpop.f32.mrf.mxu0
        %v1040 = vadd.f32 %v951, %v1039
        %1041 = vmatmul.bf16.gmra.mxu0 %v687
        %v1042 = vpop.f32.mrf.mxu0
        %v1043 = vadd.f32 %v954, %v1042
        %v1044 = vpop.f32.mrf.mxu0
        %v1045 = vadd.f32 %v956, %v1044
        %1046 = vmatmul.bf16.gmra.mxu0 %v689
        %v1047 = vpop.f32.mrf.mxu0
        %v1048 = vadd.f32 %v959, %v1047
        %v1049 = vpop.f32.mrf.mxu0
        %v1050 = vadd.f32 %v961, %v1049
        %1051 = vmatmul.bf16.gmra.mxu0 %v691
        %v1052 = vpop.f32.mrf.mxu0
        %v1053 = vadd.f32 %v964, %v1052
        %v1054 = vpop.f32.mrf.mxu0
        %v1055 = vadd.f32 %v966, %v1054
        %1056 = vmatmul.bf16.gmra.mxu0 %v693
        %v1057 = vpop.f32.mrf.mxu0
        %v1058 = vadd.f32 %v969, %v1057
        %v1059 = vpop.f32.mrf.mxu0
        %v1060 = vadd.f32 %v971, %v1059
        %1061 = vmatmul.bf16.gmra.mxu0 %v695
        %v1062 = vpop.f32.mrf.mxu0
        %v1063 = vadd.f32 %v974, %v1062
        %v1064 = vpop.f32.mrf.mxu0
        %v1065 = vadd.f32 %v976, %v1064
        %1066 = vmatmul.bf16.gmra.mxu0 %v697
        %v1067 = vpop.f32.mrf.mxu0
        %v1068 = vadd.f32 %v979, %v1067
        %v1069 = vpop.f32.mrf.mxu0
        %v1070 = vadd.f32 %v981, %v1069
        %1071 = vmatmul.bf16.gmra.mxu0 %v699
        %v1072 = vpop.f32.mrf.mxu0
        %v1073 = vadd.f32 %v984, %v1072
        %v1074 = vpop.f32.mrf.mxu0
        %v1075 = vadd.f32 %v986, %v1074
        %1076 = vdwg.mxu0
        %1077 = vmatpush.bf16.msra.mxu0 %v850
        %1078 = vmatpush.bf16.msra.mxu0 %v848
        %1079 = vmatpush.bf16.msra.mxu0 %v846
        %1080 = vmatpush.bf16.msra.mxu0 %v844
        %1081 = vmatpush.bf16.msra.mxu0 %v842
        %1082 = vmatpush.bf16.msra.mxu0 %v840
        %1083 = vmatpush.bf16.msra.mxu0 %v838
        %1084 = vmatpush.bf16.msra.mxu0 %v836
        %1085 = vmatmul.bf16.gmra.mxu0 %v668
        %v1086 = vpop.f32.mrf.mxu0
        %v1087 = vadd.f32 %v736, %v1086
        %v1088 = vpop.f32.mrf.mxu0
        %v1089 = vadd.f32 %v736, %v1088
        %1090 = vmatmul.bf16.gmra.mxu0 %v670
        %v1091 = vpop.f32.mrf.mxu0
        %v1092 = vadd.f32 %v736, %v1091
        %v1093 = vpop.f32.mrf.mxu0
        %v1094 = vadd.f32 %v736, %v1093
        %1095 = vmatmul.bf16.gmra.mxu0 %v672
        %v1096 = vpop.f32.mrf.mxu0
        %v1097 = vadd.f32 %v736, %v1096
        %v1098 = vpop.f32.mrf.mxu0
        %v1099 = vadd.f32 %v736, %v1098
        %1100 = vmatmul.bf16.gmra.mxu0 %v674
        %v1101 = vpop.f32.mrf.mxu0
        %v1102 = vadd.f32 %v736, %v1101
        %v1103 = vpop.f32.mrf.mxu0
        %v1104 = vadd.f32 %v736, %v1103
        %1105 = vmatmul.bf16.gmra.mxu0 %v676
        %v1106 = vpop.f32.mrf.mxu0
        %v1107 = vadd.f32 %v736, %v1106
        %v1108 = vpop.f32.mrf.mxu0
        %v1109 = vadd.f32 %v736, %v1108
        %1110 = vmatmul.bf16.gmra.mxu0 %v678
        %v1111 = vpop.f32.mrf.mxu0
        %v1112 = vadd.f32 %v736, %v1111
        %v1113 = vpop.f32.mrf.mxu0
        %v1114 = vadd.f32 %v736, %v1113
        %1115 = vmatmul.bf16.gmra.mxu0 %v680
        %v1116 = vpop.f32.mrf.mxu0
        %v1117 = vadd.f32 %v736, %v1116
        %v1118 = vpop.f32.mrf.mxu0
        %v1119 = vadd.f32 %v736, %v1118
        %1120 = vmatmul.bf16.gmra.mxu0 %v682
        %v1121 = vpop.f32.mrf.mxu0
        %v1122 = vadd.f32 %v736, %v1121
        %v1123 = vpop.f32.mrf.mxu0
        %v1124 = vadd.f32 %v736, %v1123
        %1125 = vmatmul.bf16.gmra.mxu0 %v684
        %v1126 = vpop.f32.mrf.mxu0
        %v1127 = vadd.f32 %v736, %v1126
        %v1128 = vpop.f32.mrf.mxu0
        %v1129 = vadd.f32 %v736, %v1128
        %1130 = vmatmul.bf16.gmra.mxu0 %v686
        %v1131 = vpop.f32.mrf.mxu0
        %v1132 = vadd.f32 %v736, %v1131
        %v1133 = vpop.f32.mrf.mxu0
        %v1134 = vadd.f32 %v736, %v1133
        %1135 = vmatmul.bf16.gmra.mxu0 %v688
        %v1136 = vpop.f32.mrf.mxu0
        %v1137 = vadd.f32 %v736, %v1136
        %v1138 = vpop.f32.mrf.mxu0
        %v1139 = vadd.f32 %v736, %v1138
        %1140 = vmatmul.bf16.gmra.mxu0 %v690
        %v1141 = vpop.f32.mrf.mxu0
        %v1142 = vadd.f32 %v736, %v1141
        %v1143 = vpop.f32.mrf.mxu0
        %v1144 = vadd.f32 %v736, %v1143
        %1145 = vmatmul.bf16.gmra.mxu0 %v692
        %v1146 = vpop.f32.mrf.mxu0
        %v1147 = vadd.f32 %v736, %v1146
        %v1148 = vpop.f32.mrf.mxu0
        %v1149 = vadd.f32 %v736, %v1148
        %1150 = vmatmul.bf16.gmra.mxu0 %v694
        %v1151 = vpop.f32.mrf.mxu0
        %v1152 = vadd.f32 %v736, %v1151
        %v1153 = vpop.f32.mrf.mxu0
        %v1154 = vadd.f32 %v736, %v1153
        %1155 = vmatmul.bf16.gmra.mxu0 %v696
        %v1156 = vpop.f32.mrf.mxu0
        %v1157 = vadd.f32 %v736, %v1156
        %v1158 = vpop.f32.mrf.mxu0
        %v1159 = vadd.f32 %v736, %v1158
        %1160 = vmatmul.bf16.gmra.mxu0 %v698
        %v1161 = vpop.f32.mrf.mxu0
        %v1162 = vadd.f32 %v736, %v1161
        %v1163 = vpop.f32.mrf.mxu0
        %v1164 = vadd.f32 %v736, %v1163
        %1165 = vdwg.mxu0
        %1166 = vmatpush.bf16.msra.mxu0 %v866
        %1167 = vmatpush.bf16.msra.mxu0 %v864
        %1168 = vmatpush.bf16.msra.mxu0 %v862
        %1169 = vmatpush.bf16.msra.mxu0 %v860
        %1170 = vmatpush.bf16.msra.mxu0 %v858
        %1171 = vmatpush.bf16.msra.mxu0 %v856
        %1172 = vmatpush.bf16.msra.mxu0 %v854
        %1173 = vmatpush.bf16.msra.mxu0 %v852
        %1174 = vmatmul.bf16.gmra.mxu0 %v669
        %v1175 = vpop.f32.mrf.mxu0
        %v1176 = vadd.f32 %v1087, %v1175
        %v1177 = vpop.f32.mrf.mxu0
        %v1178 = vadd.f32 %v1089, %v1177
        %1179 = vmatmul.bf16.gmra.mxu0 %v671
        %v1180 = vpop.f32.mrf.mxu0
        %v1181 = vadd.f32 %v1092, %v1180
        %v1182 = vpop.f32.mrf.mxu0
        %v1183 = vadd.f32 %v1094, %v1182
        %1184 = vmatmul.bf16.gmra.mxu0 %v673
        %v1185 = vpop.f32.mrf.mxu0
        %v1186 = vadd.f32 %v1097, %v1185
        %v1187 = vpop.f32.mrf.mxu0
        %v1188 = vadd.f32 %v1099, %v1187
        %1189 = vmatmul.bf16.gmra.mxu0 %v675
        %v1190 = vpop.f32.mrf.mxu0
        %v1191 = vadd.f32 %v1102, %v1190
        %v1192 = vpop.f32.mrf.mxu0
        %v1193 = vadd.f32 %v1104, %v1192
        %1194 = vmatmul.bf16.gmra.mxu0 %v677
        %v1195 = vpop.f32.mrf.mxu0
        %v1196 = vadd.f32 %v1107, %v1195
        %v1197 = vpop.f32.mrf.mxu0
        %v1198 = vadd.f32 %v1109, %v1197
        %1199 = vmatmul.bf16.gmra.mxu0 %v679
        %v1200 = vpop.f32.mrf.mxu0
        %v1201 = vadd.f32 %v1112, %v1200
        %v1202 = vpop.f32.mrf.mxu0
        %v1203 = vadd.f32 %v1114, %v1202
        %1204 = vmatmul.bf16.gmra.mxu0 %v681
        %v1205 = vpop.f32.mrf.mxu0
        %v1206 = vadd.f32 %v1117, %v1205
        %v1207 = vpop.f32.mrf.mxu0
        %v1208 = vadd.f32 %v1119, %v1207
        %1209 = vmatmul.bf16.gmra.mxu0 %v683
        %v1210 = vpop.f32.mrf.mxu0
        %v1211 = vadd.f32 %v1122, %v1210
        %v1212 = vpop.f32.mrf.mxu0
        %v1213 = vadd.f32 %v1124, %v1212
        %1214 = vmatmul.bf16.gmra.mxu0 %v685
        %v1215 = vpop.f32.mrf.mxu0
        %v1216 = vadd.f32 %v1127, %v1215
        %v1217 = vpop.f32.mrf.mxu0
        %v1218 = vadd.f32 %v1129, %v1217
        %1219 = vmatmul.bf16.gmra.mxu0 %v687
        %v1220 = vpop.f32.mrf.mxu0
        %v1221 = vadd.f32 %v1132, %v1220
        %v1222 = vpop.f32.mrf.mxu0
        %v1223 = vadd.f32 %v1134, %v1222
        %1224 = vmatmul.bf16.gmra.mxu0 %v689
        %v1225 = vpop.f32.mrf.mxu0
        %v1226 = vadd.f32 %v1137, %v1225
        %v1227 = vpop.f32.mrf.mxu0
        %v1228 = vadd.f32 %v1139, %v1227
        %1229 = vmatmul.bf16.gmra.mxu0 %v691
        %v1230 = vpop.f32.mrf.mxu0
        %v1231 = vadd.f32 %v1142, %v1230
        %v1232 = vpop.f32.mrf.mxu0
        %v1233 = vadd.f32 %v1144, %v1232
        %1234 = vmatmul.bf16.gmra.mxu0 %v693
        %v1235 = vpop.f32.mrf.mxu0
        %v1236 = vadd.f32 %v1147, %v1235
        %v1237 = vpop.f32.mrf.mxu0
        %v1238 = vadd.f32 %v1149, %v1237
        %1239 = vmatmul.bf16.gmra.mxu0 %v695
        %v1240 = vpop.f32.mrf.mxu0
        %v1241 = vadd.f32 %v1152, %v1240
        %v1242 = vpop.f32.mrf.mxu0
        %v1243 = vadd.f32 %v1154, %v1242
        %1244 = vmatmul.bf16.gmra.mxu0 %v697
        %v1245 = vpop.f32.mrf.mxu0
        %v1246 = vadd.f32 %v1157, %v1245
        %v1247 = vpop.f32.mrf.mxu0
        %v1248 = vadd.f32 %v1159, %v1247
        %1249 = vmatmul.bf16.gmra.mxu0 %v699
        %v1250 = vpop.f32.mrf.mxu0
        %v1251 = vadd.f32 %v1162, %v1250
        %v1252 = vpop.f32.mrf.mxu0
        %v1253 = vadd.f32 %v1164, %v1252
        %1254 = vdwg.mxu0
        %v1255 = vmax.f32 %v998, 0.0
        %v1256 = vmax.f32 %v1176, 0.0
        %v1257 = vmax.f32 %v1000, 0.0
        %v1258 = vmax.f32 %v1178, 0.0
        %v1259 = vmax.f32 %v1003, 0.0
        %v1260 = vmax.f32 %v1181, 0.0
        %v1261 = vmax.f32 %v1005, 0.0
        %v1262 = vmax.f32 %v1183, 0.0
        %v1263 = vmax.f32 %v1008, 0.0
        %v1264 = vmax.f32 %v1186, 0.0
        %v1265 = vmax.f32 %v1010, 0.0
        %v1266 = vmax.f32 %v1188, 0.0
        %v1267 = vmax.f32 %v1013, 0.0
        %v1268 = vmax.f32 %v1191, 0.0
        %v1269 = vmax.f32 %v1015, 0.0
        %v1270 = vmax.f32 %v1193, 0.0
        %v1271 = vmax.f32 %v1018, 0.0
        %v1272 = vmax.f32 %v1196, 0.0
        %v1273 = vmax.f32 %v1020, 0.0
        %v1274 = vmax.f32 %v1198, 0.0
        %v1275 = vmax.f32 %v1023, 0.0
        %v1276 = vmax.f32 %v1201, 0.0
        %v1277 = vmax.f32 %v1025, 0.0
        %v1278 = vmax.f32 %v1203, 0.0
        %v1279 = vmax.f32 %v1028, 0.0
        %v1280 = vmax.f32 %v1206, 0.0
        %v1281 = vmax.f32 %v1030, 0.0
        %v1282 = vmax.f32 %v1208, 0.0
        %v1283 = vmax.f32 %v1033, 0.0
        %v1284 = vmax.f32 %v1211, 0.0
        %v1285 = vmax.f32 %v1035, 0.0
        %v1286 = vmax.f32 %v1213, 0.0
        %v1287 = vmax.f32 %v1038, 0.0
        %v1288 = vmax.f32 %v1216, 0.0
        %v1289 = vmax.f32 %v1040, 0.0
        %v1290 = vmax.f32 %v1218, 0.0
        %v1291 = vmax.f32 %v1043, 0.0
        %v1292 = vmax.f32 %v1221, 0.0
        %v1293 = vmax.f32 %v1045, 0.0
        %v1294 = vmax.f32 %v1223, 0.0
        %v1295 = vmax.f32 %v1048, 0.0
        %v1296 = vmax.f32 %v1226, 0.0
        %v1297 = vmax.f32 %v1050, 0.0
        %v1298 = vmax.f32 %v1228, 0.0
        %v1299 = vmax.f32 %v1053, 0.0
        %v1300 = vmax.f32 %v1231, 0.0
        %v1301 = vmax.f32 %v1055, 0.0
        %v1302 = vmax.f32 %v1233, 0.0
        %v1303 = vmax.f32 %v1058, 0.0
        %v1304 = vmax.f32 %v1236, 0.0
        %v1305 = vmax.f32 %v1060, 0.0
        %v1306 = vmax.f32 %v1238, 0.0
        %v1307 = vmax.f32 %v1063, 0.0
        %v1308 = vmax.f32 %v1241, 0.0
        %v1309 = vmax.f32 %v1065, 0.0
        %v1310 = vmax.f32 %v1243, 0.0
        %v1311 = vmax.f32 %v1068, 0.0
        %v1312 = vmax.f32 %v1246, 0.0
        %v1313 = vmax.f32 %v1070, 0.0
        %v1314 = vmax.f32 %v1248, 0.0
        %v1315 = vmax.f32 %v1073, 0.0
        %v1316 = vmax.f32 %v1251, 0.0
        %v1317 = vmax.f32 %v1075, 0.0
        %v1318 = vmax.f32 %v1253, 0.0
        %v1319 = vpack.c.bf16 %v1257, %v1255
        %v1320 = vpack.c.bf16 %v1258, %v1256
        %v1321 = vpack.c.bf16 %v1261, %v1259
        %v1322 = vpack.c.bf16 %v1262, %v1260
        %v1323 = vpack.c.bf16 %v1265, %v1263
        %v1324 = vpack.c.bf16 %v1266, %v1264
        %v1325 = vpack.c.bf16 %v1269, %v1267
        %v1326 = vpack.c.bf16 %v1270, %v1268
        %v1327 = vpack.c.bf16 %v1273, %v1271
        %v1328 = vpack.c.bf16 %v1274, %v1272
        %v1329 = vpack.c.bf16 %v1277, %v1275
        %v1330 = vpack.c.bf16 %v1278, %v1276
        %v1331 = vpack.c.bf16 %v1281, %v1279
        %v1332 = vpack.c.bf16 %v1282, %v1280
        %v1333 = vpack.c.bf16 %v1285, %v1283
        %v1334 = vpack.c.bf16 %v1286, %v1284
        %v1335 = vpack.c.bf16 %v1289, %v1287
        %v1336 = vpack.c.bf16 %v1290, %v1288
        %v1337 = vpack.c.bf16 %v1293, %v1291
        %v1338 = vpack.c.bf16 %v1294, %v1292
        %v1339 = vpack.c.bf16 %v1297, %v1295
        %v1340 = vpack.c.bf16 %v1298, %v1296
        %v1341 = vpack.c.bf16 %v1301, %v1299
        %v1342 = vpack.c.bf16 %v1302, %v1300
        %v1343 = vpack.c.bf16 %v1305, %v1303
        %v1344 = vpack.c.bf16 %v1306, %v1304
        %v1345 = vpack.c.bf16 %v1309, %v1307
        %v1346 = vpack.c.bf16 %v1310, %v1308
        %v1347 = vpack.c.bf16 %v1313, %v1311
        %v1348 = vpack.c.bf16 %v1314, %v1312
        %v1349 = vpack.c.bf16 %v1317, %v1315
        %v1350 = vpack.c.bf16 %v1318, %v1316
        %s1351 = scalar_lea.vmem %s2, 256
        %v1352 = vld [vmem:[%s1351] sm:$0xff]
        %v1353 = vld [vmem:[%s1351 + $0x8] sm:$0xff]
        %v1354 = vld [vmem:[%s1351 + $0x10] sm:$0xff]
        %v1355 = vld [vmem:[%s1351 + $0x18] sm:$0xff]
        %v1356 = vld [vmem:[%s1351 + $0x20] sm:$0xff]
        %v1357 = vld [vmem:[%s1351 + $0x28] sm:$0xff]
        %v1358 = vld [vmem:[%s1351 + $0x30] sm:$0xff]
        %v1359 = vld [vmem:[%s1351 + $0x38] sm:$0xff]
        %v1360 = vld [vmem:[%s1351 + $0x40] sm:$0xff]
        %v1361 = vld [vmem:[%s1351 + $0x48] sm:$0xff]
        %v1362 = vld [vmem:[%s1351 + $0x50] sm:$0xff]
        %v1363 = vld [vmem:[%s1351 + $0x58] sm:$0xff]
        %v1364 = vld [vmem:[%s1351 + $0x60] sm:$0xff]
        %v1365 = vld [vmem:[%s1351 + $0x68] sm:$0xff]
        %v1366 = vld [vmem:[%s1351 + $0x70] sm:$0xff]
        %v1367 = vld [vmem:[%s1351 + $0x78] sm:$0xff]
        %v1368 = vld [vmem:[%s1351 + $0x80] sm:$0xff]
        %v1369 = vld [vmem:[%s1351 + $0x88] sm:$0xff]
        %v1370 = vld [vmem:[%s1351 + $0x90] sm:$0xff]
        %v1371 = vld [vmem:[%s1351 + $0x98] sm:$0xff]
        %v1372 = vld [vmem:[%s1351 + $0xa0] sm:$0xff]
        %v1373 = vld [vmem:[%s1351 + $0xa8] sm:$0xff]
        %v1374 = vld [vmem:[%s1351 + $0xb0] sm:$0xff]
        %v1375 = vld [vmem:[%s1351 + $0xb8] sm:$0xff]
        %v1376 = vld [vmem:[%s1351 + $0xc0] sm:$0xff]
        %v1377 = vld [vmem:[%s1351 + $0xc8] sm:$0xff]
        %v1378 = vld [vmem:[%s1351 + $0xd0] sm:$0xff]
        %v1379 = vld [vmem:[%s1351 + $0xd8] sm:$0xff]
        %v1380 = vld [vmem:[%s1351 + $0xe0] sm:$0xff]
        %v1381 = vld [vmem:[%s1351 + $0xe8] sm:$0xff]
        %v1382 = vld [vmem:[%s1351 + $0xf0] sm:$0xff]
        %v1383 = vld [vmem:[%s1351 + $0xf8] sm:$0xff]
        %s1384 = scalar_lea.vmem %s3, 2
        %v1385 = vld [vmem:[%s1384] ss:$8 sm:$0x3]
        %v1387 = vperm.slane %v1385, 0
        %v1388 = vperm.slane %v1385, 1
        %v1423 = vunpack.c.l.b16 %v1352
        %v1424 = vunpack.c.h.b16 %v1352
        %v1425 = vunpack.c.l.b16 %v1353
        %v1426 = vunpack.c.h.b16 %v1353
        %v1427 = vunpack.c.l.b16 %v1354
        %v1428 = vunpack.c.h.b16 %v1354
        %v1429 = vunpack.c.l.b16 %v1355
        %v1430 = vunpack.c.h.b16 %v1355
        %v1431 = vunpack.c.l.b16 %v1356
        %v1432 = vunpack.c.h.b16 %v1356
        %v1433 = vunpack.c.l.b16 %v1357
        %v1434 = vunpack.c.h.b16 %v1357
        %v1435 = vunpack.c.l.b16 %v1358
        %v1436 = vunpack.c.h.b16 %v1358
        %v1437 = vunpack.c.l.b16 %v1359
        %v1438 = vunpack.c.h.b16 %v1359
        %v1439 = vunpack.c.l.b16 %v1360
        %v1440 = vunpack.c.h.b16 %v1360
        %v1441 = vunpack.c.l.b16 %v1361
        %v1442 = vunpack.c.h.b16 %v1361
        %v1443 = vunpack.c.l.b16 %v1362
        %v1444 = vunpack.c.h.b16 %v1362
        %v1445 = vunpack.c.l.b16 %v1363
        %v1446 = vunpack.c.h.b16 %v1363
        %v1447 = vunpack.c.l.b16 %v1364
        %v1448 = vunpack.c.h.b16 %v1364
        %v1449 = vunpack.c.l.b16 %v1365
        %v1450 = vunpack.c.h.b16 %v1365
        %v1451 = vunpack.c.l.b16 %v1366
        %v1452 = vunpack.c.h.b16 %v1366
        %v1453 = vunpack.c.l.b16 %v1367
        %v1454 = vunpack.c.h.b16 %v1367
        %v1455 = vunpack.c.l.b16 %v1368
        %v1456 = vunpack.c.h.b16 %v1368
        %v1457 = vunpack.c.l.b16 %v1369
        %v1458 = vunpack.c.h.b16 %v1369
        %v1459 = vunpack.c.l.b16 %v1370
        %v1460 = vunpack.c.h.b16 %v1370
        %v1461 = vunpack.c.l.b16 %v1371
        %v1462 = vunpack.c.h.b16 %v1371
        %v1463 = vunpack.c.l.b16 %v1372
        %v1464 = vunpack.c.h.b16 %v1372
        %v1465 = vunpack.c.l.b16 %v1373
        %v1466 = vunpack.c.h.b16 %v1373
        %v1467 = vunpack.c.l.b16 %v1374
        %v1468 = vunpack.c.h.b16 %v1374
        %v1469 = vunpack.c.l.b16 %v1375
        %v1470 = vunpack.c.h.b16 %v1375
        %v1471 = vunpack.c.l.b16 %v1376
        %v1472 = vunpack.c.h.b16 %v1376
        %v1473 = vunpack.c.l.b16 %v1377
        %v1474 = vunpack.c.h.b16 %v1377
        %v1475 = vunpack.c.l.b16 %v1378
        %v1476 = vunpack.c.h.b16 %v1378
        %v1477 = vunpack.c.l.b16 %v1379
        %v1478 = vunpack.c.h.b16 %v1379
        %v1479 = vunpack.c.l.b16 %v1380
        %v1480 = vunpack.c.h.b16 %v1380
        %v1481 = vunpack.c.l.b16 %v1381
        %v1482 = vunpack.c.h.b16 %v1381
        %v1483 = vunpack.c.l.b16 %v1382
        %v1484 = vunpack.c.h.b16 %v1382
        %v1485 = vunpack.c.l.b16 %v1383
        %v1486 = vunpack.c.h.b16 %v1383
        %v1487 = vpack.c.b16 %v1425, %v1423
        %v1488 = vpack.c.b16 %v1426, %v1424
        %v1489 = vpack.c.b16 %v1429, %v1427
        %v1490 = vpack.c.b16 %v1430, %v1428
        %v1491 = vpack.c.b16 %v1433, %v1431
        %v1492 = vpack.c.b16 %v1434, %v1432
        %v1493 = vpack.c.b16 %v1437, %v1435
        %v1494 = vpack.c.b16 %v1438, %v1436
        %v1495 = vpack.c.b16 %v1441, %v1439
        %v1496 = vpack.c.b16 %v1442, %v1440
        %v1497 = vpack.c.b16 %v1445, %v1443
        %v1498 = vpack.c.b16 %v1446, %v1444
        %v1499 = vpack.c.b16 %v1449, %v1447
        %v1500 = vpack.c.b16 %v1450, %v1448
        %v1501 = vpack.c.b16 %v1453, %v1451
        %v1502 = vpack.c.b16 %v1454, %v1452
        %v1503 = vpack.c.b16 %v1457, %v1455
        %v1504 = vpack.c.b16 %v1458, %v1456
        %v1505 = vpack.c.b16 %v1461, %v1459
        %v1506 = vpack.c.b16 %v1462, %v1460
        %v1507 = vpack.c.b16 %v1465, %v1463
        %v1508 = vpack.c.b16 %v1466, %v1464
        %v1509 = vpack.c.b16 %v1469, %v1467
        %v1510 = vpack.c.b16 %v1470, %v1468
        %v1511 = vpack.c.b16 %v1473, %v1471
        %v1512 = vpack.c.b16 %v1474, %v1472
        %v1513 = vpack.c.b16 %v1477, %v1475
        %v1514 = vpack.c.b16 %v1478, %v1476
        %v1515 = vpack.c.b16 %v1481, %v1479
        %v1516 = vpack.c.b16 %v1482, %v1480
        %v1517 = vpack.c.b16 %v1485, %v1483
        %v1518 = vpack.c.b16 %v1486, %v1484
        %1551 = vmatpush.bf16.msra.mxu0 %v1501
        %1552 = vmatpush.bf16.msra.mxu0 %v1499
        %1553 = vmatpush.bf16.msra.mxu0 %v1497
        %1554 = vmatpush.bf16.msra.mxu0 %v1495
        %1555 = vmatpush.bf16.msra.mxu0 %v1493
        %1556 = vmatpush.bf16.msra.mxu0 %v1491
        %1557 = vmatpush.bf16.msra.mxu0 %v1489
        %1558 = vmatpush.bf16.msra.mxu0 %v1487
        %1559 = vmatmul.bf16.gmra.mxu0 %v1319
        %v1560 = vpop.f32.mrf.mxu0
        %v1561 = vadd.f32 %v1387, %v1560
        %v1562 = vpop.f32.mrf.mxu0
        %v1563 = vadd.f32 %v1387, %v1562
        %1564 = vmatmul.bf16.gmra.mxu0 %v1321
        %v1565 = vpop.f32.mrf.mxu0
        %v1566 = vadd.f32 %v1387, %v1565
        %v1567 = vpop.f32.mrf.mxu0
        %v1568 = vadd.f32 %v1387, %v1567
        %1569 = vmatmul.bf16.gmra.mxu0 %v1323
        %v1570 = vpop.f32.mrf.mxu0
        %v1571 = vadd.f32 %v1387, %v1570
        %v1572 = vpop.f32.mrf.mxu0
        %v1573 = vadd.f32 %v1387, %v1572
        %1574 = vmatmul.bf16.gmra.mxu0 %v1325
        %v1575 = vpop.f32.mrf.mxu0
        %v1576 = vadd.f32 %v1387, %v1575
        %v1577 = vpop.f32.mrf.mxu0
        %v1578 = vadd.f32 %v1387, %v1577
        %1579 = vmatmul.bf16.gmra.mxu0 %v1327
        %v1580 = vpop.f32.mrf.mxu0
        %v1581 = vadd.f32 %v1387, %v1580
        %v1582 = vpop.f32.mrf.mxu0
        %v1583 = vadd.f32 %v1387, %v1582
        %1584 = vmatmul.bf16.gmra.mxu0 %v1329
        %v1585 = vpop.f32.mrf.mxu0
        %v1586 = vadd.f32 %v1387, %v1585
        %v1587 = vpop.f32.mrf.mxu0
        %v1588 = vadd.f32 %v1387, %v1587
        %1589 = vmatmul.bf16.gmra.mxu0 %v1331
        %v1590 = vpop.f32.mrf.mxu0
        %v1591 = vadd.f32 %v1387, %v1590
        %v1592 = vpop.f32.mrf.mxu0
        %v1593 = vadd.f32 %v1387, %v1592
        %1594 = vmatmul.bf16.gmra.mxu0 %v1333
        %v1595 = vpop.f32.mrf.mxu0
        %v1596 = vadd.f32 %v1387, %v1595
        %v1597 = vpop.f32.mrf.mxu0
        %v1598 = vadd.f32 %v1387, %v1597
        %1599 = vmatmul.bf16.gmra.mxu0 %v1335
        %v1600 = vpop.f32.mrf.mxu0
        %v1601 = vadd.f32 %v1387, %v1600
        %v1602 = vpop.f32.mrf.mxu0
        %v1603 = vadd.f32 %v1387, %v1602
        %1604 = vmatmul.bf16.gmra.mxu0 %v1337
        %v1605 = vpop.f32.mrf.mxu0
        %v1606 = vadd.f32 %v1387, %v1605
        %v1607 = vpop.f32.mrf.mxu0
        %v1608 = vadd.f32 %v1387, %v1607
        %1609 = vmatmul.bf16.gmra.mxu0 %v1339
        %v1610 = vpop.f32.mrf.mxu0
        %v1611 = vadd.f32 %v1387, %v1610
        %v1612 = vpop.f32.mrf.mxu0
        %v1613 = vadd.f32 %v1387, %v1612
        %1614 = vmatmul.bf16.gmra.mxu0 %v1341
        %v1615 = vpop.f32.mrf.mxu0
        %v1616 = vadd.f32 %v1387, %v1615
        %v1617 = vpop.f32.mrf.mxu0
        %v1618 = vadd.f32 %v1387, %v1617
        %1619 = vmatmul.bf16.gmra.mxu0 %v1343
        %v1620 = vpop.f32.mrf.mxu0
        %v1621 = vadd.f32 %v1387, %v1620
        %v1622 = vpop.f32.mrf.mxu0
        %v1623 = vadd.f32 %v1387, %v1622
        %1624 = vmatmul.bf16.gmra.mxu0 %v1345
        %v1625 = vpop.f32.mrf.mxu0
        %v1626 = vadd.f32 %v1387, %v1625
        %v1627 = vpop.f32.mrf.mxu0
        %v1628 = vadd.f32 %v1387, %v1627
        %1629 = vmatmul.bf16.gmra.mxu0 %v1347
        %v1630 = vpop.f32.mrf.mxu0
        %v1631 = vadd.f32 %v1387, %v1630
        %v1632 = vpop.f32.mrf.mxu0
        %v1633 = vadd.f32 %v1387, %v1632
        %1634 = vmatmul.bf16.gmra.mxu0 %v1349
        %v1635 = vpop.f32.mrf.mxu0
        %v1636 = vadd.f32 %v1387, %v1635
        %v1637 = vpop.f32.mrf.mxu0
        %v1638 = vadd.f32 %v1387, %v1637
        %1639 = vdwg.mxu0
        %1640 = vmatpush.bf16.msra.mxu0 %v1517
        %1641 = vmatpush.bf16.msra.mxu0 %v1515
        %1642 = vmatpush.bf16.msra.mxu0 %v1513
        %1643 = vmatpush.bf16.msra.mxu0 %v1511
        %1644 = vmatpush.bf16.msra.mxu0 %v1509
        %1645 = vmatpush.bf16.msra.mxu0 %v1507
        %1646 = vmatpush.bf16.msra.mxu0 %v1505
        %1647 = vmatpush.bf16.msra.mxu0 %v1503
        %1648 = vmatmul.bf16.gmra.mxu0 %v1320
        %v1649 = vpop.f32.mrf.mxu0
        %v1650 = vadd.f32 %v1561, %v1649
        %v1651 = vpop.f32.mrf.mxu0
        %v1652 = vadd.f32 %v1563, %v1651
        %1653 = vmatmul.bf16.gmra.mxu0 %v1322
        %v1654 = vpop.f32.mrf.mxu0
        %v1655 = vadd.f32 %v1566, %v1654
        %v1656 = vpop.f32.mrf.mxu0
        %v1657 = vadd.f32 %v1568, %v1656
        %1658 = vmatmul.bf16.gmra.mxu0 %v1324
        %v1659 = vpop.f32.mrf.mxu0
        %v1660 = vadd.f32 %v1571, %v1659
        %v1661 = vpop.f32.mrf.mxu0
        %v1662 = vadd.f32 %v1573, %v1661
        %1663 = vmatmul.bf16.gmra.mxu0 %v1326
        %v1664 = vpop.f32.mrf.mxu0
        %v1665 = vadd.f32 %v1576, %v1664
        %v1666 = vpop.f32.mrf.mxu0
        %v1667 = vadd.f32 %v1578, %v1666
        %1668 = vmatmul.bf16.gmra.mxu0 %v1328
        %v1669 = vpop.f32.mrf.mxu0
        %v1670 = vadd.f32 %v1581, %v1669
        %v1671 = vpop.f32.mrf.mxu0
        %v1672 = vadd.f32 %v1583, %v1671
        %1673 = vmatmul.bf16.gmra.mxu0 %v1330
        %v1674 = vpop.f32.mrf.mxu0
        %v1675 = vadd.f32 %v1586, %v1674
        %v1676 = vpop.f32.mrf.mxu0
        %v1677 = vadd.f32 %v1588, %v1676
        %1678 = vmatmul.bf16.gmra.mxu0 %v1332
        %v1679 = vpop.f32.mrf.mxu0
        %v1680 = vadd.f32 %v1591, %v1679
        %v1681 = vpop.f32.mrf.mxu0
        %v1682 = vadd.f32 %v1593, %v1681
        %1683 = vmatmul.bf16.gmra.mxu0 %v1334
        %v1684 = vpop.f32.mrf.mxu0
        %v1685 = vadd.f32 %v1596, %v1684
        %v1686 = vpop.f32.mrf.mxu0
        %v1687 = vadd.f32 %v1598, %v1686
        %1688 = vmatmul.bf16.gmra.mxu0 %v1336
        %v1689 = vpop.f32.mrf.mxu0
        %v1690 = vadd.f32 %v1601, %v1689
        %v1691 = vpop.f32.mrf.mxu0
        %v1692 = vadd.f32 %v1603, %v1691
        %1693 = vmatmul.bf16.gmra.mxu0 %v1338
        %v1694 = vpop.f32.mrf.mxu0
        %v1695 = vadd.f32 %v1606, %v1694
        %v1696 = vpop.f32.mrf.mxu0
        %v1697 = vadd.f32 %v1608, %v1696
        %1698 = vmatmul.bf16.gmra.mxu0 %v1340
        %v1699 = vpop.f32.mrf.mxu0
        %v1700 = vadd.f32 %v1611, %v1699
        %v1701 = vpop.f32.mrf.mxu0
        %v1702 = vadd.f32 %v1613, %v1701
        %1703 = vmatmul.bf16.gmra.mxu0 %v1342
        %v1704 = vpop.f32.mrf.mxu0
        %v1705 = vadd.f32 %v1616, %v1704
        %v1706 = vpop.f32.mrf.mxu0
        %v1707 = vadd.f32 %v1618, %v1706
        %1708 = vmatmul.bf16.gmra.mxu0 %v1344
        %v1709 = vpop.f32.mrf.mxu0
        %v1710 = vadd.f32 %v1621, %v1709
        %v1711 = vpop.f32.mrf.mxu0
        %v1712 = vadd.f32 %v1623, %v1711
        %1713 = vmatmul.bf16.gmra.mxu0 %v1346
        %v1714 = vpop.f32.mrf.mxu0
        %v1715 = vadd.f32 %v1626, %v1714
        %v1716 = vpop.f32.mrf.mxu0
        %v1717 = vadd.f32 %v1628, %v1716
        %1718 = vmatmul.bf16.gmra.mxu0 %v1348
        %v1719 = vpop.f32.mrf.mxu0
        %v1720 = vadd.f32 %v1631, %v1719
        %v1721 = vpop.f32.mrf.mxu0
        %v1722 = vadd.f32 %v1633, %v1721
        %1723 = vmatmul.bf16.gmra.mxu0 %v1350
        %v1724 = vpop.f32.mrf.mxu0
        %v1725 = vadd.f32 %v1636, %v1724
        %v1726 = vpop.f32.mrf.mxu0
        %v1727 = vadd.f32 %v1638, %v1726
        %1728 = vdwg.mxu0
        %1729 = vmatpush.bf16.msra.mxu0 %v1502
        %1730 = vmatpush.bf16.msra.mxu0 %v1500
        %1731 = vmatpush.bf16.msra.mxu0 %v1498
        %1732 = vmatpush.bf16.msra.mxu0 %v1496
        %1733 = vmatpush.bf16.msra.mxu0 %v1494
        %1734 = vmatpush.bf16.msra.mxu0 %v1492
        %1735 = vmatpush.bf16.msra.mxu0 %v1490
        %1736 = vmatpush.bf16.msra.mxu0 %v1488
        %1737 = vmatmul.bf16.gmra.mxu0 %v1319
        %v1738 = vpop.f32.mrf.mxu0
        %v1739 = vadd.f32 %v1388, %v1738
        %v1740 = vpop.f32.mrf.mxu0
        %v1741 = vadd.f32 %v1388, %v1740
        %1742 = vmatmul.bf16.gmra.mxu0 %v1321
        %v1743 = vpop.f32.mrf.mxu0
        %v1744 = vadd.f32 %v1388, %v1743
        %v1745 = vpop.f32.mrf.mxu0
        %v1746 = vadd.f32 %v1388, %v1745
        %1747 = vmatmul.bf16.gmra.mxu0 %v1323
        %v1748 = vpop.f32.mrf.mxu0
        %v1749 = vadd.f32 %v1388, %v1748
        %v1750 = vpop.f32.mrf.mxu0
        %v1751 = vadd.f32 %v1388, %v1750
        %1752 = vmatmul.bf16.gmra.mxu0 %v1325
        %v1753 = vpop.f32.mrf.mxu0
        %v1754 = vadd.f32 %v1388, %v1753
        %v1755 = vpop.f32.mrf.mxu0
        %v1756 = vadd.f32 %v1388, %v1755
        %1757 = vmatmul.bf16.gmra.mxu0 %v1327
        %v1758 = vpop.f32.mrf.mxu0
        %v1759 = vadd.f32 %v1388, %v1758
        %v1760 = vpop.f32.mrf.mxu0
        %v1761 = vadd.f32 %v1388, %v1760
        %1762 = vmatmul.bf16.gmra.mxu0 %v1329
        %v1763 = vpop.f32.mrf.mxu0
        %v1764 = vadd.f32 %v1388, %v1763
        %v1765 = vpop.f32.mrf.mxu0
        %v1766 = vadd.f32 %v1388, %v1765
        %1767 = vmatmul.bf16.gmra.mxu0 %v1331
        %v1768 = vpop.f32.mrf.mxu0
        %v1769 = vadd.f32 %v1388, %v1768
        %v1770 = vpop.f32.mrf.mxu0
        %v1771 = vadd.f32 %v1388, %v1770
        %1772 = vmatmul.bf16.gmra.mxu0 %v1333
        %v1773 = vpop.f32.mrf.mxu0
        %v1774 = vadd.f32 %v1388, %v1773
        %v1775 = vpop.f32.mrf.mxu0
        %v1776 = vadd.f32 %v1388, %v1775
        %1777 = vmatmul.bf16.gmra.mxu0 %v1335
        %v1778 = vpop.f32.mrf.mxu0
        %v1779 = vadd.f32 %v1388, %v1778
        %v1780 = vpop.f32.mrf.mxu0
        %v1781 = vadd.f32 %v1388, %v1780
        %1782 = vmatmul.bf16.gmra.mxu0 %v1337
        %v1783 = vpop.f32.mrf.mxu0
        %v1784 = vadd.f32 %v1388, %v1783
        %v1785 = vpop.f32.mrf.mxu0
        %v1786 = vadd.f32 %v1388, %v1785
        %1787 = vmatmul.bf16.gmra.mxu0 %v1339
        %v1788 = vpop.f32.mrf.mxu0
        %v1789 = vadd.f32 %v1388, %v1788
        %v1790 = vpop.f32.mrf.mxu0
        %v1791 = vadd.f32 %v1388, %v1790
        %1792 = vmatmul.bf16.gmra.mxu0 %v1341
        %v1793 = vpop.f32.mrf.mxu0
        %v1794 = vadd.f32 %v1388, %v1793
        %v1795 = vpop.f32.mrf.mxu0
        %v1796 = vadd.f32 %v1388, %v1795
        %1797 = vmatmul.bf16.gmra.mxu0 %v1343
        %v1798 = vpop.f32.mrf.mxu0
        %v1799 = vadd.f32 %v1388, %v1798
        %v1800 = vpop.f32.mrf.mxu0
        %v1801 = vadd.f32 %v1388, %v1800
        %1802 = vmatmul.bf16.gmra.mxu0 %v1345
        %v1803 = vpop.f32.mrf.mxu0
        %v1804 = vadd.f32 %v1388, %v1803
        %v1805 = vpop.f32.mrf.mxu0
        %v1806 = vadd.f32 %v1388, %v1805
        %1807 = vmatmul.bf16.gmra.mxu0 %v1347
        %v1808 = vpop.f32.mrf.mxu0
        %v1809 = vadd.f32 %v1388, %v1808
        %v1810 = vpop.f32.mrf.mxu0
        %v1811 = vadd.f32 %v1388, %v1810
        %1812 = vmatmul.bf16.gmra.mxu0 %v1349
        %v1813 = vpop.f32.mrf.mxu0
        %v1814 = vadd.f32 %v1388, %v1813
        %v1815 = vpop.f32.mrf.mxu0
        %v1816 = vadd.f32 %v1388, %v1815
        %1817 = vdwg.mxu0
        %1818 = vmatpush.bf16.msra.mxu0 %v1518
        %1819 = vmatpush.bf16.msra.mxu0 %v1516
        %1820 = vmatpush.bf16.msra.mxu0 %v1514
        %1821 = vmatpush.bf16.msra.mxu0 %v1512
        %1822 = vmatpush.bf16.msra.mxu0 %v1510
        %1823 = vmatpush.bf16.msra.mxu0 %v1508
        %1824 = vmatpush.bf16.msra.mxu0 %v1506
        %1825 = vmatpush.bf16.msra.mxu0 %v1504
        %1826 = vmatmul.bf16.gmra.mxu0 %v1320
        %v1827 = vpop.f32.mrf.mxu0
        %v1828 = vadd.f32 %v1739, %v1827
        %v1829 = vpop.f32.mrf.mxu0
        %v1830 = vadd.f32 %v1741, %v1829
        %1831 = vmatmul.bf16.gmra.mxu0 %v1322
        %v1832 = vpop.f32.mrf.mxu0
        %v1833 = vadd.f32 %v1744, %v1832
        %v1834 = vpop.f32.mrf.mxu0
        %v1835 = vadd.f32 %v1746, %v1834
        %1836 = vmatmul.bf16.gmra.mxu0 %v1324
        %v1837 = vpop.f32.mrf.mxu0
        %v1838 = vadd.f32 %v1749, %v1837
        %v1839 = vpop.f32.mrf.mxu0
        %v1840 = vadd.f32 %v1751, %v1839
        %1841 = vmatmul.bf16.gmra.mxu0 %v1326
        %v1842 = vpop.f32.mrf.mxu0
        %v1843 = vadd.f32 %v1754, %v1842
        %v1844 = vpop.f32.mrf.mxu0
        %v1845 = vadd.f32 %v1756, %v1844
        %1846 = vmatmul.bf16.gmra.mxu0 %v1328
        %v1847 = vpop.f32.mrf.mxu0
        %v1848 = vadd.f32 %v1759, %v1847
        %v1849 = vpop.f32.mrf.mxu0
        %v1850 = vadd.f32 %v1761, %v1849
        %1851 = vmatmul.bf16.gmra.mxu0 %v1330
        %v1852 = vpop.f32.mrf.mxu0
        %v1853 = vadd.f32 %v1764, %v1852
        %v1854 = vpop.f32.mrf.mxu0
        %v1855 = vadd.f32 %v1766, %v1854
        %1856 = vmatmul.bf16.gmra.mxu0 %v1332
        %v1857 = vpop.f32.mrf.mxu0
        %v1858 = vadd.f32 %v1769, %v1857
        %v1859 = vpop.f32.mrf.mxu0
        %v1860 = vadd.f32 %v1771, %v1859
        %1861 = vmatmul.bf16.gmra.mxu0 %v1334
        %v1862 = vpop.f32.mrf.mxu0
        %v1863 = vadd.f32 %v1774, %v1862
        %v1864 = vpop.f32.mrf.mxu0
        %v1865 = vadd.f32 %v1776, %v1864
        %1866 = vmatmul.bf16.gmra.mxu0 %v1336
        %v1867 = vpop.f32.mrf.mxu0
        %v1868 = vadd.f32 %v1779, %v1867
        %v1869 = vpop.f32.mrf.mxu0
        %v1870 = vadd.f32 %v1781, %v1869
        %1871 = vmatmul.bf16.gmra.mxu0 %v1338
        %v1872 = vpop.f32.mrf.mxu0
        %v1873 = vadd.f32 %v1784, %v1872
        %v1874 = vpop.f32.mrf.mxu0
        %v1875 = vadd.f32 %v1786, %v1874
        %1876 = vmatmul.bf16.gmra.mxu0 %v1340
        %v1877 = vpop.f32.mrf.mxu0
        %v1878 = vadd.f32 %v1789, %v1877
        %v1879 = vpop.f32.mrf.mxu0
        %v1880 = vadd.f32 %v1791, %v1879
        %1881 = vmatmul.bf16.gmra.mxu0 %v1342
        %v1882 = vpop.f32.mrf.mxu0
        %v1883 = vadd.f32 %v1794, %v1882
        %v1884 = vpop.f32.mrf.mxu0
        %v1885 = vadd.f32 %v1796, %v1884
        %1886 = vmatmul.bf16.gmra.mxu0 %v1344
        %v1887 = vpop.f32.mrf.mxu0
        %v1888 = vadd.f32 %v1799, %v1887
        %v1889 = vpop.f32.mrf.mxu0
        %v1890 = vadd.f32 %v1801, %v1889
        %1891 = vmatmul.bf16.gmra.mxu0 %v1346
        %v1892 = vpop.f32.mrf.mxu0
        %v1893 = vadd.f32 %v1804, %v1892
        %v1894 = vpop.f32.mrf.mxu0
        %v1895 = vadd.f32 %v1806, %v1894
        %1896 = vmatmul.bf16.gmra.mxu0 %v1348
        %v1897 = vpop.f32.mrf.mxu0
        %v1898 = vadd.f32 %v1809, %v1897
        %v1899 = vpop.f32.mrf.mxu0
        %v1900 = vadd.f32 %v1811, %v1899
        %1901 = vmatmul.bf16.gmra.mxu0 %v1350
        %v1902 = vpop.f32.mrf.mxu0
        %v1903 = vadd.f32 %v1814, %v1902
        %v1904 = vpop.f32.mrf.mxu0
        %v1905 = vadd.f32 %v1816, %v1904
        %1906 = vdwg.mxu0
        %v1907 = vmax.f32 %v1650, 0.0
        %v1908 = vmax.f32 %v1828, 0.0
        %v1909 = vmax.f32 %v1652, 0.0
        %v1910 = vmax.f32 %v1830, 0.0
        %v1911 = vmax.f32 %v1655, 0.0
        %v1912 = vmax.f32 %v1833, 0.0
        %v1913 = vmax.f32 %v1657, 0.0
        %v1914 = vmax.f32 %v1835, 0.0
        %v1915 = vmax.f32 %v1660, 0.0
        %v1916 = vmax.f32 %v1838, 0.0
        %v1917 = vmax.f32 %v1662, 0.0
        %v1918 = vmax.f32 %v1840, 0.0
        %v1919 = vmax.f32 %v1665, 0.0
        %v1920 = vmax.f32 %v1843, 0.0
        %v1921 = vmax.f32 %v1667, 0.0
        %v1922 = vmax.f32 %v1845, 0.0
        %v1923 = vmax.f32 %v1670, 0.0
        %v1924 = vmax.f32 %v1848, 0.0
        %v1925 = vmax.f32 %v1672, 0.0
        %v1926 = vmax.f32 %v1850, 0.0
        %v1927 = vmax.f32 %v1675, 0.0
        %v1928 = vmax.f32 %v1853, 0.0
        %v1929 = vmax.f32 %v1677, 0.0
        %v1930 = vmax.f32 %v1855, 0.0
        %v1931 = vmax.f32 %v1680, 0.0
        %v1932 = vmax.f32 %v1858, 0.0
        %v1933 = vmax.f32 %v1682, 0.0
        %v1934 = vmax.f32 %v1860, 0.0
        %v1935 = vmax.f32 %v1685, 0.0
        %v1936 = vmax.f32 %v1863, 0.0
        %v1937 = vmax.f32 %v1687, 0.0
        %v1938 = vmax.f32 %v1865, 0.0
        %v1939 = vmax.f32 %v1690, 0.0
        %v1940 = vmax.f32 %v1868, 0.0
        %v1941 = vmax.f32 %v1692, 0.0
        %v1942 = vmax.f32 %v1870, 0.0
        %v1943 = vmax.f32 %v1695, 0.0
        %v1944 = vmax.f32 %v1873, 0.0
        %v1945 = vmax.f32 %v1697, 0.0
        %v1946 = vmax.f32 %v1875, 0.0
        %v1947 = vmax.f32 %v1700, 0.0
        %v1948 = vmax.f32 %v1878, 0.0
        %v1949 = vmax.f32 %v1702, 0.0
        %v1950 = vmax.f32 %v1880, 0.0
        %v1951 = vmax.f32 %v1705, 0.0
        %v1952 = vmax.f32 %v1883, 0.0
        %v1953 = vmax.f32 %v1707, 0.0
        %v1954 = vmax.f32 %v1885, 0.0
        %v1955 = vmax.f32 %v1710, 0.0
        %v1956 = vmax.f32 %v1888, 0.0
        %v1957 = vmax.f32 %v1712, 0.0
        %v1958 = vmax.f32 %v1890, 0.0
        %v1959 = vmax.f32 %v1715, 0.0
        %v1960 = vmax.f32 %v1893, 0.0
        %v1961 = vmax.f32 %v1717, 0.0
        %v1962 = vmax.f32 %v1895, 0.0
        %v1963 = vmax.f32 %v1720, 0.0
        %v1964 = vmax.f32 %v1898, 0.0
        %v1965 = vmax.f32 %v1722, 0.0
        %v1966 = vmax.f32 %v1900, 0.0
        %v1967 = vmax.f32 %v1725, 0.0
        %v1968 = vmax.f32 %v1903, 0.0
        %v1969 = vmax.f32 %v1727, 0.0
        %v1970 = vmax.f32 %v1905, 0.0
        %v1971 = vpack.c.bf16 %v1909, %v1907
        %v1972 = vpack.c.bf16 %v1910, %v1908
        %v1973 = vpack.c.bf16 %v1913, %v1911
        %v1974 = vpack.c.bf16 %v1914, %v1912
        %v1975 = vpack.c.bf16 %v1917, %v1915
        %v1976 = vpack.c.bf16 %v1918, %v1916
        %v1977 = vpack.c.bf16 %v1921, %v1919
        %v1978 = vpack.c.bf16 %v1922, %v1920
        %v1979 = vpack.c.bf16 %v1925, %v1923
        %v1980 = vpack.c.bf16 %v1926, %v1924
        %v1981 = vpack.c.bf16 %v1929, %v1927
        %v1982 = vpack.c.bf16 %v1930, %v1928
        %v1983 = vpack.c.bf16 %v1933, %v1931
        %v1984 = vpack.c.bf16 %v1934, %v1932
        %v1985 = vpack.c.bf16 %v1937, %v1935
        %v1986 = vpack.c.bf16 %v1938, %v1936
        %v1987 = vpack.c.bf16 %v1941, %v1939
        %v1988 = vpack.c.bf16 %v1942, %v1940
        %v1989 = vpack.c.bf16 %v1945, %v1943
        %v1990 = vpack.c.bf16 %v1946, %v1944
        %v1991 = vpack.c.bf16 %v1949, %v1947
        %v1992 = vpack.c.bf16 %v1950, %v1948
        %v1993 = vpack.c.bf16 %v1953, %v1951
        %v1994 = vpack.c.bf16 %v1954, %v1952
        %v1995 = vpack.c.bf16 %v1957, %v1955
        %v1996 = vpack.c.bf16 %v1958, %v1956
        %v1997 = vpack.c.bf16 %v1961, %v1959
        %v1998 = vpack.c.bf16 %v1962, %v1960
        %v1999 = vpack.c.bf16 %v1965, %v1963
        %v2000 = vpack.c.bf16 %v1966, %v1964
        %v2001 = vpack.c.bf16 %v1969, %v1967
        %v2002 = vpack.c.bf16 %v1970, %v1968
        %s2003 = scalar_lea.vmem %s2, 512
        %v2004 = vld [vmem:[%s2003] sm:$0xff]
        %v2005 = vld [vmem:[%s2003 + $0x8] sm:$0xff]
        %v2006 = vld [vmem:[%s2003 + $0x10] sm:$0xff]
        %v2007 = vld [vmem:[%s2003 + $0x18] sm:$0xff]
        %v2008 = vld [vmem:[%s2003 + $0x20] sm:$0xff]
        %v2009 = vld [vmem:[%s2003 + $0x28] sm:$0xff]
        %v2010 = vld [vmem:[%s2003 + $0x30] sm:$0xff]
        %v2011 = vld [vmem:[%s2003 + $0x38] sm:$0xff]
        %v2012 = vld [vmem:[%s2003 + $0x40] sm:$0xff]
        %v2013 = vld [vmem:[%s2003 + $0x48] sm:$0xff]
        %v2014 = vld [vmem:[%s2003 + $0x50] sm:$0xff]
        %v2015 = vld [vmem:[%s2003 + $0x58] sm:$0xff]
        %v2016 = vld [vmem:[%s2003 + $0x60] sm:$0xff]
        %v2017 = vld [vmem:[%s2003 + $0x68] sm:$0xff]
        %v2018 = vld [vmem:[%s2003 + $0x70] sm:$0xff]
        %v2019 = vld [vmem:[%s2003 + $0x78] sm:$0xff]
        %v2020 = vld [vmem:[%s2003 + $0x80] sm:$0xff]
        %v2021 = vld [vmem:[%s2003 + $0x88] sm:$0xff]
        %v2022 = vld [vmem:[%s2003 + $0x90] sm:$0xff]
        %v2023 = vld [vmem:[%s2003 + $0x98] sm:$0xff]
        %v2024 = vld [vmem:[%s2003 + $0xa0] sm:$0xff]
        %v2025 = vld [vmem:[%s2003 + $0xa8] sm:$0xff]
        %v2026 = vld [vmem:[%s2003 + $0xb0] sm:$0xff]
        %v2027 = vld [vmem:[%s2003 + $0xb8] sm:$0xff]
        %v2028 = vld [vmem:[%s2003 + $0xc0] sm:$0xff]
        %v2029 = vld [vmem:[%s2003 + $0xc8] sm:$0xff]
        %v2030 = vld [vmem:[%s2003 + $0xd0] sm:$0xff]
        %v2031 = vld [vmem:[%s2003 + $0xd8] sm:$0xff]
        %v2032 = vld [vmem:[%s2003 + $0xe0] sm:$0xff]
        %v2033 = vld [vmem:[%s2003 + $0xe8] sm:$0xff]
        %v2034 = vld [vmem:[%s2003 + $0xf0] sm:$0xff]
        %v2035 = vld [vmem:[%s2003 + $0xf8] sm:$0xff]
        %s2036 = scalar_lea.vmem %s3, 3
        %v2037 = vld [vmem:[%s2036] ss:$8 sm:$0x3]
        %v2039 = vperm.slane %v2037, 0
        %v2040 = vperm.slane %v2037, 1
        %v2075 = vunpack.c.l.b16 %v2004
        %v2076 = vunpack.c.h.b16 %v2004
        %v2077 = vunpack.c.l.b16 %v2005
        %v2078 = vunpack.c.h.b16 %v2005
        %v2079 = vunpack.c.l.b16 %v2006
        %v2080 = vunpack.c.h.b16 %v2006
        %v2081 = vunpack.c.l.b16 %v2007
        %v2082 = vunpack.c.h.b16 %v2007
        %v2083 = vunpack.c.l.b16 %v2008
        %v2084 = vunpack.c.h.b16 %v2008
        %v2085 = vunpack.c.l.b16 %v2009
        %v2086 = vunpack.c.h.b16 %v2009
        %v2087 = vunpack.c.l.b16 %v2010
        %v2088 = vunpack.c.h.b16 %v2010
        %v2089 = vunpack.c.l.b16 %v2011
        %v2090 = vunpack.c.h.b16 %v2011
        %v2091 = vunpack.c.l.b16 %v2012
        %v2092 = vunpack.c.h.b16 %v2012
        %v2093 = vunpack.c.l.b16 %v2013
        %v2094 = vunpack.c.h.b16 %v2013
        %v2095 = vunpack.c.l.b16 %v2014
        %v2096 = vunpack.c.h.b16 %v2014
        %v2097 = vunpack.c.l.b16 %v2015
        %v2098 = vunpack.c.h.b16 %v2015
        %v2099 = vunpack.c.l.b16 %v2016
        %v2100 = vunpack.c.h.b16 %v2016
        %v2101 = vunpack.c.l.b16 %v2017
        %v2102 = vunpack.c.h.b16 %v2017
        %v2103 = vunpack.c.l.b16 %v2018
        %v2104 = vunpack.c.h.b16 %v2018
        %v2105 = vunpack.c.l.b16 %v2019
        %v2106 = vunpack.c.h.b16 %v2019
        %v2107 = vunpack.c.l.b16 %v2020
        %v2108 = vunpack.c.h.b16 %v2020
        %v2109 = vunpack.c.l.b16 %v2021
        %v2110 = vunpack.c.h.b16 %v2021
        %v2111 = vunpack.c.l.b16 %v2022
        %v2112 = vunpack.c.h.b16 %v2022
        %v2113 = vunpack.c.l.b16 %v2023
        %v2114 = vunpack.c.h.b16 %v2023
        %v2115 = vunpack.c.l.b16 %v2024
        %v2116 = vunpack.c.h.b16 %v2024
        %v2117 = vunpack.c.l.b16 %v2025
        %v2118 = vunpack.c.h.b16 %v2025
        %v2119 = vunpack.c.l.b16 %v2026
        %v2120 = vunpack.c.h.b16 %v2026
        %v2121 = vunpack.c.l.b16 %v2027
        %v2122 = vunpack.c.h.b16 %v2027
        %v2123 = vunpack.c.l.b16 %v2028
        %v2124 = vunpack.c.h.b16 %v2028
        %v2125 = vunpack.c.l.b16 %v2029
        %v2126 = vunpack.c.h.b16 %v2029
        %v2127 = vunpack.c.l.b16 %v2030
        %v2128 = vunpack.c.h.b16 %v2030
        %v2129 = vunpack.c.l.b16 %v2031
        %v2130 = vunpack.c.h.b16 %v2031
        %v2131 = vunpack.c.l.b16 %v2032
        %v2132 = vunpack.c.h.b16 %v2032
        %v2133 = vunpack.c.l.b16 %v2033
        %v2134 = vunpack.c.h.b16 %v2033
        %v2135 = vunpack.c.l.b16 %v2034
        %v2136 = vunpack.c.h.b16 %v2034
        %v2137 = vunpack.c.l.b16 %v2035
        %v2138 = vunpack.c.h.b16 %v2035
        %v2139 = vpack.c.b16 %v2077, %v2075
        %v2140 = vpack.c.b16 %v2078, %v2076
        %v2141 = vpack.c.b16 %v2081, %v2079
        %v2142 = vpack.c.b16 %v2082, %v2080
        %v2143 = vpack.c.b16 %v2085, %v2083
        %v2144 = vpack.c.b16 %v2086, %v2084
        %v2145 = vpack.c.b16 %v2089, %v2087
        %v2146 = vpack.c.b16 %v2090, %v2088
        %v2147 = vpack.c.b16 %v2093, %v2091
        %v2148 = vpack.c.b16 %v2094, %v2092
        %v2149 = vpack.c.b16 %v2097, %v2095
        %v2150 = vpack.c.b16 %v2098, %v2096
        %v2151 = vpack.c.b16 %v2101, %v2099
        %v2152 = vpack.c.b16 %v2102, %v2100
        %v2153 = vpack.c.b16 %v2105, %v2103
        %v2154 = vpack.c.b16 %v2106, %v2104
        %v2155 = vpack.c.b16 %v2109, %v2107
        %v2156 = vpack.c.b16 %v2110, %v2108
        %v2157 = vpack.c.b16 %v2113, %v2111
        %v2158 = vpack.c.b16 %v2114, %v2112
        %v2159 = vpack.c.b16 %v2117, %v2115
        %v2160 = vpack.c.b16 %v2118, %v2116
        %v2161 = vpack.c.b16 %v2121, %v2119
        %v2162 = vpack.c.b16 %v2122, %v2120
        %v2163 = vpack.c.b16 %v2125, %v2123
        %v2164 = vpack.c.b16 %v2126, %v2124
        %v2165 = vpack.c.b16 %v2129, %v2127
        %v2166 = vpack.c.b16 %v2130, %v2128
        %v2167 = vpack.c.b16 %v2133, %v2131
        %v2168 = vpack.c.b16 %v2134, %v2132
        %v2169 = vpack.c.b16 %v2137, %v2135
        %v2170 = vpack.c.b16 %v2138, %v2136
        %2203 = vmatpush.bf16.msra.mxu0 %v2153
        %2204 = vmatpush.bf16.msra.mxu0 %v2151
        %2205 = vmatpush.bf16.msra.mxu0 %v2149
        %2206 = vmatpush.bf16.msra.mxu0 %v2147
        %2207 = vmatpush.bf16.msra.mxu0 %v2145
        %2208 = vmatpush.bf16.msra.mxu0 %v2143
        %2209 = vmatpush.bf16.msra.mxu0 %v2141
        %2210 = vmatpush.bf16.msra.mxu0 %v2139
        %2211 = vmatmul.bf16.gmra.mxu0 %v1971
        %v2212 = vpop.f32.mrf.mxu0
        %v2213 = vadd.f32 %v2039, %v2212
        %v2214 = vpop.f32.mrf.mxu0
        %v2215 = vadd.f32 %v2039, %v2214
        %2216 = vmatmul.bf16.gmra.mxu0 %v1973
        %v2217 = vpop.f32.mrf.mxu0
        %v2218 = vadd.f32 %v2039, %v2217
        %v2219 = vpop.f32.mrf.mxu0
        %v2220 = vadd.f32 %v2039, %v2219
        %2221 = vmatmul.bf16.gmra.mxu0 %v1975
        %v2222 = vpop.f32.mrf.mxu0
        %v2223 = vadd.f32 %v2039, %v2222
        %v2224 = vpop.f32.mrf.mxu0
        %v2225 = vadd.f32 %v2039, %v2224
        %2226 = vmatmul.bf16.gmra.mxu0 %v1977
        %v2227 = vpop.f32.mrf.mxu0
        %v2228 = vadd.f32 %v2039, %v2227
        %v2229 = vpop.f32.mrf.mxu0
        %v2230 = vadd.f32 %v2039, %v2229
        %2231 = vmatmul.bf16.gmra.mxu0 %v1979
        %v2232 = vpop.f32.mrf.mxu0
        %v2233 = vadd.f32 %v2039, %v2232
        %v2234 = vpop.f32.mrf.mxu0
        %v2235 = vadd.f32 %v2039, %v2234
        %2236 = vmatmul.bf16.gmra.mxu0 %v1981
        %v2237 = vpop.f32.mrf.mxu0
        %v2238 = vadd.f32 %v2039, %v2237
        %v2239 = vpop.f32.mrf.mxu0
        %v2240 = vadd.f32 %v2039, %v2239
        %2241 = vmatmul.bf16.gmra.mxu0 %v1983
        %v2242 = vpop.f32.mrf.mxu0
        %v2243 = vadd.f32 %v2039, %v2242
        %v2244 = vpop.f32.mrf.mxu0
        %v2245 = vadd.f32 %v2039, %v2244
        %2246 = vmatmul.bf16.gmra.mxu0 %v1985
        %v2247 = vpop.f32.mrf.mxu0
        %v2248 = vadd.f32 %v2039, %v2247
        %v2249 = vpop.f32.mrf.mxu0
        %v2250 = vadd.f32 %v2039, %v2249
        %2251 = vmatmul.bf16.gmra.mxu0 %v1987
        %v2252 = vpop.f32.mrf.mxu0
        %v2253 = vadd.f32 %v2039, %v2252
        %v2254 = vpop.f32.mrf.mxu0
        %v2255 = vadd.f32 %v2039, %v2254
        %2256 = vmatmul.bf16.gmra.mxu0 %v1989
        %v2257 = vpop.f32.mrf.mxu0
        %v2258 = vadd.f32 %v2039, %v2257
        %v2259 = vpop.f32.mrf.mxu0
        %v2260 = vadd.f32 %v2039, %v2259
        %2261 = vmatmul.bf16.gmra.mxu0 %v1991
        %v2262 = vpop.f32.mrf.mxu0
        %v2263 = vadd.f32 %v2039, %v2262
        %v2264 = vpop.f32.mrf.mxu0
        %v2265 = vadd.f32 %v2039, %v2264
        %2266 = vmatmul.bf16.gmra.mxu0 %v1993
        %v2267 = vpop.f32.mrf.mxu0
        %v2268 = vadd.f32 %v2039, %v2267
        %v2269 = vpop.f32.mrf.mxu0
        %v2270 = vadd.f32 %v2039, %v2269
        %2271 = vmatmul.bf16.gmra.mxu0 %v1995
        %v2272 = vpop.f32.mrf.mxu0
        %v2273 = vadd.f32 %v2039, %v2272
        %v2274 = vpop.f32.mrf.mxu0
        %v2275 = vadd.f32 %v2039, %v2274
        %2276 = vmatmul.bf16.gmra.mxu0 %v1997
        %v2277 = vpop.f32.mrf.mxu0
        %v2278 = vadd.f32 %v2039, %v2277
        %v2279 = vpop.f32.mrf.mxu0
        %v2280 = vadd.f32 %v2039, %v2279
        %2281 = vmatmul.bf16.gmra.mxu0 %v1999
        %v2282 = vpop.f32.mrf.mxu0
        %v2283 = vadd.f32 %v2039, %v2282
        %v2284 = vpop.f32.mrf.mxu0
        %v2285 = vadd.f32 %v2039, %v2284
        %2286 = vmatmul.bf16.gmra.mxu0 %v2001
        %v2287 = vpop.f32.mrf.mxu0
        %v2288 = vadd.f32 %v2039, %v2287
        %v2289 = vpop.f32.mrf.mxu0
        %v2290 = vadd.f32 %v2039, %v2289
        %2291 = vdwg.mxu0
        %2292 = vmatpush.bf16.msra.mxu0 %v2169
        %2293 = vmatpush.bf16.msra.mxu0 %v2167
        %2294 = vmatpush.bf16.msra.mxu0 %v2165
        %2295 = vmatpush.bf16.msra.mxu0 %v2163
        %2296 = vmatpush.bf16.msra.mxu0 %v2161
        %2297 = vmatpush.bf16.msra.mxu0 %v2159
        %2298 = vmatpush.bf16.msra.mxu0 %v2157
        %2299 = vmatpush.bf16.msra.mxu0 %v2155
        %2300 = vmatmul.bf16.gmra.mxu0 %v1972
        %v2301 = vpop.f32.mrf.mxu0
        %v2302 = vadd.f32 %v2213, %v2301
        %v2303 = vpop.f32.mrf.mxu0
        %v2304 = vadd.f32 %v2215, %v2303
        %2305 = vmatmul.bf16.gmra.mxu0 %v1974
        %v2306 = vpop.f32.mrf.mxu0
        %v2307 = vadd.f32 %v2218, %v2306
        %v2308 = vpop.f32.mrf.mxu0
        %v2309 = vadd.f32 %v2220, %v2308
        %2310 = vmatmul.bf16.gmra.mxu0 %v1976
        %v2311 = vpop.f32.mrf.mxu0
        %v2312 = vadd.f32 %v2223, %v2311
        %v2313 = vpop.f32.mrf.mxu0
        %v2314 = vadd.f32 %v2225, %v2313
        %2315 = vmatmul.bf16.gmra.mxu0 %v1978
        %v2316 = vpop.f32.mrf.mxu0
        %v2317 = vadd.f32 %v2228, %v2316
        %v2318 = vpop.f32.mrf.mxu0
        %v2319 = vadd.f32 %v2230, %v2318
        %2320 = vmatmul.bf16.gmra.mxu0 %v1980
        %v2321 = vpop.f32.mrf.mxu0
        %v2322 = vadd.f32 %v2233, %v2321
        %v2323 = vpop.f32.mrf.mxu0
        %v2324 = vadd.f32 %v2235, %v2323
        %2325 = vmatmul.bf16.gmra.mxu0 %v1982
        %v2326 = vpop.f32.mrf.mxu0
        %v2327 = vadd.f32 %v2238, %v2326
        %v2328 = vpop.f32.mrf.mxu0
        %v2329 = vadd.f32 %v2240, %v2328
        %2330 = vmatmul.bf16.gmra.mxu0 %v1984
        %v2331 = vpop.f32.mrf.mxu0
        %v2332 = vadd.f32 %v2243, %v2331
        %v2333 = vpop.f32.mrf.mxu0
        %v2334 = vadd.f32 %v2245, %v2333
        %2335 = vmatmul.bf16.gmra.mxu0 %v1986
        %v2336 = vpop.f32.mrf.mxu0
        %v2337 = vadd.f32 %v2248, %v2336
        %v2338 = vpop.f32.mrf.mxu0
        %v2339 = vadd.f32 %v2250, %v2338
        %2340 = vmatmul.bf16.gmra.mxu0 %v1988
        %v2341 = vpop.f32.mrf.mxu0
        %v2342 = vadd.f32 %v2253, %v2341
        %v2343 = vpop.f32.mrf.mxu0
        %v2344 = vadd.f32 %v2255, %v2343
        %2345 = vmatmul.bf16.gmra.mxu0 %v1990
        %v2346 = vpop.f32.mrf.mxu0
        %v2347 = vadd.f32 %v2258, %v2346
        %v2348 = vpop.f32.mrf.mxu0
        %v2349 = vadd.f32 %v2260, %v2348
        %2350 = vmatmul.bf16.gmra.mxu0 %v1992
        %v2351 = vpop.f32.mrf.mxu0
        %v2352 = vadd.f32 %v2263, %v2351
        %v2353 = vpop.f32.mrf.mxu0
        %v2354 = vadd.f32 %v2265, %v2353
        %2355 = vmatmul.bf16.gmra.mxu0 %v1994
        %v2356 = vpop.f32.mrf.mxu0
        %v2357 = vadd.f32 %v2268, %v2356
        %v2358 = vpop.f32.mrf.mxu0
        %v2359 = vadd.f32 %v2270, %v2358
        %2360 = vmatmul.bf16.gmra.mxu0 %v1996
        %v2361 = vpop.f32.mrf.mxu0
        %v2362 = vadd.f32 %v2273, %v2361
        %v2363 = vpop.f32.mrf.mxu0
        %v2364 = vadd.f32 %v2275, %v2363
        %2365 = vmatmul.bf16.gmra.mxu0 %v1998
        %v2366 = vpop.f32.mrf.mxu0
        %v2367 = vadd.f32 %v2278, %v2366
        %v2368 = vpop.f32.mrf.mxu0
        %v2369 = vadd.f32 %v2280, %v2368
        %2370 = vmatmul.bf16.gmra.mxu0 %v2000
        %v2371 = vpop.f32.mrf.mxu0
        %v2372 = vadd.f32 %v2283, %v2371
        %v2373 = vpop.f32.mrf.mxu0
        %v2374 = vadd.f32 %v2285, %v2373
        %2375 = vmatmul.bf16.gmra.mxu0 %v2002
        %v2376 = vpop.f32.mrf.mxu0
        %v2377 = vadd.f32 %v2288, %v2376
        %v2378 = vpop.f32.mrf.mxu0
        %v2379 = vadd.f32 %v2290, %v2378
        %2380 = vdwg.mxu0
        %2381 = vmatpush.bf16.msra.mxu0 %v2154
        %2382 = vmatpush.bf16.msra.mxu0 %v2152
        %2383 = vmatpush.bf16.msra.mxu0 %v2150
        %2384 = vmatpush.bf16.msra.mxu0 %v2148
        %2385 = vmatpush.bf16.msra.mxu0 %v2146
        %2386 = vmatpush.bf16.msra.mxu0 %v2144
        %2387 = vmatpush.bf16.msra.mxu0 %v2142
        %2388 = vmatpush.bf16.msra.mxu0 %v2140
        %2389 = vmatmul.bf16.gmra.mxu0 %v1971
        %v2390 = vpop.f32.mrf.mxu0
        %v2391 = vadd.f32 %v2040, %v2390
        %v2392 = vpop.f32.mrf.mxu0
        %v2393 = vadd.f32 %v2040, %v2392
        %2394 = vmatmul.bf16.gmra.mxu0 %v1973
        %v2395 = vpop.f32.mrf.mxu0
        %v2396 = vadd.f32 %v2040, %v2395
        %v2397 = vpop.f32.mrf.mxu0
        %v2398 = vadd.f32 %v2040, %v2397
        %2399 = vmatmul.bf16.gmra.mxu0 %v1975
        %v2400 = vpop.f32.mrf.mxu0
        %v2401 = vadd.f32 %v2040, %v2400
        %v2402 = vpop.f32.mrf.mxu0
        %v2403 = vadd.f32 %v2040, %v2402
        %2404 = vmatmul.bf16.gmra.mxu0 %v1977
        %v2405 = vpop.f32.mrf.mxu0
        %v2406 = vadd.f32 %v2040, %v2405
        %v2407 = vpop.f32.mrf.mxu0
        %v2408 = vadd.f32 %v2040, %v2407
        %2409 = vmatmul.bf16.gmra.mxu0 %v1979
        %v2410 = vpop.f32.mrf.mxu0
        %v2411 = vadd.f32 %v2040, %v2410
        %v2412 = vpop.f32.mrf.mxu0
        %v2413 = vadd.f32 %v2040, %v2412
        %2414 = vmatmul.bf16.gmra.mxu0 %v1981
        %v2415 = vpop.f32.mrf.mxu0
        %v2416 = vadd.f32 %v2040, %v2415
        %v2417 = vpop.f32.mrf.mxu0
        %v2418 = vadd.f32 %v2040, %v2417
        %2419 = vmatmul.bf16.gmra.mxu0 %v1983
        %v2420 = vpop.f32.mrf.mxu0
        %v2421 = vadd.f32 %v2040, %v2420
        %v2422 = vpop.f32.mrf.mxu0
        %v2423 = vadd.f32 %v2040, %v2422
        %2424 = vmatmul.bf16.gmra.mxu0 %v1985
        %v2425 = vpop.f32.mrf.mxu0
        %v2426 = vadd.f32 %v2040, %v2425
        %v2427 = vpop.f32.mrf.mxu0
        %v2428 = vadd.f32 %v2040, %v2427
        %2429 = vmatmul.bf16.gmra.mxu0 %v1987
        %v2430 = vpop.f32.mrf.mxu0
        %v2431 = vadd.f32 %v2040, %v2430
        %v2432 = vpop.f32.mrf.mxu0
        %v2433 = vadd.f32 %v2040, %v2432
        %2434 = vmatmul.bf16.gmra.mxu0 %v1989
        %v2435 = vpop.f32.mrf.mxu0
        %v2436 = vadd.f32 %v2040, %v2435
        %v2437 = vpop.f32.mrf.mxu0
        %v2438 = vadd.f32 %v2040, %v2437
        %2439 = vmatmul.bf16.gmra.mxu0 %v1991
        %v2440 = vpop.f32.mrf.mxu0
        %v2441 = vadd.f32 %v2040, %v2440
        %v2442 = vpop.f32.mrf.mxu0
        %v2443 = vadd.f32 %v2040, %v2442
        %2444 = vmatmul.bf16.gmra.mxu0 %v1993
        %v2445 = vpop.f32.mrf.mxu0
        %v2446 = vadd.f32 %v2040, %v2445
        %v2447 = vpop.f32.mrf.mxu0
        %v2448 = vadd.f32 %v2040, %v2447
        %2449 = vmatmul.bf16.gmra.mxu0 %v1995
        %v2450 = vpop.f32.mrf.mxu0
        %v2451 = vadd.f32 %v2040, %v2450
        %v2452 = vpop.f32.mrf.mxu0
        %v2453 = vadd.f32 %v2040, %v2452
        %2454 = vmatmul.bf16.gmra.mxu0 %v1997
        %v2455 = vpop.f32.mrf.mxu0
        %v2456 = vadd.f32 %v2040, %v2455
        %v2457 = vpop.f32.mrf.mxu0
        %v2458 = vadd.f32 %v2040, %v2457
        %2459 = vmatmul.bf16.gmra.mxu0 %v1999
        %v2460 = vpop.f32.mrf.mxu0
        %v2461 = vadd.f32 %v2040, %v2460
        %v2462 = vpop.f32.mrf.mxu0
        %v2463 = vadd.f32 %v2040, %v2462
        %2464 = vmatmul.bf16.gmra.mxu0 %v2001
        %v2465 = vpop.f32.mrf.mxu0
        %v2466 = vadd.f32 %v2040, %v2465
        %v2467 = vpop.f32.mrf.mxu0
        %v2468 = vadd.f32 %v2040, %v2467
        %2469 = vdwg.mxu0
        %2470 = vmatpush.bf16.msra.mxu0 %v2170
        %2471 = vmatpush.bf16.msra.mxu0 %v2168
        %2472 = vmatpush.bf16.msra.mxu0 %v2166
        %2473 = vmatpush.bf16.msra.mxu0 %v2164
        %2474 = vmatpush.bf16.msra.mxu0 %v2162
        %2475 = vmatpush.bf16.msra.mxu0 %v2160
        %2476 = vmatpush.bf16.msra.mxu0 %v2158
        %2477 = vmatpush.bf16.msra.mxu0 %v2156
        %2478 = vmatmul.bf16.gmra.mxu0 %v1972
        %v2479 = vpop.f32.mrf.mxu0
        %v2480 = vadd.f32 %v2391, %v2479
        %v2481 = vpop.f32.mrf.mxu0
        %v2482 = vadd.f32 %v2393, %v2481
        %2483 = vmatmul.bf16.gmra.mxu0 %v1974
        %v2484 = vpop.f32.mrf.mxu0
        %v2485 = vadd.f32 %v2396, %v2484
        %v2486 = vpop.f32.mrf.mxu0
        %v2487 = vadd.f32 %v2398, %v2486
        %2488 = vmatmul.bf16.gmra.mxu0 %v1976
        %v2489 = vpop.f32.mrf.mxu0
        %v2490 = vadd.f32 %v2401, %v2489
        %v2491 = vpop.f32.mrf.mxu0
        %v2492 = vadd.f32 %v2403, %v2491
        %2493 = vmatmul.bf16.gmra.mxu0 %v1978
        %v2494 = vpop.f32.mrf.mxu0
        %v2495 = vadd.f32 %v2406, %v2494
        %v2496 = vpop.f32.mrf.mxu0
        %v2497 = vadd.f32 %v2408, %v2496
        %2498 = vmatmul.bf16.gmra.mxu0 %v1980
        %v2499 = vpop.f32.mrf.mxu0
        %v2500 = vadd.f32 %v2411, %v2499
        %v2501 = vpop.f32.mrf.mxu0
        %v2502 = vadd.f32 %v2413, %v2501
        %2503 = vmatmul.bf16.gmra.mxu0 %v1982
        %v2504 = vpop.f32.mrf.mxu0
        %v2505 = vadd.f32 %v2416, %v2504
        %v2506 = vpop.f32.mrf.mxu0
        %v2507 = vadd.f32 %v2418, %v2506
        %2508 = vmatmul.bf16.gmra.mxu0 %v1984
        %v2509 = vpop.f32.mrf.mxu0
        %v2510 = vadd.f32 %v2421, %v2509
        %v2511 = vpop.f32.mrf.mxu0
        %v2512 = vadd.f32 %v2423, %v2511
        %2513 = vmatmul.bf16.gmra.mxu0 %v1986
        %v2514 = vpop.f32.mrf.mxu0
        %v2515 = vadd.f32 %v2426, %v2514
        %v2516 = vpop.f32.mrf.mxu0
        %v2517 = vadd.f32 %v2428, %v2516
        %2518 = vmatmul.bf16.gmra.mxu0 %v1988
        %v2519 = vpop.f32.mrf.mxu0
        %v2520 = vadd.f32 %v2431, %v2519
        %v2521 = vpop.f32.mrf.mxu0
        %v2522 = vadd.f32 %v2433, %v2521
        %2523 = vmatmul.bf16.gmra.mxu0 %v1990
        %v2524 = vpop.f32.mrf.mxu0
        %v2525 = vadd.f32 %v2436, %v2524
        %v2526 = vpop.f32.mrf.mxu0
        %v2527 = vadd.f32 %v2438, %v2526
        %2528 = vmatmul.bf16.gmra.mxu0 %v1992
        %v2529 = vpop.f32.mrf.mxu0
        %v2530 = vadd.f32 %v2441, %v2529
        %v2531 = vpop.f32.mrf.mxu0
        %v2532 = vadd.f32 %v2443, %v2531
        %2533 = vmatmul.bf16.gmra.mxu0 %v1994
        %v2534 = vpop.f32.mrf.mxu0
        %v2535 = vadd.f32 %v2446, %v2534
        %v2536 = vpop.f32.mrf.mxu0
        %v2537 = vadd.f32 %v2448, %v2536
        %2538 = vmatmul.bf16.gmra.mxu0 %v1996
        %v2539 = vpop.f32.mrf.mxu0
        %v2540 = vadd.f32 %v2451, %v2539
        %v2541 = vpop.f32.mrf.mxu0
        %v2542 = vadd.f32 %v2453, %v2541
        %2543 = vmatmul.bf16.gmra.mxu0 %v1998
        %v2544 = vpop.f32.mrf.mxu0
        %v2545 = vadd.f32 %v2456, %v2544
        %v2546 = vpop.f32.mrf.mxu0
        %v2547 = vadd.f32 %v2458, %v2546
        %2548 = vmatmul.bf16.gmra.mxu0 %v2000
        %v2549 = vpop.f32.mrf.mxu0
        %v2550 = vadd.f32 %v2461, %v2549
        %v2551 = vpop.f32.mrf.mxu0
        %v2552 = vadd.f32 %v2463, %v2551
        %2553 = vmatmul.bf16.gmra.mxu0 %v2002
        %v2554 = vpop.f32.mrf.mxu0
        %v2555 = vadd.f32 %v2466, %v2554
        %v2556 = vpop.f32.mrf.mxu0
        %v2557 = vadd.f32 %v2468, %v2556
        %2558 = vdwg.mxu0
        %v2559 = vmax.f32 %v2302, 0.0
        %v2560 = vmax.f32 %v2480, 0.0
        %v2561 = vmax.f32 %v2304, 0.0
        %v2562 = vmax.f32 %v2482, 0.0
        %v2563 = vmax.f32 %v2307, 0.0
        %v2564 = vmax.f32 %v2485, 0.0
        %v2565 = vmax.f32 %v2309, 0.0
        %v2566 = vmax.f32 %v2487, 0.0
        %v2567 = vmax.f32 %v2312, 0.0
        %v2568 = vmax.f32 %v2490, 0.0
        %v2569 = vmax.f32 %v2314, 0.0
        %v2570 = vmax.f32 %v2492, 0.0
        %v2571 = vmax.f32 %v2317, 0.0
        %v2572 = vmax.f32 %v2495, 0.0
        %v2573 = vmax.f32 %v2319, 0.0
        %v2574 = vmax.f32 %v2497, 0.0
        %v2575 = vmax.f32 %v2322, 0.0
        %v2576 = vmax.f32 %v2500, 0.0
        %v2577 = vmax.f32 %v2324, 0.0
        %v2578 = vmax.f32 %v2502, 0.0
        %v2579 = vmax.f32 %v2327, 0.0
        %v2580 = vmax.f32 %v2505, 0.0
        %v2581 = vmax.f32 %v2329, 0.0
        %v2582 = vmax.f32 %v2507, 0.0
        %v2583 = vmax.f32 %v2332, 0.0
        %v2584 = vmax.f32 %v2510, 0.0
        %v2585 = vmax.f32 %v2334, 0.0
        %v2586 = vmax.f32 %v2512, 0.0
        %v2587 = vmax.f32 %v2337, 0.0
        %v2588 = vmax.f32 %v2515, 0.0
        %v2589 = vmax.f32 %v2339, 0.0
        %v2590 = vmax.f32 %v2517, 0.0
        %v2591 = vmax.f32 %v2342, 0.0
        %v2592 = vmax.f32 %v2520, 0.0
        %v2593 = vmax.f32 %v2344, 0.0
        %v2594 = vmax.f32 %v2522, 0.0
        %v2595 = vmax.f32 %v2347, 0.0
        %v2596 = vmax.f32 %v2525, 0.0
        %v2597 = vmax.f32 %v2349, 0.0
        %v2598 = vmax.f32 %v2527, 0.0
        %v2599 = vmax.f32 %v2352, 0.0
        %v2600 = vmax.f32 %v2530, 0.0
        %v2601 = vmax.f32 %v2354, 0.0
        %v2602 = vmax.f32 %v2532, 0.0
        %v2603 = vmax.f32 %v2357, 0.0
        %v2604 = vmax.f32 %v2535, 0.0
        %v2605 = vmax.f32 %v2359, 0.0
        %v2606 = vmax.f32 %v2537, 0.0
        %v2607 = vmax.f32 %v2362, 0.0
        %v2608 = vmax.f32 %v2540, 0.0
        %v2609 = vmax.f32 %v2364, 0.0
        %v2610 = vmax.f32 %v2542, 0.0
        %v2611 = vmax.f32 %v2367, 0.0
        %v2612 = vmax.f32 %v2545, 0.0
        %v2613 = vmax.f32 %v2369, 0.0
        %v2614 = vmax.f32 %v2547, 0.0
        %v2615 = vmax.f32 %v2372, 0.0
        %v2616 = vmax.f32 %v2550, 0.0
        %v2617 = vmax.f32 %v2374, 0.0
        %v2618 = vmax.f32 %v2552, 0.0
        %v2619 = vmax.f32 %v2377, 0.0
        %v2620 = vmax.f32 %v2555, 0.0
        %v2621 = vmax.f32 %v2379, 0.0
        %v2622 = vmax.f32 %v2557, 0.0
        %v2623 = vpack.c.bf16 %v2561, %v2559
        %v2624 = vpack.c.bf16 %v2562, %v2560
        %v2625 = vpack.c.bf16 %v2565, %v2563
        %v2626 = vpack.c.bf16 %v2566, %v2564
        %v2627 = vpack.c.bf16 %v2569, %v2567
        %v2628 = vpack.c.bf16 %v2570, %v2568
        %v2629 = vpack.c.bf16 %v2573, %v2571
        %v2630 = vpack.c.bf16 %v2574, %v2572
        %v2631 = vpack.c.bf16 %v2577, %v2575
        %v2632 = vpack.c.bf16 %v2578, %v2576
        %v2633 = vpack.c.bf16 %v2581, %v2579
        %v2634 = vpack.c.bf16 %v2582, %v2580
        %v2635 = vpack.c.bf16 %v2585, %v2583
        %v2636 = vpack.c.bf16 %v2586, %v2584
        %v2637 = vpack.c.bf16 %v2589, %v2587
        %v2638 = vpack.c.bf16 %v2590, %v2588
        %v2639 = vpack.c.bf16 %v2593, %v2591
        %v2640 = vpack.c.bf16 %v2594, %v2592
        %v2641 = vpack.c.bf16 %v2597, %v2595
        %v2642 = vpack.c.bf16 %v2598, %v2596
        %v2643 = vpack.c.bf16 %v2601, %v2599
        %v2644 = vpack.c.bf16 %v2602, %v2600
        %v2645 = vpack.c.bf16 %v2605, %v2603
        %v2646 = vpack.c.bf16 %v2606, %v2604
        %v2647 = vpack.c.bf16 %v2609, %v2607
        %v2648 = vpack.c.bf16 %v2610, %v2608
        %v2649 = vpack.c.bf16 %v2613, %v2611
        %v2650 = vpack.c.bf16 %v2614, %v2612
        %v2651 = vpack.c.bf16 %v2617, %v2615
        %v2652 = vpack.c.bf16 %v2618, %v2616
        %v2653 = vpack.c.bf16 %v2621, %v2619
        %v2654 = vpack.c.bf16 %v2622, %v2620
        %s2655 = scalar_lea.vmem %s2, 768
        %v2656 = vld [vmem:[%s2655] sm:$0xff]
        %v2657 = vld [vmem:[%s2655 + $0x8] sm:$0xff]
        %v2658 = vld [vmem:[%s2655 + $0x10] sm:$0xff]
        %v2659 = vld [vmem:[%s2655 + $0x18] sm:$0xff]
        %v2660 = vld [vmem:[%s2655 + $0x20] sm:$0xff]
        %v2661 = vld [vmem:[%s2655 + $0x28] sm:$0xff]
        %v2662 = vld [vmem:[%s2655 + $0x30] sm:$0xff]
        %v2663 = vld [vmem:[%s2655 + $0x38] sm:$0xff]
        %v2664 = vld [vmem:[%s2655 + $0x40] sm:$0xff]
        %v2665 = vld [vmem:[%s2655 + $0x48] sm:$0xff]
        %v2666 = vld [vmem:[%s2655 + $0x50] sm:$0xff]
        %v2667 = vld [vmem:[%s2655 + $0x58] sm:$0xff]
        %v2668 = vld [vmem:[%s2655 + $0x60] sm:$0xff]
        %v2669 = vld [vmem:[%s2655 + $0x68] sm:$0xff]
        %v2670 = vld [vmem:[%s2655 + $0x70] sm:$0xff]
        %v2671 = vld [vmem:[%s2655 + $0x78] sm:$0xff]
        %v2672 = vld [vmem:[%s2655 + $0x80] sm:$0xff]
        %v2673 = vld [vmem:[%s2655 + $0x88] sm:$0xff]
        %v2674 = vld [vmem:[%s2655 + $0x90] sm:$0xff]
        %v2675 = vld [vmem:[%s2655 + $0x98] sm:$0xff]
        %v2676 = vld [vmem:[%s2655 + $0xa0] sm:$0xff]
        %v2677 = vld [vmem:[%s2655 + $0xa8] sm:$0xff]
        %v2678 = vld [vmem:[%s2655 + $0xb0] sm:$0xff]
        %v2679 = vld [vmem:[%s2655 + $0xb8] sm:$0xff]
        %v2680 = vld [vmem:[%s2655 + $0xc0] sm:$0xff]
        %v2681 = vld [vmem:[%s2655 + $0xc8] sm:$0xff]
        %v2682 = vld [vmem:[%s2655 + $0xd0] sm:$0xff]
        %v2683 = vld [vmem:[%s2655 + $0xd8] sm:$0xff]
        %v2684 = vld [vmem:[%s2655 + $0xe0] sm:$0xff]
        %v2685 = vld [vmem:[%s2655 + $0xe8] sm:$0xff]
        %v2686 = vld [vmem:[%s2655 + $0xf0] sm:$0xff]
        %v2687 = vld [vmem:[%s2655 + $0xf8] sm:$0xff]
        %s2688 = scalar_lea.vmem %s3, 4
        %v2689 = vld [vmem:[%s2688] ss:$8 sm:$0x3]
        %v2691 = vperm.slane %v2689, 0
        %v2692 = vperm.slane %v2689, 1
        %v2727 = vunpack.c.l.b16 %v2656
        %v2728 = vunpack.c.h.b16 %v2656
        %v2729 = vunpack.c.l.b16 %v2657
        %v2730 = vunpack.c.h.b16 %v2657
        %v2731 = vunpack.c.l.b16 %v2658
        %v2732 = vunpack.c.h.b16 %v2658
        %v2733 = vunpack.c.l.b16 %v2659
        %v2734 = vunpack.c.h.b16 %v2659
        %v2735 = vunpack.c.l.b16 %v2660
        %v2736 = vunpack.c.h.b16 %v2660
        %v2737 = vunpack.c.l.b16 %v2661
        %v2738 = vunpack.c.h.b16 %v2661
        %v2739 = vunpack.c.l.b16 %v2662
        %v2740 = vunpack.c.h.b16 %v2662
        %v2741 = vunpack.c.l.b16 %v2663
        %v2742 = vunpack.c.h.b16 %v2663
        %v2743 = vunpack.c.l.b16 %v2664
        %v2744 = vunpack.c.h.b16 %v2664
        %v2745 = vunpack.c.l.b16 %v2665
        %v2746 = vunpack.c.h.b16 %v2665
        %v2747 = vunpack.c.l.b16 %v2666
        %v2748 = vunpack.c.h.b16 %v2666
        %v2749 = vunpack.c.l.b16 %v2667
        %v2750 = vunpack.c.h.b16 %v2667
        %v2751 = vunpack.c.l.b16 %v2668
        %v2752 = vunpack.c.h.b16 %v2668
        %v2753 = vunpack.c.l.b16 %v2669
        %v2754 = vunpack.c.h.b16 %v2669
        %v2755 = vunpack.c.l.b16 %v2670
        %v2756 = vunpack.c.h.b16 %v2670
        %v2757 = vunpack.c.l.b16 %v2671
        %v2758 = vunpack.c.h.b16 %v2671
        %v2759 = vunpack.c.l.b16 %v2672
        %v2760 = vunpack.c.h.b16 %v2672
        %v2761 = vunpack.c.l.b16 %v2673
        %v2762 = vunpack.c.h.b16 %v2673
        %v2763 = vunpack.c.l.b16 %v2674
        %v2764 = vunpack.c.h.b16 %v2674
        %v2765 = vunpack.c.l.b16 %v2675
        %v2766 = vunpack.c.h.b16 %v2675
        %v2767 = vunpack.c.l.b16 %v2676
        %v2768 = vunpack.c.h.b16 %v2676
        %v2769 = vunpack.c.l.b16 %v2677
        %v2770 = vunpack.c.h.b16 %v2677
        %v2771 = vunpack.c.l.b16 %v2678
        %v2772 = vunpack.c.h.b16 %v2678
        %v2773 = vunpack.c.l.b16 %v2679
        %v2774 = vunpack.c.h.b16 %v2679
        %v2775 = vunpack.c.l.b16 %v2680
        %v2776 = vunpack.c.h.b16 %v2680
        %v2777 = vunpack.c.l.b16 %v2681
        %v2778 = vunpack.c.h.b16 %v2681
        %v2779 = vunpack.c.l.b16 %v2682
        %v2780 = vunpack.c.h.b16 %v2682
        %v2781 = vunpack.c.l.b16 %v2683
        %v2782 = vunpack.c.h.b16 %v2683
        %v2783 = vunpack.c.l.b16 %v2684
        %v2784 = vunpack.c.h.b16 %v2684
        %v2785 = vunpack.c.l.b16 %v2685
        %v2786 = vunpack.c.h.b16 %v2685
        %v2787 = vunpack.c.l.b16 %v2686
        %v2788 = vunpack.c.h.b16 %v2686
        %v2789 = vunpack.c.l.b16 %v2687
        %v2790 = vunpack.c.h.b16 %v2687
        %v2791 = vpack.c.b16 %v2729, %v2727
        %v2792 = vpack.c.b16 %v2730, %v2728
        %v2793 = vpack.c.b16 %v2733, %v2731
        %v2794 = vpack.c.b16 %v2734, %v2732
        %v2795 = vpack.c.b16 %v2737, %v2735
        %v2796 = vpack.c.b16 %v2738, %v2736
        %v2797 = vpack.c.b16 %v2741, %v2739
        %v2798 = vpack.c.b16 %v2742, %v2740
        %v2799 = vpack.c.b16 %v2745, %v2743
        %v2800 = vpack.c.b16 %v2746, %v2744
        %v2801 = vpack.c.b16 %v2749, %v2747
        %v2802 = vpack.c.b16 %v2750, %v2748
        %v2803 = vpack.c.b16 %v2753, %v2751
        %v2804 = vpack.c.b16 %v2754, %v2752
        %v2805 = vpack.c.b16 %v2757, %v2755
        %v2806 = vpack.c.b16 %v2758, %v2756
        %v2807 = vpack.c.b16 %v2761, %v2759
        %v2808 = vpack.c.b16 %v2762, %v2760
        %v2809 = vpack.c.b16 %v2765, %v2763
        %v2810 = vpack.c.b16 %v2766, %v2764
        %v2811 = vpack.c.b16 %v2769, %v2767
        %v2812 = vpack.c.b16 %v2770, %v2768
        %v2813 = vpack.c.b16 %v2773, %v2771
        %v2814 = vpack.c.b16 %v2774, %v2772
        %v2815 = vpack.c.b16 %v2777, %v2775
        %v2816 = vpack.c.b16 %v2778, %v2776
        %v2817 = vpack.c.b16 %v2781, %v2779
        %v2818 = vpack.c.b16 %v2782, %v2780
        %v2819 = vpack.c.b16 %v2785, %v2783
        %v2820 = vpack.c.b16 %v2786, %v2784
        %v2821 = vpack.c.b16 %v2789, %v2787
        %v2822 = vpack.c.b16 %v2790, %v2788
        %2855 = vmatpush.bf16.msra.mxu0 %v2805
        %2856 = vmatpush.bf16.msra.mxu0 %v2803
        %2857 = vmatpush.bf16.msra.mxu0 %v2801
        %2858 = vmatpush.bf16.msra.mxu0 %v2799
        %2859 = vmatpush.bf16.msra.mxu0 %v2797
        %2860 = vmatpush.bf16.msra.mxu0 %v2795
        %2861 = vmatpush.bf16.msra.mxu0 %v2793
        %2862 = vmatpush.bf16.msra.mxu0 %v2791
        %2863 = vmatmul.bf16.gmra.mxu0 %v2623
        %v2864 = vpop.f32.mrf.mxu0
        %v2865 = vadd.f32 %v2691, %v2864
        %v2866 = vpop.f32.mrf.mxu0
        %v2867 = vadd.f32 %v2691, %v2866
        %2868 = vmatmul.bf16.gmra.mxu0 %v2625
        %v2869 = vpop.f32.mrf.mxu0
        %v2870 = vadd.f32 %v2691, %v2869
        %v2871 = vpop.f32.mrf.mxu0
        %v2872 = vadd.f32 %v2691, %v2871
        %2873 = vmatmul.bf16.gmra.mxu0 %v2627
        %v2874 = vpop.f32.mrf.mxu0
        %v2875 = vadd.f32 %v2691, %v2874
        %v2876 = vpop.f32.mrf.mxu0
        %v2877 = vadd.f32 %v2691, %v2876
        %2878 = vmatmul.bf16.gmra.mxu0 %v2629
        %v2879 = vpop.f32.mrf.mxu0
        %v2880 = vadd.f32 %v2691, %v2879
        %v2881 = vpop.f32.mrf.mxu0
        %v2882 = vadd.f32 %v2691, %v2881
        %2883 = vmatmul.bf16.gmra.mxu0 %v2631
        %v2884 = vpop.f32.mrf.mxu0
        %v2885 = vadd.f32 %v2691, %v2884
        %v2886 = vpop.f32.mrf.mxu0
        %v2887 = vadd.f32 %v2691, %v2886
        %2888 = vmatmul.bf16.gmra.mxu0 %v2633
        %v2889 = vpop.f32.mrf.mxu0
        %v2890 = vadd.f32 %v2691, %v2889
        %v2891 = vpop.f32.mrf.mxu0
        %v2892 = vadd.f32 %v2691, %v2891
        %2893 = vmatmul.bf16.gmra.mxu0 %v2635
        %v2894 = vpop.f32.mrf.mxu0
        %v2895 = vadd.f32 %v2691, %v2894
        %v2896 = vpop.f32.mrf.mxu0
        %v2897 = vadd.f32 %v2691, %v2896
        %2898 = vmatmul.bf16.gmra.mxu0 %v2637
        %v2899 = vpop.f32.mrf.mxu0
        %v2900 = vadd.f32 %v2691, %v2899
        %v2901 = vpop.f32.mrf.mxu0
        %v2902 = vadd.f32 %v2691, %v2901
        %2903 = vmatmul.bf16.gmra.mxu0 %v2639
        %v2904 = vpop.f32.mrf.mxu0
        %v2905 = vadd.f32 %v2691, %v2904
        %v2906 = vpop.f32.mrf.mxu0
        %v2907 = vadd.f32 %v2691, %v2906
        %2908 = vmatmul.bf16.gmra.mxu0 %v2641
        %v2909 = vpop.f32.mrf.mxu0
        %v2910 = vadd.f32 %v2691, %v2909
        %v2911 = vpop.f32.mrf.mxu0
        %v2912 = vadd.f32 %v2691, %v2911
        %2913 = vmatmul.bf16.gmra.mxu0 %v2643
        %v2914 = vpop.f32.mrf.mxu0
        %v2915 = vadd.f32 %v2691, %v2914
        %v2916 = vpop.f32.mrf.mxu0
        %v2917 = vadd.f32 %v2691, %v2916
        %2918 = vmatmul.bf16.gmra.mxu0 %v2645
        %v2919 = vpop.f32.mrf.mxu0
        %v2920 = vadd.f32 %v2691, %v2919
        %v2921 = vpop.f32.mrf.mxu0
        %v2922 = vadd.f32 %v2691, %v2921
        %2923 = vmatmul.bf16.gmra.mxu0 %v2647
        %v2924 = vpop.f32.mrf.mxu0
        %v2925 = vadd.f32 %v2691, %v2924
        %v2926 = vpop.f32.mrf.mxu0
        %v2927 = vadd.f32 %v2691, %v2926
        %2928 = vmatmul.bf16.gmra.mxu0 %v2649
        %v2929 = vpop.f32.mrf.mxu0
        %v2930 = vadd.f32 %v2691, %v2929
        %v2931 = vpop.f32.mrf.mxu0
        %v2932 = vadd.f32 %v2691, %v2931
        %2933 = vmatmul.bf16.gmra.mxu0 %v2651
        %v2934 = vpop.f32.mrf.mxu0
        %v2935 = vadd.f32 %v2691, %v2934
        %v2936 = vpop.f32.mrf.mxu0
        %v2937 = vadd.f32 %v2691, %v2936
        %2938 = vmatmul.bf16.gmra.mxu0 %v2653
        %v2939 = vpop.f32.mrf.mxu0
        %v2940 = vadd.f32 %v2691, %v2939
        %v2941 = vpop.f32.mrf.mxu0
        %v2942 = vadd.f32 %v2691, %v2941
        %2943 = vdwg.mxu0
        %2944 = vmatpush.bf16.msra.mxu0 %v2821
        %2945 = vmatpush.bf16.msra.mxu0 %v2819
        %2946 = vmatpush.bf16.msra.mxu0 %v2817
        %2947 = vmatpush.bf16.msra.mxu0 %v2815
        %2948 = vmatpush.bf16.msra.mxu0 %v2813
        %2949 = vmatpush.bf16.msra.mxu0 %v2811
        %2950 = vmatpush.bf16.msra.mxu0 %v2809
        %2951 = vmatpush.bf16.msra.mxu0 %v2807
        %2952 = vmatmul.bf16.gmra.mxu0 %v2624
        %v2953 = vpop.f32.mrf.mxu0
        %v2954 = vadd.f32 %v2865, %v2953
        %v2955 = vpop.f32.mrf.mxu0
        %v2956 = vadd.f32 %v2867, %v2955
        %2957 = vmatmul.bf16.gmra.mxu0 %v2626
        %v2958 = vpop.f32.mrf.mxu0
        %v2959 = vadd.f32 %v2870, %v2958
        %v2960 = vpop.f32.mrf.mxu0
        %v2961 = vadd.f32 %v2872, %v2960
        %2962 = vmatmul.bf16.gmra.mxu0 %v2628
        %v2963 = vpop.f32.mrf.mxu0
        %v2964 = vadd.f32 %v2875, %v2963
        %v2965 = vpop.f32.mrf.mxu0
        %v2966 = vadd.f32 %v2877, %v2965
        %2967 = vmatmul.bf16.gmra.mxu0 %v2630
        %v2968 = vpop.f32.mrf.mxu0
        %v2969 = vadd.f32 %v2880, %v2968
        %v2970 = vpop.f32.mrf.mxu0
        %v2971 = vadd.f32 %v2882, %v2970
        %2972 = vmatmul.bf16.gmra.mxu0 %v2632
        %v2973 = vpop.f32.mrf.mxu0
        %v2974 = vadd.f32 %v2885, %v2973
        %v2975 = vpop.f32.mrf.mxu0
        %v2976 = vadd.f32 %v2887, %v2975
        %2977 = vmatmul.bf16.gmra.mxu0 %v2634
        %v2978 = vpop.f32.mrf.mxu0
        %v2979 = vadd.f32 %v2890, %v2978
        %v2980 = vpop.f32.mrf.mxu0
        %v2981 = vadd.f32 %v2892, %v2980
        %2982 = vmatmul.bf16.gmra.mxu0 %v2636
        %v2983 = vpop.f32.mrf.mxu0
        %v2984 = vadd.f32 %v2895, %v2983
        %v2985 = vpop.f32.mrf.mxu0
        %v2986 = vadd.f32 %v2897, %v2985
        %2987 = vmatmul.bf16.gmra.mxu0 %v2638
        %v2988 = vpop.f32.mrf.mxu0
        %v2989 = vadd.f32 %v2900, %v2988
        %v2990 = vpop.f32.mrf.mxu0
        %v2991 = vadd.f32 %v2902, %v2990
        %2992 = vmatmul.bf16.gmra.mxu0 %v2640
        %v2993 = vpop.f32.mrf.mxu0
        %v2994 = vadd.f32 %v2905, %v2993
        %v2995 = vpop.f32.mrf.mxu0
        %v2996 = vadd.f32 %v2907, %v2995
        %2997 = vmatmul.bf16.gmra.mxu0 %v2642
        %v2998 = vpop.f32.mrf.mxu0
        %v2999 = vadd.f32 %v2910, %v2998
        %v3000 = vpop.f32.mrf.mxu0
        %v3001 = vadd.f32 %v2912, %v3000
        %3002 = vmatmul.bf16.gmra.mxu0 %v2644
        %v3003 = vpop.f32.mrf.mxu0
        %v3004 = vadd.f32 %v2915, %v3003
        %v3005 = vpop.f32.mrf.mxu0
        %v3006 = vadd.f32 %v2917, %v3005
        %3007 = vmatmul.bf16.gmra.mxu0 %v2646
        %v3008 = vpop.f32.mrf.mxu0
        %v3009 = vadd.f32 %v2920, %v3008
        %v3010 = vpop.f32.mrf.mxu0
        %v3011 = vadd.f32 %v2922, %v3010
        %3012 = vmatmul.bf16.gmra.mxu0 %v2648
        %v3013 = vpop.f32.mrf.mxu0
        %v3014 = vadd.f32 %v2925, %v3013
        %v3015 = vpop.f32.mrf.mxu0
        %v3016 = vadd.f32 %v2927, %v3015
        %3017 = vmatmul.bf16.gmra.mxu0 %v2650
        %v3018 = vpop.f32.mrf.mxu0
        %v3019 = vadd.f32 %v2930, %v3018
        %v3020 = vpop.f32.mrf.mxu0
        %v3021 = vadd.f32 %v2932, %v3020
        %3022 = vmatmul.bf16.gmra.mxu0 %v2652
        %v3023 = vpop.f32.mrf.mxu0
        %v3024 = vadd.f32 %v2935, %v3023
        %v3025 = vpop.f32.mrf.mxu0
        %v3026 = vadd.f32 %v2937, %v3025
        %3027 = vmatmul.bf16.gmra.mxu0 %v2654
        %v3028 = vpop.f32.mrf.mxu0
        %v3029 = vadd.f32 %v2940, %v3028
        %v3030 = vpop.f32.mrf.mxu0
        %v3031 = vadd.f32 %v2942, %v3030
        %3032 = vdwg.mxu0
        %3033 = vmatpush.bf16.msra.mxu0 %v2806
        %3034 = vmatpush.bf16.msra.mxu0 %v2804
        %3035 = vmatpush.bf16.msra.mxu0 %v2802
        %3036 = vmatpush.bf16.msra.mxu0 %v2800
        %3037 = vmatpush.bf16.msra.mxu0 %v2798
        %3038 = vmatpush.bf16.msra.mxu0 %v2796
        %3039 = vmatpush.bf16.msra.mxu0 %v2794
        %3040 = vmatpush.bf16.msra.mxu0 %v2792
        %3041 = vmatmul.bf16.gmra.mxu0 %v2623
        %v3042 = vpop.f32.mrf.mxu0
        %v3043 = vadd.f32 %v2692, %v3042
        %v3044 = vpop.f32.mrf.mxu0
        %v3045 = vadd.f32 %v2692, %v3044
        %3046 = vmatmul.bf16.gmra.mxu0 %v2625
        %v3047 = vpop.f32.mrf.mxu0
        %v3048 = vadd.f32 %v2692, %v3047
        %v3049 = vpop.f32.mrf.mxu0
        %v3050 = vadd.f32 %v2692, %v3049
        %3051 = vmatmul.bf16.gmra.mxu0 %v2627
        %v3052 = vpop.f32.mrf.mxu0
        %v3053 = vadd.f32 %v2692, %v3052
        %v3054 = vpop.f32.mrf.mxu0
        %v3055 = vadd.f32 %v2692, %v3054
        %3056 = vmatmul.bf16.gmra.mxu0 %v2629
        %v3057 = vpop.f32.mrf.mxu0
        %v3058 = vadd.f32 %v2692, %v3057
        %v3059 = vpop.f32.mrf.mxu0
        %v3060 = vadd.f32 %v2692, %v3059
        %3061 = vmatmul.bf16.gmra.mxu0 %v2631
        %v3062 = vpop.f32.mrf.mxu0
        %v3063 = vadd.f32 %v2692, %v3062
        %v3064 = vpop.f32.mrf.mxu0
        %v3065 = vadd.f32 %v2692, %v3064
        %3066 = vmatmul.bf16.gmra.mxu0 %v2633
        %v3067 = vpop.f32.mrf.mxu0
        %v3068 = vadd.f32 %v2692, %v3067
        %v3069 = vpop.f32.mrf.mxu0
        %v3070 = vadd.f32 %v2692, %v3069
        %3071 = vmatmul.bf16.gmra.mxu0 %v2635
        %v3072 = vpop.f32.mrf.mxu0
        %v3073 = vadd.f32 %v2692, %v3072
        %v3074 = vpop.f32.mrf.mxu0
        %v3075 = vadd.f32 %v2692, %v3074
        %3076 = vmatmul.bf16.gmra.mxu0 %v2637
        %v3077 = vpop.f32.mrf.mxu0
        %v3078 = vadd.f32 %v2692, %v3077
        %v3079 = vpop.f32.mrf.mxu0
        %v3080 = vadd.f32 %v2692, %v3079
        %3081 = vmatmul.bf16.gmra.mxu0 %v2639
        %v3082 = vpop.f32.mrf.mxu0
        %v3083 = vadd.f32 %v2692, %v3082
        %v3084 = vpop.f32.mrf.mxu0
        %v3085 = vadd.f32 %v2692, %v3084
        %3086 = vmatmul.bf16.gmra.mxu0 %v2641
        %v3087 = vpop.f32.mrf.mxu0
        %v3088 = vadd.f32 %v2692, %v3087
        %v3089 = vpop.f32.mrf.mxu0
        %v3090 = vadd.f32 %v2692, %v3089
        %3091 = vmatmul.bf16.gmra.mxu0 %v2643
        %v3092 = vpop.f32.mrf.mxu0
        %v3093 = vadd.f32 %v2692, %v3092
        %v3094 = vpop.f32.mrf.mxu0
        %v3095 = vadd.f32 %v2692, %v3094
        %3096 = vmatmul.bf16.gmra.mxu0 %v2645
        %v3097 = vpop.f32.mrf.mxu0
        %v3098 = vadd.f32 %v2692, %v3097
        %v3099 = vpop.f32.mrf.mxu0
        %v3100 = vadd.f32 %v2692, %v3099
        %3101 = vmatmul.bf16.gmra.mxu0 %v2647
        %v3102 = vpop.f32.mrf.mxu0
        %v3103 = vadd.f32 %v2692, %v3102
        %v3104 = vpop.f32.mrf.mxu0
        %v3105 = vadd.f32 %v2692, %v3104
        %3106 = vmatmul.bf16.gmra.mxu0 %v2649
        %v3107 = vpop.f32.mrf.mxu0
        %v3108 = vadd.f32 %v2692, %v3107
        %v3109 = vpop.f32.mrf.mxu0
        %v3110 = vadd.f32 %v2692, %v3109
        %3111 = vmatmul.bf16.gmra.mxu0 %v2651
        %v3112 = vpop.f32.mrf.mxu0
        %v3113 = vadd.f32 %v2692, %v3112
        %v3114 = vpop.f32.mrf.mxu0
        %v3115 = vadd.f32 %v2692, %v3114
        %3116 = vmatmul.bf16.gmra.mxu0 %v2653
        %v3117 = vpop.f32.mrf.mxu0
        %v3118 = vadd.f32 %v2692, %v3117
        %v3119 = vpop.f32.mrf.mxu0
        %v3120 = vadd.f32 %v2692, %v3119
        %3121 = vdwg.mxu0
        %3122 = vmatpush.bf16.msra.mxu0 %v2822
        %3123 = vmatpush.bf16.msra.mxu0 %v2820
        %3124 = vmatpush.bf16.msra.mxu0 %v2818
        %3125 = vmatpush.bf16.msra.mxu0 %v2816
        %3126 = vmatpush.bf16.msra.mxu0 %v2814
        %3127 = vmatpush.bf16.msra.mxu0 %v2812
        %3128 = vmatpush.bf16.msra.mxu0 %v2810
        %3129 = vmatpush.bf16.msra.mxu0 %v2808
        %3130 = vmatmul.bf16.gmra.mxu0 %v2624
        %v3131 = vpop.f32.mrf.mxu0
        %v3132 = vadd.f32 %v3043, %v3131
        %v3133 = vpop.f32.mrf.mxu0
        %v3134 = vadd.f32 %v3045, %v3133
        %3135 = vmatmul.bf16.gmra.mxu0 %v2626
        %v3136 = vpop.f32.mrf.mxu0
        %v3137 = vadd.f32 %v3048, %v3136
        %v3138 = vpop.f32.mrf.mxu0
        %v3139 = vadd.f32 %v3050, %v3138
        %3140 = vmatmul.bf16.gmra.mxu0 %v2628
        %v3141 = vpop.f32.mrf.mxu0
        %v3142 = vadd.f32 %v3053, %v3141
        %v3143 = vpop.f32.mrf.mxu0
        %v3144 = vadd.f32 %v3055, %v3143
        %3145 = vmatmul.bf16.gmra.mxu0 %v2630
        %v3146 = vpop.f32.mrf.mxu0
        %v3147 = vadd.f32 %v3058, %v3146
        %v3148 = vpop.f32.mrf.mxu0
        %v3149 = vadd.f32 %v3060, %v3148
        %3150 = vmatmul.bf16.gmra.mxu0 %v2632
        %v3151 = vpop.f32.mrf.mxu0
        %v3152 = vadd.f32 %v3063, %v3151
        %v3153 = vpop.f32.mrf.mxu0
        %v3154 = vadd.f32 %v3065, %v3153
        %3155 = vmatmul.bf16.gmra.mxu0 %v2634
        %v3156 = vpop.f32.mrf.mxu0
        %v3157 = vadd.f32 %v3068, %v3156
        %v3158 = vpop.f32.mrf.mxu0
        %v3159 = vadd.f32 %v3070, %v3158
        %3160 = vmatmul.bf16.gmra.mxu0 %v2636
        %v3161 = vpop.f32.mrf.mxu0
        %v3162 = vadd.f32 %v3073, %v3161
        %v3163 = vpop.f32.mrf.mxu0
        %v3164 = vadd.f32 %v3075, %v3163
        %3165 = vmatmul.bf16.gmra.mxu0 %v2638
        %v3166 = vpop.f32.mrf.mxu0
        %v3167 = vadd.f32 %v3078, %v3166
        %v3168 = vpop.f32.mrf.mxu0
        %v3169 = vadd.f32 %v3080, %v3168
        %3170 = vmatmul.bf16.gmra.mxu0 %v2640
        %v3171 = vpop.f32.mrf.mxu0
        %v3172 = vadd.f32 %v3083, %v3171
        %v3173 = vpop.f32.mrf.mxu0
        %v3174 = vadd.f32 %v3085, %v3173
        %3175 = vmatmul.bf16.gmra.mxu0 %v2642
        %v3176 = vpop.f32.mrf.mxu0
        %v3177 = vadd.f32 %v3088, %v3176
        %v3178 = vpop.f32.mrf.mxu0
        %v3179 = vadd.f32 %v3090, %v3178
        %3180 = vmatmul.bf16.gmra.mxu0 %v2644
        %v3181 = vpop.f32.mrf.mxu0
        %v3182 = vadd.f32 %v3093, %v3181
        %v3183 = vpop.f32.mrf.mxu0
        %v3184 = vadd.f32 %v3095, %v3183
        %3185 = vmatmul.bf16.gmra.mxu0 %v2646
        %v3186 = vpop.f32.mrf.mxu0
        %v3187 = vadd.f32 %v3098, %v3186
        %v3188 = vpop.f32.mrf.mxu0
        %v3189 = vadd.f32 %v3100, %v3188
        %3190 = vmatmul.bf16.gmra.mxu0 %v2648
        %v3191 = vpop.f32.mrf.mxu0
        %v3192 = vadd.f32 %v3103, %v3191
        %v3193 = vpop.f32.mrf.mxu0
        %v3194 = vadd.f32 %v3105, %v3193
        %3195 = vmatmul.bf16.gmra.mxu0 %v2650
        %v3196 = vpop.f32.mrf.mxu0
        %v3197 = vadd.f32 %v3108, %v3196
        %v3198 = vpop.f32.mrf.mxu0
        %v3199 = vadd.f32 %v3110, %v3198
        %3200 = vmatmul.bf16.gmra.mxu0 %v2652
        %v3201 = vpop.f32.mrf.mxu0
        %v3202 = vadd.f32 %v3113, %v3201
        %v3203 = vpop.f32.mrf.mxu0
        %v3204 = vadd.f32 %v3115, %v3203
        %3205 = vmatmul.bf16.gmra.mxu0 %v2654
        %v3206 = vpop.f32.mrf.mxu0
        %v3207 = vadd.f32 %v3118, %v3206
        %v3208 = vpop.f32.mrf.mxu0
        %v3209 = vadd.f32 %v3120, %v3208
        %3210 = vdwg.mxu0
        %v3211 = vmax.f32 %v2954, 0.0
        %v3212 = vmax.f32 %v3132, 0.0
        %v3213 = vmax.f32 %v2956, 0.0
        %v3214 = vmax.f32 %v3134, 0.0
        %v3215 = vmax.f32 %v2959, 0.0
        %v3216 = vmax.f32 %v3137, 0.0
        %v3217 = vmax.f32 %v2961, 0.0
        %v3218 = vmax.f32 %v3139, 0.0
        %v3219 = vmax.f32 %v2964, 0.0
        %v3220 = vmax.f32 %v3142, 0.0
        %v3221 = vmax.f32 %v2966, 0.0
        %v3222 = vmax.f32 %v3144, 0.0
        %v3223 = vmax.f32 %v2969, 0.0
        %v3224 = vmax.f32 %v3147, 0.0
        %v3225 = vmax.f32 %v2971, 0.0
        %v3226 = vmax.f32 %v3149, 0.0
        %v3227 = vmax.f32 %v2974, 0.0
        %v3228 = vmax.f32 %v3152, 0.0
        %v3229 = vmax.f32 %v2976, 0.0
        %v3230 = vmax.f32 %v3154, 0.0
        %v3231 = vmax.f32 %v2979, 0.0
        %v3232 = vmax.f32 %v3157, 0.0
        %v3233 = vmax.f32 %v2981, 0.0
        %v3234 = vmax.f32 %v3159, 0.0
        %v3235 = vmax.f32 %v2984, 0.0
        %v3236 = vmax.f32 %v3162, 0.0
        %v3237 = vmax.f32 %v2986, 0.0
        %v3238 = vmax.f32 %v3164, 0.0
        %v3239 = vmax.f32 %v2989, 0.0
        %v3240 = vmax.f32 %v3167, 0.0
        %v3241 = vmax.f32 %v2991, 0.0
        %v3242 = vmax.f32 %v3169, 0.0
        %v3243 = vmax.f32 %v2994, 0.0
        %v3244 = vmax.f32 %v3172, 0.0
        %v3245 = vmax.f32 %v2996, 0.0
        %v3246 = vmax.f32 %v3174, 0.0
        %v3247 = vmax.f32 %v2999, 0.0
        %v3248 = vmax.f32 %v3177, 0.0
        %v3249 = vmax.f32 %v3001, 0.0
        %v3250 = vmax.f32 %v3179, 0.0
        %v3251 = vmax.f32 %v3004, 0.0
        %v3252 = vmax.f32 %v3182, 0.0
        %v3253 = vmax.f32 %v3006, 0.0
        %v3254 = vmax.f32 %v3184, 0.0
        %v3255 = vmax.f32 %v3009, 0.0
        %v3256 = vmax.f32 %v3187, 0.0
        %v3257 = vmax.f32 %v3011, 0.0
        %v3258 = vmax.f32 %v3189, 0.0
        %v3259 = vmax.f32 %v3014, 0.0
        %v3260 = vmax.f32 %v3192, 0.0
        %v3261 = vmax.f32 %v3016, 0.0
        %v3262 = vmax.f32 %v3194, 0.0
        %v3263 = vmax.f32 %v3019, 0.0
        %v3264 = vmax.f32 %v3197, 0.0
        %v3265 = vmax.f32 %v3021, 0.0
        %v3266 = vmax.f32 %v3199, 0.0
        %v3267 = vmax.f32 %v3024, 0.0
        %v3268 = vmax.f32 %v3202, 0.0
        %v3269 = vmax.f32 %v3026, 0.0
        %v3270 = vmax.f32 %v3204, 0.0
        %v3271 = vmax.f32 %v3029, 0.0
        %v3272 = vmax.f32 %v3207, 0.0
        %v3273 = vmax.f32 %v3031, 0.0
        %v3274 = vmax.f32 %v3209, 0.0
        %s3275 = scalar_lea.vmem %s1, 128
        %v3276 = vld [vmem:[%s3275] sm:$0xff]
        %v3277 = vld [vmem:[%s3275 + $0x8] sm:$0xff]
        %v3278 = vld [vmem:[%s3275 + $0x10] sm:$0xff]
        %v3279 = vld [vmem:[%s3275 + $0x18] sm:$0xff]
        %v3280 = vld [vmem:[%s3275 + $0x20] sm:$0xff]
        %v3281 = vld [vmem:[%s3275 + $0x28] sm:$0xff]
        %v3282 = vld [vmem:[%s3275 + $0x30] sm:$0xff]
        %v3283 = vld [vmem:[%s3275 + $0x38] sm:$0xff]
        %v3284 = vld [vmem:[%s3275 + $0x40] sm:$0xff]
        %v3285 = vld [vmem:[%s3275 + $0x48] sm:$0xff]
        %v3286 = vld [vmem:[%s3275 + $0x50] sm:$0xff]
        %v3287 = vld [vmem:[%s3275 + $0x58] sm:$0xff]
        %v3288 = vld [vmem:[%s3275 + $0x60] sm:$0xff]
        %v3289 = vld [vmem:[%s3275 + $0x68] sm:$0xff]
        %v3290 = vld [vmem:[%s3275 + $0x70] sm:$0xff]
        %v3291 = vld [vmem:[%s3275 + $0x78] sm:$0xff]
        %v3292 = vpack.c.bf16 %v3213, %v3211
        %v3293 = vpack.c.bf16 %v3214, %v3212
        %v3294 = vpack.c.bf16 %v3217, %v3215
        %v3295 = vpack.c.bf16 %v3218, %v3216
        %v3296 = vpack.c.bf16 %v3221, %v3219
        %v3297 = vpack.c.bf16 %v3222, %v3220
        %v3298 = vpack.c.bf16 %v3225, %v3223
        %v3299 = vpack.c.bf16 %v3226, %v3224
        %v3300 = vpack.c.bf16 %v3229, %v3227
        %v3301 = vpack.c.bf16 %v3230, %v3228
        %v3302 = vpack.c.bf16 %v3233, %v3231
        %v3303 = vpack.c.bf16 %v3234, %v3232
        %v3304 = vpack.c.bf16 %v3237, %v3235
        %v3305 = vpack.c.bf16 %v3238, %v3236
        %v3306 = vpack.c.bf16 %v3241, %v3239
        %v3307 = vpack.c.bf16 %v3242, %v3240
        %v3308 = vpack.c.bf16 %v3245, %v3243
        %v3309 = vpack.c.bf16 %v3246, %v3244
        %v3310 = vpack.c.bf16 %v3249, %v3247
        %v3311 = vpack.c.bf16 %v3250, %v3248
        %v3312 = vpack.c.bf16 %v3253, %v3251
        %v3313 = vpack.c.bf16 %v3254, %v3252
        %v3314 = vpack.c.bf16 %v3257, %v3255
        %v3315 = vpack.c.bf16 %v3258, %v3256
        %v3316 = vpack.c.bf16 %v3261, %v3259
        %v3317 = vpack.c.bf16 %v3262, %v3260
        %v3318 = vpack.c.bf16 %v3265, %v3263
        %v3319 = vpack.c.bf16 %v3266, %v3264
        %v3320 = vpack.c.bf16 %v3269, %v3267
        %v3321 = vpack.c.bf16 %v3270, %v3268
        %v3322 = vpack.c.bf16 %v3273, %v3271
        %v3323 = vpack.c.bf16 %v3274, %v3272
        %s3324 = scalar_lea.vmem %s2, 1024
        %v3325 = vld [vmem:[%s3324] sm:$0xff]
        %v3326 = vld [vmem:[%s3324 + $0x8] sm:$0xff]
        %v3327 = vld [vmem:[%s3324 + $0x10] sm:$0xff]
        %v3328 = vld [vmem:[%s3324 + $0x18] sm:$0xff]
        %v3329 = vld [vmem:[%s3324 + $0x20] sm:$0xff]
        %v3330 = vld [vmem:[%s3324 + $0x28] sm:$0xff]
        %v3331 = vld [vmem:[%s3324 + $0x30] sm:$0xff]
        %v3332 = vld [vmem:[%s3324 + $0x38] sm:$0xff]
        %v3333 = vld [vmem:[%s3324 + $0x40] sm:$0xff]
        %v3334 = vld [vmem:[%s3324 + $0x48] sm:$0xff]
        %v3335 = vld [vmem:[%s3324 + $0x50] sm:$0xff]
        %v3336 = vld [vmem:[%s3324 + $0x58] sm:$0xff]
        %v3337 = vld [vmem:[%s3324 + $0x60] sm:$0xff]
        %v3338 = vld [vmem:[%s3324 + $0x68] sm:$0xff]
        %v3339 = vld [vmem:[%s3324 + $0x70] sm:$0xff]
        %v3340 = vld [vmem:[%s3324 + $0x78] sm:$0xff]
        %v3341 = vld [vmem:[%s3324 + $0x80] sm:$0xff]
        %v3342 = vld [vmem:[%s3324 + $0x88] sm:$0xff]
        %v3343 = vld [vmem:[%s3324 + $0x90] sm:$0xff]
        %v3344 = vld [vmem:[%s3324 + $0x98] sm:$0xff]
        %v3345 = vld [vmem:[%s3324 + $0xa0] sm:$0xff]
        %v3346 = vld [vmem:[%s3324 + $0xa8] sm:$0xff]
        %v3347 = vld [vmem:[%s3324 + $0xb0] sm:$0xff]
        %v3348 = vld [vmem:[%s3324 + $0xb8] sm:$0xff]
        %v3349 = vld [vmem:[%s3324 + $0xc0] sm:$0xff]
        %v3350 = vld [vmem:[%s3324 + $0xc8] sm:$0xff]
        %v3351 = vld [vmem:[%s3324 + $0xd0] sm:$0xff]
        %v3352 = vld [vmem:[%s3324 + $0xd8] sm:$0xff]
        %v3353 = vld [vmem:[%s3324 + $0xe0] sm:$0xff]
        %v3354 = vld [vmem:[%s3324 + $0xe8] sm:$0xff]
        %v3355 = vld [vmem:[%s3324 + $0xf0] sm:$0xff]
        %v3356 = vld [vmem:[%s3324 + $0xf8] sm:$0xff]
        %v3389 = vunpack.c.l.b16 %v3325
        %v3390 = vunpack.c.h.b16 %v3325
        %v3391 = vunpack.c.l.b16 %v3326
        %v3392 = vunpack.c.h.b16 %v3326
        %v3393 = vunpack.c.l.b16 %v3327
        %v3394 = vunpack.c.h.b16 %v3327
        %v3395 = vunpack.c.l.b16 %v3328
        %v3396 = vunpack.c.h.b16 %v3328
        %v3397 = vunpack.c.l.b16 %v3329
        %v3398 = vunpack.c.h.b16 %v3329
        %v3399 = vunpack.c.l.b16 %v3330
        %v3400 = vunpack.c.h.b16 %v3330
        %v3401 = vunpack.c.l.b16 %v3331
        %v3402 = vunpack.c.h.b16 %v3331
        %v3403 = vunpack.c.l.b16 %v3332
        %v3404 = vunpack.c.h.b16 %v3332
        %v3405 = vunpack.c.l.b16 %v3333
        %v3406 = vunpack.c.h.b16 %v3333
        %v3407 = vunpack.c.l.b16 %v3334
        %v3408 = vunpack.c.h.b16 %v3334
        %v3409 = vunpack.c.l.b16 %v3335
        %v3410 = vunpack.c.h.b16 %v3335
        %v3411 = vunpack.c.l.b16 %v3336
        %v3412 = vunpack.c.h.b16 %v3336
        %v3413 = vunpack.c.l.b16 %v3337
        %v3414 = vunpack.c.h.b16 %v3337
        %v3415 = vunpack.c.l.b16 %v3338
        %v3416 = vunpack.c.h.b16 %v3338
        %v3417 = vunpack.c.l.b16 %v3339
        %v3418 = vunpack.c.h.b16 %v3339
        %v3419 = vunpack.c.l.b16 %v3340
        %v3420 = vunpack.c.h.b16 %v3340
        %v3421 = vunpack.c.l.b16 %v3341
        %v3422 = vunpack.c.h.b16 %v3341
        %v3423 = vunpack.c.l.b16 %v3342
        %v3424 = vunpack.c.h.b16 %v3342
        %v3425 = vunpack.c.l.b16 %v3343
        %v3426 = vunpack.c.h.b16 %v3343
        %v3427 = vunpack.c.l.b16 %v3344
        %v3428 = vunpack.c.h.b16 %v3344
        %v3429 = vunpack.c.l.b16 %v3345
        %v3430 = vunpack.c.h.b16 %v3345
        %v3431 = vunpack.c.l.b16 %v3346
        %v3432 = vunpack.c.h.b16 %v3346
        %v3433 = vunpack.c.l.b16 %v3347
        %v3434 = vunpack.c.h.b16 %v3347
        %v3435 = vunpack.c.l.b16 %v3348
        %v3436 = vunpack.c.h.b16 %v3348
        %v3437 = vunpack.c.l.b16 %v3349
        %v3438 = vunpack.c.h.b16 %v3349
        %v3439 = vunpack.c.l.b16 %v3350
        %v3440 = vunpack.c.h.b16 %v3350
        %v3441 = vunpack.c.l.b16 %v3351
        %v3442 = vunpack.c.h.b16 %v3351
        %v3443 = vunpack.c.l.b16 %v3352
        %v3444 = vunpack.c.h.b16 %v3352
        %v3445 = vunpack.c.l.b16 %v3353
        %v3446 = vunpack.c.h.b16 %v3353
        %v3447 = vunpack.c.l.b16 %v3354
        %v3448 = vunpack.c.h.b16 %v3354
        %v3449 = vunpack.c.l.b16 %v3355
        %v3450 = vunpack.c.h.b16 %v3355
        %v3451 = vunpack.c.l.b16 %v3356
        %v3452 = vunpack.c.h.b16 %v3356
        %v3453 = vpack.c.b16 %v3391, %v3389
        %v3454 = vpack.c.b16 %v3392, %v3390
        %v3455 = vpack.c.b16 %v3395, %v3393
        %v3456 = vpack.c.b16 %v3396, %v3394
        %v3457 = vpack.c.b16 %v3399, %v3397
        %v3458 = vpack.c.b16 %v3400, %v3398
        %v3459 = vpack.c.b16 %v3403, %v3401
        %v3460 = vpack.c.b16 %v3404, %v3402
        %v3461 = vpack.c.b16 %v3407, %v3405
        %v3462 = vpack.c.b16 %v3408, %v3406
        %v3463 = vpack.c.b16 %v3411, %v3409
        %v3464 = vpack.c.b16 %v3412, %v3410
        %v3465 = vpack.c.b16 %v3415, %v3413
        %v3466 = vpack.c.b16 %v3416, %v3414
        %v3467 = vpack.c.b16 %v3419, %v3417
        %v3468 = vpack.c.b16 %v3420, %v3418
        %v3469 = vpack.c.b16 %v3423, %v3421
        %v3470 = vpack.c.b16 %v3424, %v3422
        %v3471 = vpack.c.b16 %v3427, %v3425
        %v3472 = vpack.c.b16 %v3428, %v3426
        %v3473 = vpack.c.b16 %v3431, %v3429
        %v3474 = vpack.c.b16 %v3432, %v3430
        %v3475 = vpack.c.b16 %v3435, %v3433
        %v3476 = vpack.c.b16 %v3436, %v3434
        %v3477 = vpack.c.b16 %v3439, %v3437
        %v3478 = vpack.c.b16 %v3440, %v3438
        %v3479 = vpack.c.b16 %v3443, %v3441
        %v3480 = vpack.c.b16 %v3444, %v3442
        %v3481 = vpack.c.b16 %v3447, %v3445
        %v3482 = vpack.c.b16 %v3448, %v3446
        %v3483 = vpack.c.b16 %v3451, %v3449
        %v3484 = vpack.c.b16 %v3452, %v3450
        %3517 = vmatpush.bf16.msra.mxu0 %v3467
        %3518 = vmatpush.bf16.msra.mxu0 %v3465
        %3519 = vmatpush.bf16.msra.mxu0 %v3463
        %3520 = vmatpush.bf16.msra.mxu0 %v3461
        %3521 = vmatpush.bf16.msra.mxu0 %v3459
        %3522 = vmatpush.bf16.msra.mxu0 %v3457
        %3523 = vmatpush.bf16.msra.mxu0 %v3455
        %3524 = vmatpush.bf16.msra.mxu0 %v3453
        %3525 = vmatmul.bf16.gmra.mxu0 %v3292
        %v3526 = vpop.f32.mrf.mxu0
        %v3527 = vadd.f32 0.0, %v3526
        %v3528 = vpop.f32.mrf.mxu0
        %v3529 = vadd.f32 0.0, %v3528
        %3530 = vmatmul.bf16.gmra.mxu0 %v3294
        %v3531 = vpop.f32.mrf.mxu0
        %v3532 = vadd.f32 0.0, %v3531
        %v3533 = vpop.f32.mrf.mxu0
        %v3534 = vadd.f32 0.0, %v3533
        %3535 = vmatmul.bf16.gmra.mxu0 %v3296
        %v3536 = vpop.f32.mrf.mxu0
        %v3537 = vadd.f32 0.0, %v3536
        %v3538 = vpop.f32.mrf.mxu0
        %v3539 = vadd.f32 0.0, %v3538
        %3540 = vmatmul.bf16.gmra.mxu0 %v3298
        %v3541 = vpop.f32.mrf.mxu0
        %v3542 = vadd.f32 0.0, %v3541
        %v3543 = vpop.f32.mrf.mxu0
        %v3544 = vadd.f32 0.0, %v3543
        %3545 = vmatmul.bf16.gmra.mxu0 %v3300
        %v3546 = vpop.f32.mrf.mxu0
        %v3547 = vadd.f32 0.0, %v3546
        %v3548 = vpop.f32.mrf.mxu0
        %v3549 = vadd.f32 0.0, %v3548
        %3550 = vmatmul.bf16.gmra.mxu0 %v3302
        %v3551 = vpop.f32.mrf.mxu0
        %v3552 = vadd.f32 0.0, %v3551
        %v3553 = vpop.f32.mrf.mxu0
        %v3554 = vadd.f32 0.0, %v3553
        %3555 = vmatmul.bf16.gmra.mxu0 %v3304
        %v3556 = vpop.f32.mrf.mxu0
        %v3557 = vadd.f32 0.0, %v3556
        %v3558 = vpop.f32.mrf.mxu0
        %v3559 = vadd.f32 0.0, %v3558
        %3560 = vmatmul.bf16.gmra.mxu0 %v3306
        %v3561 = vpop.f32.mrf.mxu0
        %v3562 = vadd.f32 0.0, %v3561
        %v3563 = vpop.f32.mrf.mxu0
        %v3564 = vadd.f32 0.0, %v3563
        %3565 = vmatmul.bf16.gmra.mxu0 %v3308
        %v3566 = vpop.f32.mrf.mxu0
        %v3567 = vadd.f32 0.0, %v3566
        %v3568 = vpop.f32.mrf.mxu0
        %v3569 = vadd.f32 0.0, %v3568
        %3570 = vmatmul.bf16.gmra.mxu0 %v3310
        %v3571 = vpop.f32.mrf.mxu0
        %v3572 = vadd.f32 0.0, %v3571
        %v3573 = vpop.f32.mrf.mxu0
        %v3574 = vadd.f32 0.0, %v3573
        %3575 = vmatmul.bf16.gmra.mxu0 %v3312
        %v3576 = vpop.f32.mrf.mxu0
        %v3577 = vadd.f32 0.0, %v3576
        %v3578 = vpop.f32.mrf.mxu0
        %v3579 = vadd.f32 0.0, %v3578
        %3580 = vmatmul.bf16.gmra.mxu0 %v3314
        %v3581 = vpop.f32.mrf.mxu0
        %v3582 = vadd.f32 0.0, %v3581
        %v3583 = vpop.f32.mrf.mxu0
        %v3584 = vadd.f32 0.0, %v3583
        %3585 = vmatmul.bf16.gmra.mxu0 %v3316
        %v3586 = vpop.f32.mrf.mxu0
        %v3587 = vadd.f32 0.0, %v3586
        %v3588 = vpop.f32.mrf.mxu0
        %v3589 = vadd.f32 0.0, %v3588
        %3590 = vmatmul.bf16.gmra.mxu0 %v3318
        %v3591 = vpop.f32.mrf.mxu0
        %v3592 = vadd.f32 0.0, %v3591
        %v3593 = vpop.f32.mrf.mxu0
        %v3594 = vadd.f32 0.0, %v3593
        %3595 = vmatmul.bf16.gmra.mxu0 %v3320
        %v3596 = vpop.f32.mrf.mxu0
        %v3597 = vadd.f32 0.0, %v3596
        %v3598 = vpop.f32.mrf.mxu0
        %v3599 = vadd.f32 0.0, %v3598
        %3600 = vmatmul.bf16.gmra.mxu0 %v3322
        %v3601 = vpop.f32.mrf.mxu0
        %v3602 = vadd.f32 0.0, %v3601
        %v3603 = vpop.f32.mrf.mxu0
        %v3604 = vadd.f32 0.0, %v3603
        %3605 = vdwg.mxu0
        %3606 = vmatpush.bf16.msra.mxu0 %v3483
        %3607 = vmatpush.bf16.msra.mxu0 %v3481
        %3608 = vmatpush.bf16.msra.mxu0 %v3479
        %3609 = vmatpush.bf16.msra.mxu0 %v3477
        %3610 = vmatpush.bf16.msra.mxu0 %v3475
        %3611 = vmatpush.bf16.msra.mxu0 %v3473
        %3612 = vmatpush.bf16.msra.mxu0 %v3471
        %3613 = vmatpush.bf16.msra.mxu0 %v3469
        %3614 = vmatmul.bf16.gmra.mxu0 %v3293
        %v3615 = vpop.f32.mrf.mxu0
        %v3616 = vadd.f32 %v3527, %v3615
        %v3617 = vpop.f32.mrf.mxu0
        %v3618 = vadd.f32 %v3529, %v3617
        %3619 = vmatmul.bf16.gmra.mxu0 %v3295
        %v3620 = vpop.f32.mrf.mxu0
        %v3621 = vadd.f32 %v3532, %v3620
        %v3622 = vpop.f32.mrf.mxu0
        %v3623 = vadd.f32 %v3534, %v3622
        %3624 = vmatmul.bf16.gmra.mxu0 %v3297
        %v3625 = vpop.f32.mrf.mxu0
        %v3626 = vadd.f32 %v3537, %v3625
        %v3627 = vpop.f32.mrf.mxu0
        %v3628 = vadd.f32 %v3539, %v3627
        %3629 = vmatmul.bf16.gmra.mxu0 %v3299
        %v3630 = vpop.f32.mrf.mxu0
        %v3631 = vadd.f32 %v3542, %v3630
        %v3632 = vpop.f32.mrf.mxu0
        %v3633 = vadd.f32 %v3544, %v3632
        %3634 = vmatmul.bf16.gmra.mxu0 %v3301
        %v3635 = vpop.f32.mrf.mxu0
        %v3636 = vadd.f32 %v3547, %v3635
        %v3637 = vpop.f32.mrf.mxu0
        %v3638 = vadd.f32 %v3549, %v3637
        %3639 = vmatmul.bf16.gmra.mxu0 %v3303
        %v3640 = vpop.f32.mrf.mxu0
        %v3641 = vadd.f32 %v3552, %v3640
        %v3642 = vpop.f32.mrf.mxu0
        %v3643 = vadd.f32 %v3554, %v3642
        %3644 = vmatmul.bf16.gmra.mxu0 %v3305
        %v3645 = vpop.f32.mrf.mxu0
        %v3646 = vadd.f32 %v3557, %v3645
        %v3647 = vpop.f32.mrf.mxu0
        %v3648 = vadd.f32 %v3559, %v3647
        %3649 = vmatmul.bf16.gmra.mxu0 %v3307
        %v3650 = vpop.f32.mrf.mxu0
        %v3651 = vadd.f32 %v3562, %v3650
        %v3652 = vpop.f32.mrf.mxu0
        %v3653 = vadd.f32 %v3564, %v3652
        %3654 = vmatmul.bf16.gmra.mxu0 %v3309
        %v3655 = vpop.f32.mrf.mxu0
        %v3656 = vadd.f32 %v3567, %v3655
        %v3657 = vpop.f32.mrf.mxu0
        %v3658 = vadd.f32 %v3569, %v3657
        %3659 = vmatmul.bf16.gmra.mxu0 %v3311
        %v3660 = vpop.f32.mrf.mxu0
        %v3661 = vadd.f32 %v3572, %v3660
        %v3662 = vpop.f32.mrf.mxu0
        %v3663 = vadd.f32 %v3574, %v3662
        %3664 = vmatmul.bf16.gmra.mxu0 %v3313
        %v3665 = vpop.f32.mrf.mxu0
        %v3666 = vadd.f32 %v3577, %v3665
        %v3667 = vpop.f32.mrf.mxu0
        %v3668 = vadd.f32 %v3579, %v3667
        %3669 = vmatmul.bf16.gmra.mxu0 %v3315
        %v3670 = vpop.f32.mrf.mxu0
        %v3671 = vadd.f32 %v3582, %v3670
        %v3672 = vpop.f32.mrf.mxu0
        %v3673 = vadd.f32 %v3584, %v3672
        %3674 = vmatmul.bf16.gmra.mxu0 %v3317
        %v3675 = vpop.f32.mrf.mxu0
        %v3676 = vadd.f32 %v3587, %v3675
        %v3677 = vpop.f32.mrf.mxu0
        %v3678 = vadd.f32 %v3589, %v3677
        %3679 = vmatmul.bf16.gmra.mxu0 %v3319
        %v3680 = vpop.f32.mrf.mxu0
        %v3681 = vadd.f32 %v3592, %v3680
        %v3682 = vpop.f32.mrf.mxu0
        %v3683 = vadd.f32 %v3594, %v3682
        %3684 = vmatmul.bf16.gmra.mxu0 %v3321
        %v3685 = vpop.f32.mrf.mxu0
        %v3686 = vadd.f32 %v3597, %v3685
        %v3687 = vpop.f32.mrf.mxu0
        %v3688 = vadd.f32 %v3599, %v3687
        %3689 = vmatmul.bf16.gmra.mxu0 %v3323
        %v3690 = vpop.f32.mrf.mxu0
        %v3691 = vadd.f32 %v3602, %v3690
        %v3692 = vpop.f32.mrf.mxu0
        %v3693 = vadd.f32 %v3604, %v3692
        %3694 = vdwg.mxu0
        %3695 = vmatpush.bf16.msra.mxu0 %v3468
        %3696 = vmatpush.bf16.msra.mxu0 %v3466
        %3697 = vmatpush.bf16.msra.mxu0 %v3464
        %3698 = vmatpush.bf16.msra.mxu0 %v3462
        %3699 = vmatpush.bf16.msra.mxu0 %v3460
        %3700 = vmatpush.bf16.msra.mxu0 %v3458
        %3701 = vmatpush.bf16.msra.mxu0 %v3456
        %3702 = vmatpush.bf16.msra.mxu0 %v3454
        %3703 = vmatmul.bf16.gmra.mxu0 %v3292
        %v3704 = vpop.f32.mrf.mxu0
        %v3705 = vadd.f32 0.0, %v3704
        %v3706 = vpop.f32.mrf.mxu0
        %v3707 = vadd.f32 0.0, %v3706
        %3708 = vmatmul.bf16.gmra.mxu0 %v3294
        %v3709 = vpop.f32.mrf.mxu0
        %v3710 = vadd.f32 0.0, %v3709
        %v3711 = vpop.f32.mrf.mxu0
        %v3712 = vadd.f32 0.0, %v3711
        %3713 = vmatmul.bf16.gmra.mxu0 %v3296
        %v3714 = vpop.f32.mrf.mxu0
        %v3715 = vadd.f32 0.0, %v3714
        %v3716 = vpop.f32.mrf.mxu0
        %v3717 = vadd.f32 0.0, %v3716
        %3718 = vmatmul.bf16.gmra.mxu0 %v3298
        %v3719 = vpop.f32.mrf.mxu0
        %v3720 = vadd.f32 0.0, %v3719
        %v3721 = vpop.f32.mrf.mxu0
        %v3722 = vadd.f32 0.0, %v3721
        %3723 = vmatmul.bf16.gmra.mxu0 %v3300
        %v3724 = vpop.f32.mrf.mxu0
        %v3725 = vadd.f32 0.0, %v3724
        %v3726 = vpop.f32.mrf.mxu0
        %v3727 = vadd.f32 0.0, %v3726
        %3728 = vmatmul.bf16.gmra.mxu0 %v3302
        %v3729 = vpop.f32.mrf.mxu0
        %v3730 = vadd.f32 0.0, %v3729
        %v3731 = vpop.f32.mrf.mxu0
        %v3732 = vadd.f32 0.0, %v3731
        %3733 = vmatmul.bf16.gmra.mxu0 %v3304
        %v3734 = vpop.f32.mrf.mxu0
        %v3735 = vadd.f32 0.0, %v3734
        %v3736 = vpop.f32.mrf.mxu0
        %v3737 = vadd.f32 0.0, %v3736
        %3738 = vmatmul.bf16.gmra.mxu0 %v3306
        %v3739 = vpop.f32.mrf.mxu0
        %v3740 = vadd.f32 0.0, %v3739
        %v3741 = vpop.f32.mrf.mxu0
        %v3742 = vadd.f32 0.0, %v3741
        %3743 = vmatmul.bf16.gmra.mxu0 %v3308
        %v3744 = vpop.f32.mrf.mxu0
        %v3745 = vadd.f32 0.0, %v3744
        %v3746 = vpop.f32.mrf.mxu0
        %v3747 = vadd.f32 0.0, %v3746
        %3748 = vmatmul.bf16.gmra.mxu0 %v3310
        %v3749 = vpop.f32.mrf.mxu0
        %v3750 = vadd.f32 0.0, %v3749
        %v3751 = vpop.f32.mrf.mxu0
        %v3752 = vadd.f32 0.0, %v3751
        %3753 = vmatmul.bf16.gmra.mxu0 %v3312
        %v3754 = vpop.f32.mrf.mxu0
        %v3755 = vadd.f32 0.0, %v3754
        %v3756 = vpop.f32.mrf.mxu0
        %v3757 = vadd.f32 0.0, %v3756
        %3758 = vmatmul.bf16.gmra.mxu0 %v3314
        %v3759 = vpop.f32.mrf.mxu0
        %v3760 = vadd.f32 0.0, %v3759
        %v3761 = vpop.f32.mrf.mxu0
        %v3762 = vadd.f32 0.0, %v3761
        %3763 = vmatmul.bf16.gmra.mxu0 %v3316
        %v3764 = vpop.f32.mrf.mxu0
        %v3765 = vadd.f32 0.0, %v3764
        %v3766 = vpop.f32.mrf.mxu0
        %v3767 = vadd.f32 0.0, %v3766
        %3768 = vmatmul.bf16.gmra.mxu0 %v3318
        %v3769 = vpop.f32.mrf.mxu0
        %v3770 = vadd.f32 0.0, %v3769
        %v3771 = vpop.f32.mrf.mxu0
        %v3772 = vadd.f32 0.0, %v3771
        %3773 = vmatmul.bf16.gmra.mxu0 %v3320
        %v3774 = vpop.f32.mrf.mxu0
        %v3775 = vadd.f32 0.0, %v3774
        %v3776 = vpop.f32.mrf.mxu0
        %v3777 = vadd.f32 0.0, %v3776
        %3778 = vmatmul.bf16.gmra.mxu0 %v3322
        %v3779 = vpop.f32.mrf.mxu0
        %v3780 = vadd.f32 0.0, %v3779
        %v3781 = vpop.f32.mrf.mxu0
        %v3782 = vadd.f32 0.0, %v3781
        %3783 = vdwg.mxu0
        %3784 = vmatpush.bf16.msra.mxu0 %v3484
        %3785 = vmatpush.bf16.msra.mxu0 %v3482
        %3786 = vmatpush.bf16.msra.mxu0 %v3480
        %3787 = vmatpush.bf16.msra.mxu0 %v3478
        %3788 = vmatpush.bf16.msra.mxu0 %v3476
        %3789 = vmatpush.bf16.msra.mxu0 %v3474
        %3790 = vmatpush.bf16.msra.mxu0 %v3472
        %3791 = vmatpush.bf16.msra.mxu0 %v3470
        %3792 = vmatmul.bf16.gmra.mxu0 %v3293
        %v3793 = vpop.f32.mrf.mxu0
        %v3794 = vadd.f32 %v3705, %v3793
        %v3795 = vpop.f32.mrf.mxu0
        %v3796 = vadd.f32 %v3707, %v3795
        %3797 = vmatmul.bf16.gmra.mxu0 %v3295
        %v3798 = vpop.f32.mrf.mxu0
        %v3799 = vadd.f32 %v3710, %v3798
        %v3800 = vpop.f32.mrf.mxu0
        %v3801 = vadd.f32 %v3712, %v3800
        %3802 = vmatmul.bf16.gmra.mxu0 %v3297
        %v3803 = vpop.f32.mrf.mxu0
        %v3804 = vadd.f32 %v3715, %v3803
        %v3805 = vpop.f32.mrf.mxu0
        %v3806 = vadd.f32 %v3717, %v3805
        %3807 = vmatmul.bf16.gmra.mxu0 %v3299
        %v3808 = vpop.f32.mrf.mxu0
        %v3809 = vadd.f32 %v3720, %v3808
        %v3810 = vpop.f32.mrf.mxu0
        %v3811 = vadd.f32 %v3722, %v3810
        %3812 = vmatmul.bf16.gmra.mxu0 %v3301
        %v3813 = vpop.f32.mrf.mxu0
        %v3814 = vadd.f32 %v3725, %v3813
        %v3815 = vpop.f32.mrf.mxu0
        %v3816 = vadd.f32 %v3727, %v3815
        %3817 = vmatmul.bf16.gmra.mxu0 %v3303
        %v3818 = vpop.f32.mrf.mxu0
        %v3819 = vadd.f32 %v3730, %v3818
        %v3820 = vpop.f32.mrf.mxu0
        %v3821 = vadd.f32 %v3732, %v3820
        %3822 = vmatmul.bf16.gmra.mxu0 %v3305
        %v3823 = vpop.f32.mrf.mxu0
        %v3824 = vadd.f32 %v3735, %v3823
        %v3825 = vpop.f32.mrf.mxu0
        %v3826 = vadd.f32 %v3737, %v3825
        %3827 = vmatmul.bf16.gmra.mxu0 %v3307
        %v3828 = vpop.f32.mrf.mxu0
        %v3829 = vadd.f32 %v3740, %v3828
        %v3830 = vpop.f32.mrf.mxu0
        %v3831 = vadd.f32 %v3742, %v3830
        %3832 = vmatmul.bf16.gmra.mxu0 %v3309
        %v3833 = vpop.f32.mrf.mxu0
        %v3834 = vadd.f32 %v3745, %v3833
        %v3835 = vpop.f32.mrf.mxu0
        %v3836 = vadd.f32 %v3747, %v3835
        %3837 = vmatmul.bf16.gmra.mxu0 %v3311
        %v3838 = vpop.f32.mrf.mxu0
        %v3839 = vadd.f32 %v3750, %v3838
        %v3840 = vpop.f32.mrf.mxu0
        %v3841 = vadd.f32 %v3752, %v3840
        %3842 = vmatmul.bf16.gmra.mxu0 %v3313
        %v3843 = vpop.f32.mrf.mxu0
        %v3844 = vadd.f32 %v3755, %v3843
        %v3845 = vpop.f32.mrf.mxu0
        %v3846 = vadd.f32 %v3757, %v3845
        %3847 = vmatmul.bf16.gmra.mxu0 %v3315
        %v3848 = vpop.f32.mrf.mxu0
        %v3849 = vadd.f32 %v3760, %v3848
        %v3850 = vpop.f32.mrf.mxu0
        %v3851 = vadd.f32 %v3762, %v3850
        %3852 = vmatmul.bf16.gmra.mxu0 %v3317
        %v3853 = vpop.f32.mrf.mxu0
        %v3854 = vadd.f32 %v3765, %v3853
        %v3855 = vpop.f32.mrf.mxu0
        %v3856 = vadd.f32 %v3767, %v3855
        %3857 = vmatmul.bf16.gmra.mxu0 %v3319
        %v3858 = vpop.f32.mrf.mxu0
        %v3859 = vadd.f32 %v3770, %v3858
        %v3860 = vpop.f32.mrf.mxu0
        %v3861 = vadd.f32 %v3772, %v3860
        %3862 = vmatmul.bf16.gmra.mxu0 %v3321
        %v3863 = vpop.f32.mrf.mxu0
        %v3864 = vadd.f32 %v3775, %v3863
        %v3865 = vpop.f32.mrf.mxu0
        %v3866 = vadd.f32 %v3777, %v3865
        %3867 = vmatmul.bf16.gmra.mxu0 %v3323
        %v3868 = vpop.f32.mrf.mxu0
        %v3869 = vadd.f32 %v3780, %v3868
        %v3870 = vpop.f32.mrf.mxu0
        %v3871 = vadd.f32 %v3782, %v3870
        %3872 = vdwg.mxu0
        %v3889 = vunpack.c.l.b16 %v3276
        %v3890 = vunpack.c.h.b16 %v3276
        %v3891 = vunpack.c.l.b16 %v3277
        %v3892 = vunpack.c.h.b16 %v3277
        %v3893 = vunpack.c.l.b16 %v3278
        %v3894 = vunpack.c.h.b16 %v3278
        %v3895 = vunpack.c.l.b16 %v3279
        %v3896 = vunpack.c.h.b16 %v3279
        %v3897 = vunpack.c.l.b16 %v3280
        %v3898 = vunpack.c.h.b16 %v3280
        %v3899 = vunpack.c.l.b16 %v3281
        %v3900 = vunpack.c.h.b16 %v3281
        %v3901 = vunpack.c.l.b16 %v3282
        %v3902 = vunpack.c.h.b16 %v3282
        %v3903 = vunpack.c.l.b16 %v3283
        %v3904 = vunpack.c.h.b16 %v3283
        %v3905 = vunpack.c.l.b16 %v3284
        %v3906 = vunpack.c.h.b16 %v3284
        %v3907 = vunpack.c.l.b16 %v3285
        %v3908 = vunpack.c.h.b16 %v3285
        %v3909 = vunpack.c.l.b16 %v3286
        %v3910 = vunpack.c.h.b16 %v3286
        %v3911 = vunpack.c.l.b16 %v3287
        %v3912 = vunpack.c.h.b16 %v3287
        %v3913 = vunpack.c.l.b16 %v3288
        %v3914 = vunpack.c.h.b16 %v3288
        %v3915 = vunpack.c.l.b16 %v3289
        %v3916 = vunpack.c.h.b16 %v3289
        %v3917 = vunpack.c.l.b16 %v3290
        %v3918 = vunpack.c.h.b16 %v3290
        %v3919 = vunpack.c.l.b16 %v3291
        %v3920 = vunpack.c.h.b16 %v3291
        %v3921 = vpack.c.b16 %v3891, %v3889
        %v3922 = vpack.c.b16 %v3892, %v3890
        %v3923 = vpack.c.b16 %v3895, %v3893
        %v3924 = vpack.c.b16 %v3896, %v3894
        %v3925 = vpack.c.b16 %v3899, %v3897
        %v3926 = vpack.c.b16 %v3900, %v3898
        %v3927 = vpack.c.b16 %v3903, %v3901
        %v3928 = vpack.c.b16 %v3904, %v3902
        %v3929 = vpack.c.b16 %v3907, %v3905
        %v3930 = vpack.c.b16 %v3908, %v3906
        %v3931 = vpack.c.b16 %v3911, %v3909
        %v3932 = vpack.c.b16 %v3912, %v3910
        %v3933 = vpack.c.b16 %v3915, %v3913
        %v3934 = vpack.c.b16 %v3916, %v3914
        %v3935 = vpack.c.b16 %v3919, %v3917
        %v3936 = vpack.c.b16 %v3920, %v3918
        %3953 = vmatpush.bf16.msra.mxu0 %v3935
        %3954 = vmatpush.bf16.msra.mxu0 %v3933
        %3955 = vmatpush.bf16.msra.mxu0 %v3931
        %3956 = vmatpush.bf16.msra.mxu0 %v3929
        %3957 = vmatpush.bf16.msra.mxu0 %v3927
        %3958 = vmatpush.bf16.msra.mxu0 %v3925
        %3959 = vmatpush.bf16.msra.mxu0 %v3923
        %3960 = vmatpush.bf16.msra.mxu0 %v3921
        %3961 = vmatmul.bf16.gmra.mxu0 %v308
        %v3962 = vpop.f32.mrf.mxu0
        %v3963 = vadd.f32 %v3616, %v3962
        %v3964 = vpop.f32.mrf.mxu0
        %v3965 = vadd.f32 %v3618, %v3964
        %3966 = vmatmul.bf16.gmra.mxu0 %v309
        %v3967 = vpop.f32.mrf.mxu0
        %v3968 = vadd.f32 %v3621, %v3967
        %v3969 = vpop.f32.mrf.mxu0
        %v3970 = vadd.f32 %v3623, %v3969
        %3971 = vmatmul.bf16.gmra.mxu0 %v310
        %v3972 = vpop.f32.mrf.mxu0
        %v3973 = vadd.f32 %v3626, %v3972
        %v3974 = vpop.f32.mrf.mxu0
        %v3975 = vadd.f32 %v3628, %v3974
        %3976 = vmatmul.bf16.gmra.mxu0 %v311
        %v3977 = vpop.f32.mrf.mxu0
        %v3978 = vadd.f32 %v3631, %v3977
        %v3979 = vpop.f32.mrf.mxu0
        %v3980 = vadd.f32 %v3633, %v3979
        %3981 = vmatmul.bf16.gmra.mxu0 %v312
        %v3982 = vpop.f32.mrf.mxu0
        %v3983 = vadd.f32 %v3636, %v3982
        %v3984 = vpop.f32.mrf.mxu0
        %v3985 = vadd.f32 %v3638, %v3984
        %3986 = vmatmul.bf16.gmra.mxu0 %v313
        %v3987 = vpop.f32.mrf.mxu0
        %v3988 = vadd.f32 %v3641, %v3987
        %v3989 = vpop.f32.mrf.mxu0
        %v3990 = vadd.f32 %v3643, %v3989
        %3991 = vmatmul.bf16.gmra.mxu0 %v314
        %v3992 = vpop.f32.mrf.mxu0
        %v3993 = vadd.f32 %v3646, %v3992
        %v3994 = vpop.f32.mrf.mxu0
        %v3995 = vadd.f32 %v3648, %v3994
        %3996 = vmatmul.bf16.gmra.mxu0 %v315
        %v3997 = vpop.f32.mrf.mxu0
        %v3998 = vadd.f32 %v3651, %v3997
        %v3999 = vpop.f32.mrf.mxu0
        %v4000 = vadd.f32 %v3653, %v3999
        %4001 = vmatmul.bf16.gmra.mxu0 %v316
        %v4002 = vpop.f32.mrf.mxu0
        %v4003 = vadd.f32 %v3656, %v4002
        %v4004 = vpop.f32.mrf.mxu0
        %v4005 = vadd.f32 %v3658, %v4004
        %4006 = vmatmul.bf16.gmra.mxu0 %v317
        %v4007 = vpop.f32.mrf.mxu0
        %v4008 = vadd.f32 %v3661, %v4007
        %v4009 = vpop.f32.mrf.mxu0
        %v4010 = vadd.f32 %v3663, %v4009
        %4011 = vmatmul.bf16.gmra.mxu0 %v318
        %v4012 = vpop.f32.mrf.mxu0
        %v4013 = vadd.f32 %v3666, %v4012
        %v4014 = vpop.f32.mrf.mxu0
        %v4015 = vadd.f32 %v3668, %v4014
        %4016 = vmatmul.bf16.gmra.mxu0 %v319
        %v4017 = vpop.f32.mrf.mxu0
        %v4018 = vadd.f32 %v3671, %v4017
        %v4019 = vpop.f32.mrf.mxu0
        %v4020 = vadd.f32 %v3673, %v4019
        %4021 = vmatmul.bf16.gmra.mxu0 %v320
        %v4022 = vpop.f32.mrf.mxu0
        %v4023 = vadd.f32 %v3676, %v4022
        %v4024 = vpop.f32.mrf.mxu0
        %v4025 = vadd.f32 %v3678, %v4024
        %4026 = vmatmul.bf16.gmra.mxu0 %v321
        %v4027 = vpop.f32.mrf.mxu0
        %v4028 = vadd.f32 %v3681, %v4027
        %v4029 = vpop.f32.mrf.mxu0
        %v4030 = vadd.f32 %v3683, %v4029
        %4031 = vmatmul.bf16.gmra.mxu0 %v322
        %v4032 = vpop.f32.mrf.mxu0
        %v4033 = vadd.f32 %v3686, %v4032
        %v4034 = vpop.f32.mrf.mxu0
        %v4035 = vadd.f32 %v3688, %v4034
        %4036 = vmatmul.bf16.gmra.mxu0 %v323
        %v4037 = vpop.f32.mrf.mxu0
        %v4038 = vadd.f32 %v3691, %v4037
        %v4039 = vpop.f32.mrf.mxu0
        %v4040 = vadd.f32 %v3693, %v4039
        %4041 = vdwg.mxu0
        %4042 = vmatpush.bf16.msra.mxu0 %v3936
        %4043 = vmatpush.bf16.msra.mxu0 %v3934
        %4044 = vmatpush.bf16.msra.mxu0 %v3932
        %4045 = vmatpush.bf16.msra.mxu0 %v3930
        %4046 = vmatpush.bf16.msra.mxu0 %v3928
        %4047 = vmatpush.bf16.msra.mxu0 %v3926
        %4048 = vmatpush.bf16.msra.mxu0 %v3924
        %4049 = vmatpush.bf16.msra.mxu0 %v3922
        %4050 = vmatmul.bf16.gmra.mxu0 %v308
        %v4051 = vpop.f32.mrf.mxu0
        %v4052 = vadd.f32 %v3794, %v4051
        %v4053 = vpop.f32.mrf.mxu0
        %v4054 = vadd.f32 %v3796, %v4053
        %4055 = vmatmul.bf16.gmra.mxu0 %v309
        %v4056 = vpop.f32.mrf.mxu0
        %v4057 = vadd.f32 %v3799, %v4056
        %v4058 = vpop.f32.mrf.mxu0
        %v4059 = vadd.f32 %v3801, %v4058
        %4060 = vmatmul.bf16.gmra.mxu0 %v310
        %v4061 = vpop.f32.mrf.mxu0
        %v4062 = vadd.f32 %v3804, %v4061
        %v4063 = vpop.f32.mrf.mxu0
        %v4064 = vadd.f32 %v3806, %v4063
        %4065 = vmatmul.bf16.gmra.mxu0 %v311
        %v4066 = vpop.f32.mrf.mxu0
        %v4067 = vadd.f32 %v3809, %v4066
        %v4068 = vpop.f32.mrf.mxu0
        %v4069 = vadd.f32 %v3811, %v4068
        %4070 = vmatmul.bf16.gmra.mxu0 %v312
        %v4071 = vpop.f32.mrf.mxu0
        %v4072 = vadd.f32 %v3814, %v4071
        %v4073 = vpop.f32.mrf.mxu0
        %v4074 = vadd.f32 %v3816, %v4073
        %4075 = vmatmul.bf16.gmra.mxu0 %v313
        %v4076 = vpop.f32.mrf.mxu0
        %v4077 = vadd.f32 %v3819, %v4076
        %v4078 = vpop.f32.mrf.mxu0
        %v4079 = vadd.f32 %v3821, %v4078
        %4080 = vmatmul.bf16.gmra.mxu0 %v314
        %v4081 = vpop.f32.mrf.mxu0
        %v4082 = vadd.f32 %v3824, %v4081
        %v4083 = vpop.f32.mrf.mxu0
        %v4084 = vadd.f32 %v3826, %v4083
        %4085 = vmatmul.bf16.gmra.mxu0 %v315
        %v4086 = vpop.f32.mrf.mxu0
        %v4087 = vadd.f32 %v3829, %v4086
        %v4088 = vpop.f32.mrf.mxu0
        %v4089 = vadd.f32 %v3831, %v4088
        %4090 = vmatmul.bf16.gmra.mxu0 %v316
        %v4091 = vpop.f32.mrf.mxu0
        %v4092 = vadd.f32 %v3834, %v4091
        %v4093 = vpop.f32.mrf.mxu0
        %v4094 = vadd.f32 %v3836, %v4093
        %4095 = vmatmul.bf16.gmra.mxu0 %v317
        %v4096 = vpop.f32.mrf.mxu0
        %v4097 = vadd.f32 %v3839, %v4096
        %v4098 = vpop.f32.mrf.mxu0
        %v4099 = vadd.f32 %v3841, %v4098
        %4100 = vmatmul.bf16.gmra.mxu0 %v318
        %v4101 = vpop.f32.mrf.mxu0
        %v4102 = vadd.f32 %v3844, %v4101
        %v4103 = vpop.f32.mrf.mxu0
        %v4104 = vadd.f32 %v3846, %v4103
        %4105 = vmatmul.bf16.gmra.mxu0 %v319
        %v4106 = vpop.f32.mrf.mxu0
        %v4107 = vadd.f32 %v3849, %v4106
        %v4108 = vpop.f32.mrf.mxu0
        %v4109 = vadd.f32 %v3851, %v4108
        %4110 = vmatmul.bf16.gmra.mxu0 %v320
        %v4111 = vpop.f32.mrf.mxu0
        %v4112 = vadd.f32 %v3854, %v4111
        %v4113 = vpop.f32.mrf.mxu0
        %v4114 = vadd.f32 %v3856, %v4113
        %4115 = vmatmul.bf16.gmra.mxu0 %v321
        %v4116 = vpop.f32.mrf.mxu0
        %v4117 = vadd.f32 %v3859, %v4116
        %v4118 = vpop.f32.mrf.mxu0
        %v4119 = vadd.f32 %v3861, %v4118
        %4120 = vmatmul.bf16.gmra.mxu0 %v322
        %v4121 = vpop.f32.mrf.mxu0
        %v4122 = vadd.f32 %v3864, %v4121
        %v4123 = vpop.f32.mrf.mxu0
        %v4124 = vadd.f32 %v3866, %v4123
        %4125 = vmatmul.bf16.gmra.mxu0 %v323
        %v4126 = vpop.f32.mrf.mxu0
        %v4127 = vadd.f32 %v3869, %v4126
        %v4128 = vpop.f32.mrf.mxu0
        %v4129 = vadd.f32 %v3871, %v4128
        %4130 = vdwg.mxu0
        %s4131 = scalar_lea.vmem %s3, 5
        %v4132 = vld [vmem:[%s4131] ss:$8 sm:$0x3]
        %v4134 = vperm.slane %v4132, 0
        %v4135 = vperm.slane %v4132, 1
        %v4138 = vadd.f32 %v3963, %v4134
        %v4139 = vadd.f32 %v4052, %v4135
        %v4140 = vadd.f32 %v3965, %v4134
        %v4141 = vadd.f32 %v4054, %v4135
        %v4142 = vadd.f32 %v3968, %v4134
        %v4143 = vadd.f32 %v4057, %v4135
        %v4144 = vadd.f32 %v3970, %v4134
        %v4145 = vadd.f32 %v4059, %v4135
        %v4146 = vadd.f32 %v3973, %v4134
        %v4147 = vadd.f32 %v4062, %v4135
        %v4148 = vadd.f32 %v3975, %v4134
        %v4149 = vadd.f32 %v4064, %v4135
        %v4150 = vadd.f32 %v3978, %v4134
        %v4151 = vadd.f32 %v4067, %v4135
        %v4152 = vadd.f32 %v3980, %v4134
        %v4153 = vadd.f32 %v4069, %v4135
        %v4154 = vadd.f32 %v3983, %v4134
        %v4155 = vadd.f32 %v4072, %v4135
        %v4156 = vadd.f32 %v3985, %v4134
        %v4157 = vadd.f32 %v4074, %v4135
        %v4158 = vadd.f32 %v3988, %v4134
        %v4159 = vadd.f32 %v4077, %v4135
        %v4160 = vadd.f32 %v3990, %v4134
        %v4161 = vadd.f32 %v4079, %v4135
        %v4162 = vadd.f32 %v3993, %v4134
        %v4163 = vadd.f32 %v4082, %v4135
        %v4164 = vadd.f32 %v3995, %v4134
        %v4165 = vadd.f32 %v4084, %v4135
        %v4166 = vadd.f32 %v3998, %v4134
        %v4167 = vadd.f32 %v4087, %v4135
        %v4168 = vadd.f32 %v4000, %v4134
        %v4169 = vadd.f32 %v4089, %v4135
        %v4170 = vadd.f32 %v4003, %v4134
        %v4171 = vadd.f32 %v4092, %v4135
        %v4172 = vadd.f32 %v4005, %v4134
        %v4173 = vadd.f32 %v4094, %v4135
        %v4174 = vadd.f32 %v4008, %v4134
        %v4175 = vadd.f32 %v4097, %v4135
        %v4176 = vadd.f32 %v4010, %v4134
        %v4177 = vadd.f32 %v4099, %v4135
        %v4178 = vadd.f32 %v4013, %v4134
        %v4179 = vadd.f32 %v4102, %v4135
        %v4180 = vadd.f32 %v4015, %v4134
        %v4181 = vadd.f32 %v4104, %v4135
        %v4182 = vadd.f32 %v4018, %v4134
        %v4183 = vadd.f32 %v4107, %v4135
        %v4184 = vadd.f32 %v4020, %v4134
        %v4185 = vadd.f32 %v4109, %v4135
        %v4186 = vadd.f32 %v4023, %v4134
        %v4187 = vadd.f32 %v4112, %v4135
        %v4188 = vadd.f32 %v4025, %v4134
        %v4189 = vadd.f32 %v4114, %v4135
        %v4190 = vadd.f32 %v4028, %v4134
        %v4191 = vadd.f32 %v4117, %v4135
        %v4192 = vadd.f32 %v4030, %v4134
        %v4193 = vadd.f32 %v4119, %v4135
        %v4194 = vadd.f32 %v4033, %v4134
        %v4195 = vadd.f32 %v4122, %v4135
        %v4196 = vadd.f32 %v4035, %v4134
        %v4197 = vadd.f32 %v4124, %v4135
        %v4198 = vadd.f32 %v4038, %v4134
        %v4199 = vadd.f32 %v4127, %v4135
        %v4200 = vadd.f32 %v4040, %v4134
        %v4201 = vadd.f32 %v4129, %v4135
        %v4202 = vmax.f32 %v4138, 0.0
        %v4203 = vmax.f32 %v4139, 0.0
        %v4204 = vmax.f32 %v4140, 0.0
        %v4205 = vmax.f32 %v4141, 0.0
        %v4206 = vmax.f32 %v4142, 0.0
        %v4207 = vmax.f32 %v4143, 0.0
        %v4208 = vmax.f32 %v4144, 0.0
        %v4209 = vmax.f32 %v4145, 0.0
        %v4210 = vmax.f32 %v4146, 0.0
        %v4211 = vmax.f32 %v4147, 0.0
        %v4212 = vmax.f32 %v4148, 0.0
        %v4213 = vmax.f32 %v4149, 0.0
        %v4214 = vmax.f32 %v4150, 0.0
        %v4215 = vmax.f32 %v4151, 0.0
        %v4216 = vmax.f32 %v4152, 0.0
        %v4217 = vmax.f32 %v4153, 0.0
        %v4218 = vmax.f32 %v4154, 0.0
        %v4219 = vmax.f32 %v4155, 0.0
        %v4220 = vmax.f32 %v4156, 0.0
        %v4221 = vmax.f32 %v4157, 0.0
        %v4222 = vmax.f32 %v4158, 0.0
        %v4223 = vmax.f32 %v4159, 0.0
        %v4224 = vmax.f32 %v4160, 0.0
        %v4225 = vmax.f32 %v4161, 0.0
        %v4226 = vmax.f32 %v4162, 0.0
        %v4227 = vmax.f32 %v4163, 0.0
        %v4228 = vmax.f32 %v4164, 0.0
        %v4229 = vmax.f32 %v4165, 0.0
        %v4230 = vmax.f32 %v4166, 0.0
        %v4231 = vmax.f32 %v4167, 0.0
        %v4232 = vmax.f32 %v4168, 0.0
        %v4233 = vmax.f32 %v4169, 0.0
        %v4234 = vmax.f32 %v4170, 0.0
        %v4235 = vmax.f32 %v4171, 0.0
        %v4236 = vmax.f32 %v4172, 0.0
        %v4237 = vmax.f32 %v4173, 0.0
        %v4238 = vmax.f32 %v4174, 0.0
        %v4239 = vmax.f32 %v4175, 0.0
        %v4240 = vmax.f32 %v4176, 0.0
        %v4241 = vmax.f32 %v4177, 0.0
        %v4242 = vmax.f32 %v4178, 0.0
        %v4243 = vmax.f32 %v4179, 0.0
        %v4244 = vmax.f32 %v4180, 0.0
        %v4245 = vmax.f32 %v4181, 0.0
        %v4246 = vmax.f32 %v4182, 0.0
        %v4247 = vmax.f32 %v4183, 0.0
        %v4248 = vmax.f32 %v4184, 0.0
        %v4249 = vmax.f32 %v4185, 0.0
        %v4250 = vmax.f32 %v4186, 0.0
        %v4251 = vmax.f32 %v4187, 0.0
        %v4252 = vmax.f32 %v4188, 0.0
        %v4253 = vmax.f32 %v4189, 0.0
        %v4254 = vmax.f32 %v4190, 0.0
        %v4255 = vmax.f32 %v4191, 0.0
        %v4256 = vmax.f32 %v4192, 0.0
        %v4257 = vmax.f32 %v4193, 0.0
        %v4258 = vmax.f32 %v4194, 0.0
        %v4259 = vmax.f32 %v4195, 0.0
        %v4260 = vmax.f32 %v4196, 0.0
        %v4261 = vmax.f32 %v4197, 0.0
        %v4262 = vmax.f32 %v4198, 0.0
        %v4263 = vmax.f32 %v4199, 0.0
        %v4264 = vmax.f32 %v4200, 0.0
        %v4265 = vmax.f32 %v4201, 0.0
        %v4266 = vpack.c.bf16 %v4204, %v4202
        %v4267 = vpack.c.bf16 %v4205, %v4203
        %v4268 = vpack.c.bf16 %v4208, %v4206
        %v4269 = vpack.c.bf16 %v4209, %v4207
        %v4270 = vpack.c.bf16 %v4212, %v4210
        %v4271 = vpack.c.bf16 %v4213, %v4211
        %v4272 = vpack.c.bf16 %v4216, %v4214
        %v4273 = vpack.c.bf16 %v4217, %v4215
        %v4274 = vpack.c.bf16 %v4220, %v4218
        %v4275 = vpack.c.bf16 %v4221, %v4219
        %v4276 = vpack.c.bf16 %v4224, %v4222
        %v4277 = vpack.c.bf16 %v4225, %v4223
        %v4278 = vpack.c.bf16 %v4228, %v4226
        %v4279 = vpack.c.bf16 %v4229, %v4227
        %v4280 = vpack.c.bf16 %v4232, %v4230
        %v4281 = vpack.c.bf16 %v4233, %v4231
        %v4282 = vpack.c.bf16 %v4236, %v4234
        %v4283 = vpack.c.bf16 %v4237, %v4235
        %v4284 = vpack.c.bf16 %v4240, %v4238
        %v4285 = vpack.c.bf16 %v4241, %v4239
        %v4286 = vpack.c.bf16 %v4244, %v4242
        %v4287 = vpack.c.bf16 %v4245, %v4243
        %v4288 = vpack.c.bf16 %v4248, %v4246
        %v4289 = vpack.c.bf16 %v4249, %v4247
        %v4290 = vpack.c.bf16 %v4252, %v4250
        %v4291 = vpack.c.bf16 %v4253, %v4251
        %v4292 = vpack.c.bf16 %v4256, %v4254
        %v4293 = vpack.c.bf16 %v4257, %v4255
        %v4294 = vpack.c.bf16 %v4260, %v4258
        %v4295 = vpack.c.bf16 %v4261, %v4259
        %v4296 = vpack.c.bf16 %v4264, %v4262
        %v4297 = vpack.c.bf16 %v4265, %v4263
        %s4298 = scalar_lea.vmem %s2, 1280
        %v4299 = vld [vmem:[%s4298] sm:$0xff]
        %v4300 = vld [vmem:[%s4298 + $0x8] sm:$0xff]
        %v4301 = vld [vmem:[%s4298 + $0x10] sm:$0xff]
        %v4302 = vld [vmem:[%s4298 + $0x18] sm:$0xff]
        %v4303 = vld [vmem:[%s4298 + $0x20] sm:$0xff]
        %v4304 = vld [vmem:[%s4298 + $0x28] sm:$0xff]
        %v4305 = vld [vmem:[%s4298 + $0x30] sm:$0xff]
        %v4306 = vld [vmem:[%s4298 + $0x38] sm:$0xff]
        %v4307 = vld [vmem:[%s4298 + $0x40] sm:$0xff]
        %v4308 = vld [vmem:[%s4298 + $0x48] sm:$0xff]
        %v4309 = vld [vmem:[%s4298 + $0x50] sm:$0xff]
        %v4310 = vld [vmem:[%s4298 + $0x58] sm:$0xff]
        %v4311 = vld [vmem:[%s4298 + $0x60] sm:$0xff]
        %v4312 = vld [vmem:[%s4298 + $0x68] sm:$0xff]
        %v4313 = vld [vmem:[%s4298 + $0x70] sm:$0xff]
        %v4314 = vld [vmem:[%s4298 + $0x78] sm:$0xff]
        %v4315 = vld [vmem:[%s4298 + $0x80] sm:$0xff]
        %v4316 = vld [vmem:[%s4298 + $0x88] sm:$0xff]
        %v4317 = vld [vmem:[%s4298 + $0x90] sm:$0xff]
        %v4318 = vld [vmem:[%s4298 + $0x98] sm:$0xff]
        %v4319 = vld [vmem:[%s4298 + $0xa0] sm:$0xff]
        %v4320 = vld [vmem:[%s4298 + $0xa8] sm:$0xff]
        %v4321 = vld [vmem:[%s4298 + $0xb0] sm:$0xff]
        %v4322 = vld [vmem:[%s4298 + $0xb8] sm:$0xff]
        %v4323 = vld [vmem:[%s4298 + $0xc0] sm:$0xff]
        %v4324 = vld [vmem:[%s4298 + $0xc8] sm:$0xff]
        %v4325 = vld [vmem:[%s4298 + $0xd0] sm:$0xff]
        %v4326 = vld [vmem:[%s4298 + $0xd8] sm:$0xff]
        %v4327 = vld [vmem:[%s4298 + $0xe0] sm:$0xff]
        %v4328 = vld [vmem:[%s4298 + $0xe8] sm:$0xff]
        %v4329 = vld [vmem:[%s4298 + $0xf0] sm:$0xff]
        %v4330 = vld [vmem:[%s4298 + $0xf8] sm:$0xff]
        %s4331 = scalar_lea.vmem %s3, 6
        %v4332 = vld [vmem:[%s4331] ss:$8 sm:$0x3]
        %v4334 = vperm.slane %v4332, 0
        %v4335 = vperm.slane %v4332, 1
        %v4370 = vunpack.c.l.b16 %v4299
        %v4371 = vunpack.c.h.b16 %v4299
        %v4372 = vunpack.c.l.b16 %v4300
        %v4373 = vunpack.c.h.b16 %v4300
        %v4374 = vunpack.c.l.b16 %v4301
        %v4375 = vunpack.c.h.b16 %v4301
        %v4376 = vunpack.c.l.b16 %v4302
        %v4377 = vunpack.c.h.b16 %v4302
        %v4378 = vunpack.c.l.b16 %v4303
        %v4379 = vunpack.c.h.b16 %v4303
        %v4380 = vunpack.c.l.b16 %v4304
        %v4381 = vunpack.c.h.b16 %v4304
        %v4382 = vunpack.c.l.b16 %v4305
        %v4383 = vunpack.c.h.b16 %v4305
        %v4384 = vunpack.c.l.b16 %v4306
        %v4385 = vunpack.c.h.b16 %v4306
        %v4386 = vunpack.c.l.b16 %v4307
        %v4387 = vunpack.c.h.b16 %v4307
        %v4388 = vunpack.c.l.b16 %v4308
        %v4389 = vunpack.c.h.b16 %v4308
        %v4390 = vunpack.c.l.b16 %v4309
        %v4391 = vunpack.c.h.b16 %v4309
        %v4392 = vunpack.c.l.b16 %v4310
        %v4393 = vunpack.c.h.b16 %v4310
        %v4394 = vunpack.c.l.b16 %v4311
        %v4395 = vunpack.c.h.b16 %v4311
        %v4396 = vunpack.c.l.b16 %v4312
        %v4397 = vunpack.c.h.b16 %v4312
        %v4398 = vunpack.c.l.b16 %v4313
        %v4399 = vunpack.c.h.b16 %v4313
        %v4400 = vunpack.c.l.b16 %v4314
        %v4401 = vunpack.c.h.b16 %v4314
        %v4402 = vunpack.c.l.b16 %v4315
        %v4403 = vunpack.c.h.b16 %v4315
        %v4404 = vunpack.c.l.b16 %v4316
        %v4405 = vunpack.c.h.b16 %v4316
        %v4406 = vunpack.c.l.b16 %v4317
        %v4407 = vunpack.c.h.b16 %v4317
        %v4408 = vunpack.c.l.b16 %v4318
        %v4409 = vunpack.c.h.b16 %v4318
        %v4410 = vunpack.c.l.b16 %v4319
        %v4411 = vunpack.c.h.b16 %v4319
        %v4412 = vunpack.c.l.b16 %v4320
        %v4413 = vunpack.c.h.b16 %v4320
        %v4414 = vunpack.c.l.b16 %v4321
        %v4415 = vunpack.c.h.b16 %v4321
        %v4416 = vunpack.c.l.b16 %v4322
        %v4417 = vunpack.c.h.b16 %v4322
        %v4418 = vunpack.c.l.b16 %v4323
        %v4419 = vunpack.c.h.b16 %v4323
        %v4420 = vunpack.c.l.b16 %v4324
        %v4421 = vunpack.c.h.b16 %v4324
        %v4422 = vunpack.c.l.b16 %v4325
        %v4423 = vunpack.c.h.b16 %v4325
        %v4424 = vunpack.c.l.b16 %v4326
        %v4425 = vunpack.c.h.b16 %v4326
        %v4426 = vunpack.c.l.b16 %v4327
        %v4427 = vunpack.c.h.b16 %v4327
        %v4428 = vunpack.c.l.b16 %v4328
        %v4429 = vunpack.c.h.b16 %v4328
        %v4430 = vunpack.c.l.b16 %v4329
        %v4431 = vunpack.c.h.b16 %v4329
        %v4432 = vunpack.c.l.b16 %v4330
        %v4433 = vunpack.c.h.b16 %v4330
        %v4434 = vpack.c.b16 %v4372, %v4370
        %v4435 = vpack.c.b16 %v4373, %v4371
        %v4436 = vpack.c.b16 %v4376, %v4374
        %v4437 = vpack.c.b16 %v4377, %v4375
        %v4438 = vpack.c.b16 %v4380, %v4378
        %v4439 = vpack.c.b16 %v4381, %v4379
        %v4440 = vpack.c.b16 %v4384, %v4382
        %v4441 = vpack.c.b16 %v4385, %v4383
        %v4442 = vpack.c.b16 %v4388, %v4386
        %v4443 = vpack.c.b16 %v4389, %v4387
        %v4444 = vpack.c.b16 %v4392, %v4390
        %v4445 = vpack.c.b16 %v4393, %v4391
        %v4446 = vpack.c.b16 %v4396, %v4394
        %v4447 = vpack.c.b16 %v4397, %v4395
        %v4448 = vpack.c.b16 %v4400, %v4398
        %v4449 = vpack.c.b16 %v4401, %v4399
        %v4450 = vpack.c.b16 %v4404, %v4402
        %v4451 = vpack.c.b16 %v4405, %v4403
        %v4452 = vpack.c.b16 %v4408, %v4406
        %v4453 = vpack.c.b16 %v4409, %v4407
        %v4454 = vpack.c.b16 %v4412, %v4410
        %v4455 = vpack.c.b16 %v4413, %v4411
        %v4456 = vpack.c.b16 %v4416, %v4414
        %v4457 = vpack.c.b16 %v4417, %v4415
        %v4458 = vpack.c.b16 %v4420, %v4418
        %v4459 = vpack.c.b16 %v4421, %v4419
        %v4460 = vpack.c.b16 %v4424, %v4422
        %v4461 = vpack.c.b16 %v4425, %v4423
        %v4462 = vpack.c.b16 %v4428, %v4426
        %v4463 = vpack.c.b16 %v4429, %v4427
        %v4464 = vpack.c.b16 %v4432, %v4430
        %v4465 = vpack.c.b16 %v4433, %v4431
        %4498 = vmatpush.bf16.msra.mxu0 %v4448
        %4499 = vmatpush.bf16.msra.mxu0 %v4446
        %4500 = vmatpush.bf16.msra.mxu0 %v4444
        %4501 = vmatpush.bf16.msra.mxu0 %v4442
        %4502 = vmatpush.bf16.msra.mxu0 %v4440
        %4503 = vmatpush.bf16.msra.mxu0 %v4438
        %4504 = vmatpush.bf16.msra.mxu0 %v4436
        %4505 = vmatpush.bf16.msra.mxu0 %v4434
        %4506 = vmatmul.bf16.gmra.mxu0 %v4266
        %v4507 = vpop.f32.mrf.mxu0
        %v4508 = vadd.f32 %v4334, %v4507
        %v4509 = vpop.f32.mrf.mxu0
        %v4510 = vadd.f32 %v4334, %v4509
        %4511 = vmatmul.bf16.gmra.mxu0 %v4268
        %v4512 = vpop.f32.mrf.mxu0
        %v4513 = vadd.f32 %v4334, %v4512
        %v4514 = vpop.f32.mrf.mxu0
        %v4515 = vadd.f32 %v4334, %v4514
        %4516 = vmatmul.bf16.gmra.mxu0 %v4270
        %v4517 = vpop.f32.mrf.mxu0
        %v4518 = vadd.f32 %v4334, %v4517
        %v4519 = vpop.f32.mrf.mxu0
        %v4520 = vadd.f32 %v4334, %v4519
        %4521 = vmatmul.bf16.gmra.mxu0 %v4272
        %v4522 = vpop.f32.mrf.mxu0
        %v4523 = vadd.f32 %v4334, %v4522
        %v4524 = vpop.f32.mrf.mxu0
        %v4525 = vadd.f32 %v4334, %v4524
        %4526 = vmatmul.bf16.gmra.mxu0 %v4274
        %v4527 = vpop.f32.mrf.mxu0
        %v4528 = vadd.f32 %v4334, %v4527
        %v4529 = vpop.f32.mrf.mxu0
        %v4530 = vadd.f32 %v4334, %v4529
        %4531 = vmatmul.bf16.gmra.mxu0 %v4276
        %v4532 = vpop.f32.mrf.mxu0
        %v4533 = vadd.f32 %v4334, %v4532
        %v4534 = vpop.f32.mrf.mxu0
        %v4535 = vadd.f32 %v4334, %v4534
        %4536 = vmatmul.bf16.gmra.mxu0 %v4278
        %v4537 = vpop.f32.mrf.mxu0
        %v4538 = vadd.f32 %v4334, %v4537
        %v4539 = vpop.f32.mrf.mxu0
        %v4540 = vadd.f32 %v4334, %v4539
        %4541 = vmatmul.bf16.gmra.mxu0 %v4280
        %v4542 = vpop.f32.mrf.mxu0
        %v4543 = vadd.f32 %v4334, %v4542
        %v4544 = vpop.f32.mrf.mxu0
        %v4545 = vadd.f32 %v4334, %v4544
        %4546 = vmatmul.bf16.gmra.mxu0 %v4282
        %v4547 = vpop.f32.mrf.mxu0
        %v4548 = vadd.f32 %v4334, %v4547
        %v4549 = vpop.f32.mrf.mxu0
        %v4550 = vadd.f32 %v4334, %v4549
        %4551 = vmatmul.bf16.gmra.mxu0 %v4284
        %v4552 = vpop.f32.mrf.mxu0
        %v4553 = vadd.f32 %v4334, %v4552
        %v4554 = vpop.f32.mrf.mxu0
        %v4555 = vadd.f32 %v4334, %v4554
        %4556 = vmatmul.bf16.gmra.mxu0 %v4286
        %v4557 = vpop.f32.mrf.mxu0
        %v4558 = vadd.f32 %v4334, %v4557
        %v4559 = vpop.f32.mrf.mxu0
        %v4560 = vadd.f32 %v4334, %v4559
        %4561 = vmatmul.bf16.gmra.mxu0 %v4288
        %v4562 = vpop.f32.mrf.mxu0
        %v4563 = vadd.f32 %v4334, %v4562
        %v4564 = vpop.f32.mrf.mxu0
        %v4565 = vadd.f32 %v4334, %v4564
        %4566 = vmatmul.bf16.gmra.mxu0 %v4290
        %v4567 = vpop.f32.mrf.mxu0
        %v4568 = vadd.f32 %v4334, %v4567
        %v4569 = vpop.f32.mrf.mxu0
        %v4570 = vadd.f32 %v4334, %v4569
        %4571 = vmatmul.bf16.gmra.mxu0 %v4292
        %v4572 = vpop.f32.mrf.mxu0
        %v4573 = vadd.f32 %v4334, %v4572
        %v4574 = vpop.f32.mrf.mxu0
        %v4575 = vadd.f32 %v4334, %v4574
        %4576 = vmatmul.bf16.gmra.mxu0 %v4294
        %v4577 = vpop.f32.mrf.mxu0
        %v4578 = vadd.f32 %v4334, %v4577
        %v4579 = vpop.f32.mrf.mxu0
        %v4580 = vadd.f32 %v4334, %v4579
        %4581 = vmatmul.bf16.gmra.mxu0 %v4296
        %v4582 = vpop.f32.mrf.mxu0
        %v4583 = vadd.f32 %v4334, %v4582
        %v4584 = vpop.f32.mrf.mxu0
        %v4585 = vadd.f32 %v4334, %v4584
        %4586 = vdwg.mxu0
        %4587 = vmatpush.bf16.msra.mxu0 %v4464
        %4588 = vmatpush.bf16.msra.mxu0 %v4462
        %4589 = vmatpush.bf16.msra.mxu0 %v4460
        %4590 = vmatpush.bf16.msra.mxu0 %v4458
        %4591 = vmatpush.bf16.msra.mxu0 %v4456
        %4592 = vmatpush.bf16.msra.mxu0 %v4454
        %4593 = vmatpush.bf16.msra.mxu0 %v4452
        %4594 = vmatpush.bf16.msra.mxu0 %v4450
        %4595 = vmatmul.bf16.gmra.mxu0 %v4267
        %v4596 = vpop.f32.mrf.mxu0
        %v4597 = vadd.f32 %v4508, %v4596
        %v4598 = vpop.f32.mrf.mxu0
        %v4599 = vadd.f32 %v4510, %v4598
        %4600 = vmatmul.bf16.gmra.mxu0 %v4269
        %v4601 = vpop.f32.mrf.mxu0
        %v4602 = vadd.f32 %v4513, %v4601
        %v4603 = vpop.f32.mrf.mxu0
        %v4604 = vadd.f32 %v4515, %v4603
        %4605 = vmatmul.bf16.gmra.mxu0 %v4271
        %v4606 = vpop.f32.mrf.mxu0
        %v4607 = vadd.f32 %v4518, %v4606
        %v4608 = vpop.f32.mrf.mxu0
        %v4609 = vadd.f32 %v4520, %v4608
        %4610 = vmatmul.bf16.gmra.mxu0 %v4273
        %v4611 = vpop.f32.mrf.mxu0
        %v4612 = vadd.f32 %v4523, %v4611
        %v4613 = vpop.f32.mrf.mxu0
        %v4614 = vadd.f32 %v4525, %v4613
        %4615 = vmatmul.bf16.gmra.mxu0 %v4275
        %v4616 = vpop.f32.mrf.mxu0
        %v4617 = vadd.f32 %v4528, %v4616
        %v4618 = vpop.f32.mrf.mxu0
        %v4619 = vadd.f32 %v4530, %v4618
        %4620 = vmatmul.bf16.gmra.mxu0 %v4277
        %v4621 = vpop.f32.mrf.mxu0
        %v4622 = vadd.f32 %v4533, %v4621
        %v4623 = vpop.f32.mrf.mxu0
        %v4624 = vadd.f32 %v4535, %v4623
        %4625 = vmatmul.bf16.gmra.mxu0 %v4279
        %v4626 = vpop.f32.mrf.mxu0
        %v4627 = vadd.f32 %v4538, %v4626
        %v4628 = vpop.f32.mrf.mxu0
        %v4629 = vadd.f32 %v4540, %v4628
        %4630 = vmatmul.bf16.gmra.mxu0 %v4281
        %v4631 = vpop.f32.mrf.mxu0
        %v4632 = vadd.f32 %v4543, %v4631
        %v4633 = vpop.f32.mrf.mxu0
        %v4634 = vadd.f32 %v4545, %v4633
        %4635 = vmatmul.bf16.gmra.mxu0 %v4283
        %v4636 = vpop.f32.mrf.mxu0
        %v4637 = vadd.f32 %v4548, %v4636
        %v4638 = vpop.f32.mrf.mxu0
        %v4639 = vadd.f32 %v4550, %v4638
        %4640 = vmatmul.bf16.gmra.mxu0 %v4285
        %v4641 = vpop.f32.mrf.mxu0
        %v4642 = vadd.f32 %v4553, %v4641
        %v4643 = vpop.f32.mrf.mxu0
        %v4644 = vadd.f32 %v4555, %v4643
        %4645 = vmatmul.bf16.gmra.mxu0 %v4287
        %v4646 = vpop.f32.mrf.mxu0
        %v4647 = vadd.f32 %v4558, %v4646
        %v4648 = vpop.f32.mrf.mxu0
        %v4649 = vadd.f32 %v4560, %v4648
        %4650 = vmatmul.bf16.gmra.mxu0 %v4289
        %v4651 = vpop.f32.mrf.mxu0
        %v4652 = vadd.f32 %v4563, %v4651
        %v4653 = vpop.f32.mrf.mxu0
        %v4654 = vadd.f32 %v4565, %v4653
        %4655 = vmatmul.bf16.gmra.mxu0 %v4291
        %v4656 = vpop.f32.mrf.mxu0
        %v4657 = vadd.f32 %v4568, %v4656
        %v4658 = vpop.f32.mrf.mxu0
        %v4659 = vadd.f32 %v4570, %v4658
        %4660 = vmatmul.bf16.gmra.mxu0 %v4293
        %v4661 = vpop.f32.mrf.mxu0
        %v4662 = vadd.f32 %v4573, %v4661
        %v4663 = vpop.f32.mrf.mxu0
        %v4664 = vadd.f32 %v4575, %v4663
        %4665 = vmatmul.bf16.gmra.mxu0 %v4295
        %v4666 = vpop.f32.mrf.mxu0
        %v4667 = vadd.f32 %v4578, %v4666
        %v4668 = vpop.f32.mrf.mxu0
        %v4669 = vadd.f32 %v4580, %v4668
        %4670 = vmatmul.bf16.gmra.mxu0 %v4297
        %v4671 = vpop.f32.mrf.mxu0
        %v4672 = vadd.f32 %v4583, %v4671
        %v4673 = vpop.f32.mrf.mxu0
        %v4674 = vadd.f32 %v4585, %v4673
        %4675 = vdwg.mxu0
        %4676 = vmatpush.bf16.msra.mxu0 %v4449
        %4677 = vmatpush.bf16.msra.mxu0 %v4447
        %4678 = vmatpush.bf16.msra.mxu0 %v4445
        %4679 = vmatpush.bf16.msra.mxu0 %v4443
        %4680 = vmatpush.bf16.msra.mxu0 %v4441
        %4681 = vmatpush.bf16.msra.mxu0 %v4439
        %4682 = vmatpush.bf16.msra.mxu0 %v4437
        %4683 = vmatpush.bf16.msra.mxu0 %v4435
        %4684 = vmatmul.bf16.gmra.mxu0 %v4266
        %v4685 = vpop.f32.mrf.mxu0
        %v4686 = vadd.f32 %v4335, %v4685
        %v4687 = vpop.f32.mrf.mxu0
        %v4688 = vadd.f32 %v4335, %v4687
        %4689 = vmatmul.bf16.gmra.mxu0 %v4268
        %v4690 = vpop.f32.mrf.mxu0
        %v4691 = vadd.f32 %v4335, %v4690
        %v4692 = vpop.f32.mrf.mxu0
        %v4693 = vadd.f32 %v4335, %v4692
        %4694 = vmatmul.bf16.gmra.mxu0 %v4270
        %v4695 = vpop.f32.mrf.mxu0
        %v4696 = vadd.f32 %v4335, %v4695
        %v4697 = vpop.f32.mrf.mxu0
        %v4698 = vadd.f32 %v4335, %v4697
        %4699 = vmatmul.bf16.gmra.mxu0 %v4272
        %v4700 = vpop.f32.mrf.mxu0
        %v4701 = vadd.f32 %v4335, %v4700
        %v4702 = vpop.f32.mrf.mxu0
        %v4703 = vadd.f32 %v4335, %v4702
        %4704 = vmatmul.bf16.gmra.mxu0 %v4274
        %v4705 = vpop.f32.mrf.mxu0
        %v4706 = vadd.f32 %v4335, %v4705
        %v4707 = vpop.f32.mrf.mxu0
        %v4708 = vadd.f32 %v4335, %v4707
        %4709 = vmatmul.bf16.gmra.mxu0 %v4276
        %v4710 = vpop.f32.mrf.mxu0
        %v4711 = vadd.f32 %v4335, %v4710
        %v4712 = vpop.f32.mrf.mxu0
        %v4713 = vadd.f32 %v4335, %v4712
        %4714 = vmatmul.bf16.gmra.mxu0 %v4278
        %v4715 = vpop.f32.mrf.mxu0
        %v4716 = vadd.f32 %v4335, %v4715
        %v4717 = vpop.f32.mrf.mxu0
        %v4718 = vadd.f32 %v4335, %v4717
        %4719 = vmatmul.bf16.gmra.mxu0 %v4280
        %v4720 = vpop.f32.mrf.mxu0
        %v4721 = vadd.f32 %v4335, %v4720
        %v4722 = vpop.f32.mrf.mxu0
        %v4723 = vadd.f32 %v4335, %v4722
        %4724 = vmatmul.bf16.gmra.mxu0 %v4282
        %v4725 = vpop.f32.mrf.mxu0
        %v4726 = vadd.f32 %v4335, %v4725
        %v4727 = vpop.f32.mrf.mxu0
        %v4728 = vadd.f32 %v4335, %v4727
        %4729 = vmatmul.bf16.gmra.mxu0 %v4284
        %v4730 = vpop.f32.mrf.mxu0
        %v4731 = vadd.f32 %v4335, %v4730
        %v4732 = vpop.f32.mrf.mxu0
        %v4733 = vadd.f32 %v4335, %v4732
        %4734 = vmatmul.bf16.gmra.mxu0 %v4286
        %v4735 = vpop.f32.mrf.mxu0
        %v4736 = vadd.f32 %v4335, %v4735
        %v4737 = vpop.f32.mrf.mxu0
        %v4738 = vadd.f32 %v4335, %v4737
        %4739 = vmatmul.bf16.gmra.mxu0 %v4288
        %v4740 = vpop.f32.mrf.mxu0
        %v4741 = vadd.f32 %v4335, %v4740
        %v4742 = vpop.f32.mrf.mxu0
        %v4743 = vadd.f32 %v4335, %v4742
        %4744 = vmatmul.bf16.gmra.mxu0 %v4290
        %v4745 = vpop.f32.mrf.mxu0
        %v4746 = vadd.f32 %v4335, %v4745
        %v4747 = vpop.f32.mrf.mxu0
        %v4748 = vadd.f32 %v4335, %v4747
        %4749 = vmatmul.bf16.gmra.mxu0 %v4292
        %v4750 = vpop.f32.mrf.mxu0
        %v4751 = vadd.f32 %v4335, %v4750
        %v4752 = vpop.f32.mrf.mxu0
        %v4753 = vadd.f32 %v4335, %v4752
        %4754 = vmatmul.bf16.gmra.mxu0 %v4294
        %v4755 = vpop.f32.mrf.mxu0
        %v4756 = vadd.f32 %v4335, %v4755
        %v4757 = vpop.f32.mrf.mxu0
        %v4758 = vadd.f32 %v4335, %v4757
        %4759 = vmatmul.bf16.gmra.mxu0 %v4296
        %v4760 = vpop.f32.mrf.mxu0
        %v4761 = vadd.f32 %v4335, %v4760
        %v4762 = vpop.f32.mrf.mxu0
        %v4763 = vadd.f32 %v4335, %v4762
        %4764 = vdwg.mxu0
        %4765 = vmatpush.bf16.msra.mxu0 %v4465
        %4766 = vmatpush.bf16.msra.mxu0 %v4463
        %4767 = vmatpush.bf16.msra.mxu0 %v4461
        %4768 = vmatpush.bf16.msra.mxu0 %v4459
        %4769 = vmatpush.bf16.msra.mxu0 %v4457
        %4770 = vmatpush.bf16.msra.mxu0 %v4455
        %4771 = vmatpush.bf16.msra.mxu0 %v4453
        %4772 = vmatpush.bf16.msra.mxu0 %v4451
        %4773 = vmatmul.bf16.gmra.mxu0 %v4267
        %v4774 = vpop.f32.mrf.mxu0
        %v4775 = vadd.f32 %v4686, %v4774
        %v4776 = vpop.f32.mrf.mxu0
        %v4777 = vadd.f32 %v4688, %v4776
        %4778 = vmatmul.bf16.gmra.mxu0 %v4269
        %v4779 = vpop.f32.mrf.mxu0
        %v4780 = vadd.f32 %v4691, %v4779
        %v4781 = vpop.f32.mrf.mxu0
        %v4782 = vadd.f32 %v4693, %v4781
        %4783 = vmatmul.bf16.gmra.mxu0 %v4271
        %v4784 = vpop.f32.mrf.mxu0
        %v4785 = vadd.f32 %v4696, %v4784
        %v4786 = vpop.f32.mrf.mxu0
        %v4787 = vadd.f32 %v4698, %v4786
        %4788 = vmatmul.bf16.gmra.mxu0 %v4273
        %v4789 = vpop.f32.mrf.mxu0
        %v4790 = vadd.f32 %v4701, %v4789
        %v4791 = vpop.f32.mrf.mxu0
        %v4792 = vadd.f32 %v4703, %v4791
        %4793 = vmatmul.bf16.gmra.mxu0 %v4275
        %v4794 = vpop.f32.mrf.mxu0
        %v4795 = vadd.f32 %v4706, %v4794
        %v4796 = vpop.f32.mrf.mxu0
        %v4797 = vadd.f32 %v4708, %v4796
        %4798 = vmatmul.bf16.gmra.mxu0 %v4277
        %v4799 = vpop.f32.mrf.mxu0
        %v4800 = vadd.f32 %v4711, %v4799
        %v4801 = vpop.f32.mrf.mxu0
        %v4802 = vadd.f32 %v4713, %v4801
        %4803 = vmatmul.bf16.gmra.mxu0 %v4279
        %v4804 = vpop.f32.mrf.mxu0
        %v4805 = vadd.f32 %v4716, %v4804
        %v4806 = vpop.f32.mrf.mxu0
        %v4807 = vadd.f32 %v4718, %v4806
        %4808 = vmatmul.bf16.gmra.mxu0 %v4281
        %v4809 = vpop.f32.mrf.mxu0
        %v4810 = vadd.f32 %v4721, %v4809
        %v4811 = vpop.f32.mrf.mxu0
        %v4812 = vadd.f32 %v4723, %v4811
        %4813 = vmatmul.bf16.gmra.mxu0 %v4283
        %v4814 = vpop.f32.mrf.mxu0
        %v4815 = vadd.f32 %v4726, %v4814
        %v4816 = vpop.f32.mrf.mxu0
        %v4817 = vadd.f32 %v4728, %v4816
        %4818 = vmatmul.bf16.gmra.mxu0 %v4285
        %v4819 = vpop.f32.mrf.mxu0
        %v4820 = vadd.f32 %v4731, %v4819
        %v4821 = vpop.f32.mrf.mxu0
        %v4822 = vadd.f32 %v4733, %v4821
        %4823 = vmatmul.bf16.gmra.mxu0 %v4287
        %v4824 = vpop.f32.mrf.mxu0
        %v4825 = vadd.f32 %v4736, %v4824
        %v4826 = vpop.f32.mrf.mxu0
        %v4827 = vadd.f32 %v4738, %v4826
        %4828 = vmatmul.bf16.gmra.mxu0 %v4289
        %v4829 = vpop.f32.mrf.mxu0
        %v4830 = vadd.f32 %v4741, %v4829
        %v4831 = vpop.f32.mrf.mxu0
        %v4832 = vadd.f32 %v4743, %v4831
        %4833 = vmatmul.bf16.gmra.mxu0 %v4291
        %v4834 = vpop.f32.mrf.mxu0
        %v4835 = vadd.f32 %v4746, %v4834
        %v4836 = vpop.f32.mrf.mxu0
        %v4837 = vadd.f32 %v4748, %v4836
        %4838 = vmatmul.bf16.gmra.mxu0 %v4293
        %v4839 = vpop.f32.mrf.mxu0
        %v4840 = vadd.f32 %v4751, %v4839
        %v4841 = vpop.f32.mrf.mxu0
        %v4842 = vadd.f32 %v4753, %v4841
        %4843 = vmatmul.bf16.gmra.mxu0 %v4295
        %v4844 = vpop.f32.mrf.mxu0
        %v4845 = vadd.f32 %v4756, %v4844
        %v4846 = vpop.f32.mrf.mxu0
        %v4847 = vadd.f32 %v4758, %v4846
        %4848 = vmatmul.bf16.gmra.mxu0 %v4297
        %v4849 = vpop.f32.mrf.mxu0
        %v4850 = vadd.f32 %v4761, %v4849
        %v4851 = vpop.f32.mrf.mxu0
        %v4852 = vadd.f32 %v4763, %v4851
        %4853 = vdwg.mxu0
        %v4854 = vmax.f32 %v4597, 0.0
        %v4855 = vmax.f32 %v4775, 0.0
        %v4856 = vmax.f32 %v4599, 0.0
        %v4857 = vmax.f32 %v4777, 0.0
        %v4858 = vmax.f32 %v4602, 0.0
        %v4859 = vmax.f32 %v4780, 0.0
        %v4860 = vmax.f32 %v4604, 0.0
        %v4861 = vmax.f32 %v4782, 0.0
        %v4862 = vmax.f32 %v4607, 0.0
        %v4863 = vmax.f32 %v4785, 0.0
        %v4864 = vmax.f32 %v4609, 0.0
        %v4865 = vmax.f32 %v4787, 0.0
        %v4866 = vmax.f32 %v4612, 0.0
        %v4867 = vmax.f32 %v4790, 0.0
        %v4868 = vmax.f32 %v4614, 0.0
        %v4869 = vmax.f32 %v4792, 0.0
        %v4870 = vmax.f32 %v4617, 0.0
        %v4871 = vmax.f32 %v4795, 0.0
        %v4872 = vmax.f32 %v4619, 0.0
        %v4873 = vmax.f32 %v4797, 0.0
        %v4874 = vmax.f32 %v4622, 0.0
        %v4875 = vmax.f32 %v4800, 0.0
        %v4876 = vmax.f32 %v4624, 0.0
        %v4877 = vmax.f32 %v4802, 0.0
        %v4878 = vmax.f32 %v4627, 0.0
        %v4879 = vmax.f32 %v4805, 0.0
        %v4880 = vmax.f32 %v4629, 0.0
        %v4881 = vmax.f32 %v4807, 0.0
        %v4882 = vmax.f32 %v4632, 0.0
        %v4883 = vmax.f32 %v4810, 0.0
        %v4884 = vmax.f32 %v4634, 0.0
        %v4885 = vmax.f32 %v4812, 0.0
        %v4886 = vmax.f32 %v4637, 0.0
        %v4887 = vmax.f32 %v4815, 0.0
        %v4888 = vmax.f32 %v4639, 0.0
        %v4889 = vmax.f32 %v4817, 0.0
        %v4890 = vmax.f32 %v4642, 0.0
        %v4891 = vmax.f32 %v4820, 0.0
        %v4892 = vmax.f32 %v4644, 0.0
        %v4893 = vmax.f32 %v4822, 0.0
        %v4894 = vmax.f32 %v4647, 0.0
        %v4895 = vmax.f32 %v4825, 0.0
        %v4896 = vmax.f32 %v4649, 0.0
        %v4897 = vmax.f32 %v4827, 0.0
        %v4898 = vmax.f32 %v4652, 0.0
        %v4899 = vmax.f32 %v4830, 0.0
        %v4900 = vmax.f32 %v4654, 0.0
        %v4901 = vmax.f32 %v4832, 0.0
        %v4902 = vmax.f32 %v4657, 0.0
        %v4903 = vmax.f32 %v4835, 0.0
        %v4904 = vmax.f32 %v4659, 0.0
        %v4905 = vmax.f32 %v4837, 0.0
        %v4906 = vmax.f32 %v4662, 0.0
        %v4907 = vmax.f32 %v4840, 0.0
        %v4908 = vmax.f32 %v4664, 0.0
        %v4909 = vmax.f32 %v4842, 0.0
        %v4910 = vmax.f32 %v4667, 0.0
        %v4911 = vmax.f32 %v4845, 0.0
        %v4912 = vmax.f32 %v4669, 0.0
        %v4913 = vmax.f32 %v4847, 0.0
        %v4914 = vmax.f32 %v4672, 0.0
        %v4915 = vmax.f32 %v4850, 0.0
        %v4916 = vmax.f32 %v4674, 0.0
        %v4917 = vmax.f32 %v4852, 0.0
        %v4918 = vpack.c.bf16 %v4856, %v4854
        %v4919 = vpack.c.bf16 %v4857, %v4855
        %v4920 = vpack.c.bf16 %v4860, %v4858
        %v4921 = vpack.c.bf16 %v4861, %v4859
        %v4922 = vpack.c.bf16 %v4864, %v4862
        %v4923 = vpack.c.bf16 %v4865, %v4863
        %v4924 = vpack.c.bf16 %v4868, %v4866
        %v4925 = vpack.c.bf16 %v4869, %v4867
        %v4926 = vpack.c.bf16 %v4872, %v4870
        %v4927 = vpack.c.bf16 %v4873, %v4871
        %v4928 = vpack.c.bf16 %v4876, %v4874
        %v4929 = vpack.c.bf16 %v4877, %v4875
        %v4930 = vpack.c.bf16 %v4880, %v4878
        %v4931 = vpack.c.bf16 %v4881, %v4879
        %v4932 = vpack.c.bf16 %v4884, %v4882
        %v4933 = vpack.c.bf16 %v4885, %v4883
        %v4934 = vpack.c.bf16 %v4888, %v4886
        %v4935 = vpack.c.bf16 %v4889, %v4887
        %v4936 = vpack.c.bf16 %v4892, %v4890
        %v4937 = vpack.c.bf16 %v4893, %v4891
        %v4938 = vpack.c.bf16 %v4896, %v4894
        %v4939 = vpack.c.bf16 %v4897, %v4895
        %v4940 = vpack.c.bf16 %v4900, %v4898
        %v4941 = vpack.c.bf16 %v4901, %v4899
        %v4942 = vpack.c.bf16 %v4904, %v4902
        %v4943 = vpack.c.bf16 %v4905, %v4903
        %v4944 = vpack.c.bf16 %v4908, %v4906
        %v4945 = vpack.c.bf16 %v4909, %v4907
        %v4946 = vpack.c.bf16 %v4912, %v4910
        %v4947 = vpack.c.bf16 %v4913, %v4911
        %v4948 = vpack.c.bf16 %v4916, %v4914
        %v4949 = vpack.c.bf16 %v4917, %v4915
        %s4950 = scalar_lea.vmem %s2, 1536
        %v4951 = vld [vmem:[%s4950] sm:$0xff]
        %v4952 = vld [vmem:[%s4950 + $0x8] sm:$0xff]
        %v4953 = vld [vmem:[%s4950 + $0x10] sm:$0xff]
        %v4954 = vld [vmem:[%s4950 + $0x18] sm:$0xff]
        %v4955 = vld [vmem:[%s4950 + $0x20] sm:$0xff]
        %v4956 = vld [vmem:[%s4950 + $0x28] sm:$0xff]
        %v4957 = vld [vmem:[%s4950 + $0x30] sm:$0xff]
        %v4958 = vld [vmem:[%s4950 + $0x38] sm:$0xff]
        %v4959 = vld [vmem:[%s4950 + $0x40] sm:$0xff]
        %v4960 = vld [vmem:[%s4950 + $0x48] sm:$0xff]
        %v4961 = vld [vmem:[%s4950 + $0x50] sm:$0xff]
        %v4962 = vld [vmem:[%s4950 + $0x58] sm:$0xff]
        %v4963 = vld [vmem:[%s4950 + $0x60] sm:$0xff]
        %v4964 = vld [vmem:[%s4950 + $0x68] sm:$0xff]
        %v4965 = vld [vmem:[%s4950 + $0x70] sm:$0xff]
        %v4966 = vld [vmem:[%s4950 + $0x78] sm:$0xff]
        %v4967 = vld [vmem:[%s4950 + $0x80] sm:$0xff]
        %v4968 = vld [vmem:[%s4950 + $0x88] sm:$0xff]
        %v4969 = vld [vmem:[%s4950 + $0x90] sm:$0xff]
        %v4970 = vld [vmem:[%s4950 + $0x98] sm:$0xff]
        %v4971 = vld [vmem:[%s4950 + $0xa0] sm:$0xff]
        %v4972 = vld [vmem:[%s4950 + $0xa8] sm:$0xff]
        %v4973 = vld [vmem:[%s4950 + $0xb0] sm:$0xff]
        %v4974 = vld [vmem:[%s4950 + $0xb8] sm:$0xff]
        %v4975 = vld [vmem:[%s4950 + $0xc0] sm:$0xff]
        %v4976 = vld [vmem:[%s4950 + $0xc8] sm:$0xff]
        %v4977 = vld [vmem:[%s4950 + $0xd0] sm:$0xff]
        %v4978 = vld [vmem:[%s4950 + $0xd8] sm:$0xff]
        %v4979 = vld [vmem:[%s4950 + $0xe0] sm:$0xff]
        %v4980 = vld [vmem:[%s4950 + $0xe8] sm:$0xff]
        %v4981 = vld [vmem:[%s4950 + $0xf0] sm:$0xff]
        %v4982 = vld [vmem:[%s4950 + $0xf8] sm:$0xff]
        %s4983 = scalar_lea.vmem %s3, 7
        %v4984 = vld [vmem:[%s4983] ss:$8 sm:$0x3]
        %v4986 = vperm.slane %v4984, 0
        %v4987 = vperm.slane %v4984, 1
        %v5022 = vunpack.c.l.b16 %v4951
        %v5023 = vunpack.c.h.b16 %v4951
        %v5024 = vunpack.c.l.b16 %v4952
        %v5025 = vunpack.c.h.b16 %v4952
        %v5026 = vunpack.c.l.b16 %v4953
        %v5027 = vunpack.c.h.b16 %v4953
        %v5028 = vunpack.c.l.b16 %v4954
        %v5029 = vunpack.c.h.b16 %v4954
        %v5030 = vunpack.c.l.b16 %v4955
        %v5031 = vunpack.c.h.b16 %v4955
        %v5032 = vunpack.c.l.b16 %v4956
        %v5033 = vunpack.c.h.b16 %v4956
        %v5034 = vunpack.c.l.b16 %v4957
        %v5035 = vunpack.c.h.b16 %v4957
        %v5036 = vunpack.c.l.b16 %v4958
        %v5037 = vunpack.c.h.b16 %v4958
        %v5038 = vunpack.c.l.b16 %v4959
        %v5039 = vunpack.c.h.b16 %v4959
        %v5040 = vunpack.c.l.b16 %v4960
        %v5041 = vunpack.c.h.b16 %v4960
        %v5042 = vunpack.c.l.b16 %v4961
        %v5043 = vunpack.c.h.b16 %v4961
        %v5044 = vunpack.c.l.b16 %v4962
        %v5045 = vunpack.c.h.b16 %v4962
        %v5046 = vunpack.c.l.b16 %v4963
        %v5047 = vunpack.c.h.b16 %v4963
        %v5048 = vunpack.c.l.b16 %v4964
        %v5049 = vunpack.c.h.b16 %v4964
        %v5050 = vunpack.c.l.b16 %v4965
        %v5051 = vunpack.c.h.b16 %v4965
        %v5052 = vunpack.c.l.b16 %v4966
        %v5053 = vunpack.c.h.b16 %v4966
        %v5054 = vunpack.c.l.b16 %v4967
        %v5055 = vunpack.c.h.b16 %v4967
        %v5056 = vunpack.c.l.b16 %v4968
        %v5057 = vunpack.c.h.b16 %v4968
        %v5058 = vunpack.c.l.b16 %v4969
        %v5059 = vunpack.c.h.b16 %v4969
        %v5060 = vunpack.c.l.b16 %v4970
        %v5061 = vunpack.c.h.b16 %v4970
        %v5062 = vunpack.c.l.b16 %v4971
        %v5063 = vunpack.c.h.b16 %v4971
        %v5064 = vunpack.c.l.b16 %v4972
        %v5065 = vunpack.c.h.b16 %v4972
        %v5066 = vunpack.c.l.b16 %v4973
        %v5067 = vunpack.c.h.b16 %v4973
        %v5068 = vunpack.c.l.b16 %v4974
        %v5069 = vunpack.c.h.b16 %v4974
        %v5070 = vunpack.c.l.b16 %v4975
        %v5071 = vunpack.c.h.b16 %v4975
        %v5072 = vunpack.c.l.b16 %v4976
        %v5073 = vunpack.c.h.b16 %v4976
        %v5074 = vunpack.c.l.b16 %v4977
        %v5075 = vunpack.c.h.b16 %v4977
        %v5076 = vunpack.c.l.b16 %v4978
        %v5077 = vunpack.c.h.b16 %v4978
        %v5078 = vunpack.c.l.b16 %v4979
        %v5079 = vunpack.c.h.b16 %v4979
        %v5080 = vunpack.c.l.b16 %v4980
        %v5081 = vunpack.c.h.b16 %v4980
        %v5082 = vunpack.c.l.b16 %v4981
        %v5083 = vunpack.c.h.b16 %v4981
        %v5084 = vunpack.c.l.b16 %v4982
        %v5085 = vunpack.c.h.b16 %v4982
        %v5086 = vpack.c.b16 %v5024, %v5022
        %v5087 = vpack.c.b16 %v5025, %v5023
        %v5088 = vpack.c.b16 %v5028, %v5026
        %v5089 = vpack.c.b16 %v5029, %v5027
        %v5090 = vpack.c.b16 %v5032, %v5030
        %v5091 = vpack.c.b16 %v5033, %v5031
        %v5092 = vpack.c.b16 %v5036, %v5034
        %v5093 = vpack.c.b16 %v5037, %v5035
        %v5094 = vpack.c.b16 %v5040, %v5038
        %v5095 = vpack.c.b16 %v5041, %v5039
        %v5096 = vpack.c.b16 %v5044, %v5042
        %v5097 = vpack.c.b16 %v5045, %v5043
        %v5098 = vpack.c.b16 %v5048, %v5046
        %v5099 = vpack.c.b16 %v5049, %v5047
        %v5100 = vpack.c.b16 %v5052, %v5050
        %v5101 = vpack.c.b16 %v5053, %v5051
        %v5102 = vpack.c.b16 %v5056, %v5054
        %v5103 = vpack.c.b16 %v5057, %v5055
        %v5104 = vpack.c.b16 %v5060, %v5058
        %v5105 = vpack.c.b16 %v5061, %v5059
        %v5106 = vpack.c.b16 %v5064, %v5062
        %v5107 = vpack.c.b16 %v5065, %v5063
        %v5108 = vpack.c.b16 %v5068, %v5066
        %v5109 = vpack.c.b16 %v5069, %v5067
        %v5110 = vpack.c.b16 %v5072, %v5070
        %v5111 = vpack.c.b16 %v5073, %v5071
        %v5112 = vpack.c.b16 %v5076, %v5074
        %v5113 = vpack.c.b16 %v5077, %v5075
        %v5114 = vpack.c.b16 %v5080, %v5078
        %v5115 = vpack.c.b16 %v5081, %v5079
        %v5116 = vpack.c.b16 %v5084, %v5082
        %v5117 = vpack.c.b16 %v5085, %v5083
        %5150 = vmatpush.bf16.msra.mxu0 %v5100
        %5151 = vmatpush.bf16.msra.mxu0 %v5098
        %5152 = vmatpush.bf16.msra.mxu0 %v5096
        %5153 = vmatpush.bf16.msra.mxu0 %v5094
        %5154 = vmatpush.bf16.msra.mxu0 %v5092
        %5155 = vmatpush.bf16.msra.mxu0 %v5090
        %5156 = vmatpush.bf16.msra.mxu0 %v5088
        %5157 = vmatpush.bf16.msra.mxu0 %v5086
        %5158 = vmatmul.bf16.gmra.mxu0 %v4918
        %v5159 = vpop.f32.mrf.mxu0
        %v5160 = vadd.f32 %v4986, %v5159
        %v5161 = vpop.f32.mrf.mxu0
        %v5162 = vadd.f32 %v4986, %v5161
        %5163 = vmatmul.bf16.gmra.mxu0 %v4920
        %v5164 = vpop.f32.mrf.mxu0
        %v5165 = vadd.f32 %v4986, %v5164
        %v5166 = vpop.f32.mrf.mxu0
        %v5167 = vadd.f32 %v4986, %v5166
        %5168 = vmatmul.bf16.gmra.mxu0 %v4922
        %v5169 = vpop.f32.mrf.mxu0
        %v5170 = vadd.f32 %v4986, %v5169
        %v5171 = vpop.f32.mrf.mxu0
        %v5172 = vadd.f32 %v4986, %v5171
        %5173 = vmatmul.bf16.gmra.mxu0 %v4924
        %v5174 = vpop.f32.mrf.mxu0
        %v5175 = vadd.f32 %v4986, %v5174
        %v5176 = vpop.f32.mrf.mxu0
        %v5177 = vadd.f32 %v4986, %v5176
        %5178 = vmatmul.bf16.gmra.mxu0 %v4926
        %v5179 = vpop.f32.mrf.mxu0
        %v5180 = vadd.f32 %v4986, %v5179
        %v5181 = vpop.f32.mrf.mxu0
        %v5182 = vadd.f32 %v4986, %v5181
        %5183 = vmatmul.bf16.gmra.mxu0 %v4928
        %v5184 = vpop.f32.mrf.mxu0
        %v5185 = vadd.f32 %v4986, %v5184
        %v5186 = vpop.f32.mrf.mxu0
        %v5187 = vadd.f32 %v4986, %v5186
        %5188 = vmatmul.bf16.gmra.mxu0 %v4930
        %v5189 = vpop.f32.mrf.mxu0
        %v5190 = vadd.f32 %v4986, %v5189
        %v5191 = vpop.f32.mrf.mxu0
        %v5192 = vadd.f32 %v4986, %v5191
        %5193 = vmatmul.bf16.gmra.mxu0 %v4932
        %v5194 = vpop.f32.mrf.mxu0
        %v5195 = vadd.f32 %v4986, %v5194
        %v5196 = vpop.f32.mrf.mxu0
        %v5197 = vadd.f32 %v4986, %v5196
        %5198 = vmatmul.bf16.gmra.mxu0 %v4934
        %v5199 = vpop.f32.mrf.mxu0
        %v5200 = vadd.f32 %v4986, %v5199
        %v5201 = vpop.f32.mrf.mxu0
        %v5202 = vadd.f32 %v4986, %v5201
        %5203 = vmatmul.bf16.gmra.mxu0 %v4936
        %v5204 = vpop.f32.mrf.mxu0
        %v5205 = vadd.f32 %v4986, %v5204
        %v5206 = vpop.f32.mrf.mxu0
        %v5207 = vadd.f32 %v4986, %v5206
        %5208 = vmatmul.bf16.gmra.mxu0 %v4938
        %v5209 = vpop.f32.mrf.mxu0
        %v5210 = vadd.f32 %v4986, %v5209
        %v5211 = vpop.f32.mrf.mxu0
        %v5212 = vadd.f32 %v4986, %v5211
        %5213 = vmatmul.bf16.gmra.mxu0 %v4940
        %v5214 = vpop.f32.mrf.mxu0
        %v5215 = vadd.f32 %v4986, %v5214
        %v5216 = vpop.f32.mrf.mxu0
        %v5217 = vadd.f32 %v4986, %v5216
        %5218 = vmatmul.bf16.gmra.mxu0 %v4942
        %v5219 = vpop.f32.mrf.mxu0
        %v5220 = vadd.f32 %v4986, %v5219
        %v5221 = vpop.f32.mrf.mxu0
        %v5222 = vadd.f32 %v4986, %v5221
        %5223 = vmatmul.bf16.gmra.mxu0 %v4944
        %v5224 = vpop.f32.mrf.mxu0
        %v5225 = vadd.f32 %v4986, %v5224
        %v5226 = vpop.f32.mrf.mxu0
        %v5227 = vadd.f32 %v4986, %v5226
        %5228 = vmatmul.bf16.gmra.mxu0 %v4946
        %v5229 = vpop.f32.mrf.mxu0
        %v5230 = vadd.f32 %v4986, %v5229
        %v5231 = vpop.f32.mrf.mxu0
        %v5232 = vadd.f32 %v4986, %v5231
        %5233 = vmatmul.bf16.gmra.mxu0 %v4948
        %v5234 = vpop.f32.mrf.mxu0
        %v5235 = vadd.f32 %v4986, %v5234
        %v5236 = vpop.f32.mrf.mxu0
        %v5237 = vadd.f32 %v4986, %v5236
        %5238 = vdwg.mxu0
        %5239 = vmatpush.bf16.msra.mxu0 %v5116
        %5240 = vmatpush.bf16.msra.mxu0 %v5114
        %5241 = vmatpush.bf16.msra.mxu0 %v5112
        %5242 = vmatpush.bf16.msra.mxu0 %v5110
        %5243 = vmatpush.bf16.msra.mxu0 %v5108
        %5244 = vmatpush.bf16.msra.mxu0 %v5106
        %5245 = vmatpush.bf16.msra.mxu0 %v5104
        %5246 = vmatpush.bf16.msra.mxu0 %v5102
        %5247 = vmatmul.bf16.gmra.mxu0 %v4919
        %v5248 = vpop.f32.mrf.mxu0
        %v5249 = vadd.f32 %v5160, %v5248
        %v5250 = vpop.f32.mrf.mxu0
        %v5251 = vadd.f32 %v5162, %v5250
        %5252 = vmatmul.bf16.gmra.mxu0 %v4921
        %v5253 = vpop.f32.mrf.mxu0
        %v5254 = vadd.f32 %v5165, %v5253
        %v5255 = vpop.f32.mrf.mxu0
        %v5256 = vadd.f32 %v5167, %v5255
        %5257 = vmatmul.bf16.gmra.mxu0 %v4923
        %v5258 = vpop.f32.mrf.mxu0
        %v5259 = vadd.f32 %v5170, %v5258
        %v5260 = vpop.f32.mrf.mxu0
        %v5261 = vadd.f32 %v5172, %v5260
        %5262 = vmatmul.bf16.gmra.mxu0 %v4925
        %v5263 = vpop.f32.mrf.mxu0
        %v5264 = vadd.f32 %v5175, %v5263
        %v5265 = vpop.f32.mrf.mxu0
        %v5266 = vadd.f32 %v5177, %v5265
        %5267 = vmatmul.bf16.gmra.mxu0 %v4927
        %v5268 = vpop.f32.mrf.mxu0
        %v5269 = vadd.f32 %v5180, %v5268
        %v5270 = vpop.f32.mrf.mxu0
        %v5271 = vadd.f32 %v5182, %v5270
        %5272 = vmatmul.bf16.gmra.mxu0 %v4929
        %v5273 = vpop.f32.mrf.mxu0
        %v5274 = vadd.f32 %v5185, %v5273
        %v5275 = vpop.f32.mrf.mxu0
        %v5276 = vadd.f32 %v5187, %v5275
        %5277 = vmatmul.bf16.gmra.mxu0 %v4931
        %v5278 = vpop.f32.mrf.mxu0
        %v5279 = vadd.f32 %v5190, %v5278
        %v5280 = vpop.f32.mrf.mxu0
        %v5281 = vadd.f32 %v5192, %v5280
        %5282 = vmatmul.bf16.gmra.mxu0 %v4933
        %v5283 = vpop.f32.mrf.mxu0
        %v5284 = vadd.f32 %v5195, %v5283
        %v5285 = vpop.f32.mrf.mxu0
        %v5286 = vadd.f32 %v5197, %v5285
        %5287 = vmatmul.bf16.gmra.mxu0 %v4935
        %v5288 = vpop.f32.mrf.mxu0
        %v5289 = vadd.f32 %v5200, %v5288
        %v5290 = vpop.f32.mrf.mxu0
        %v5291 = vadd.f32 %v5202, %v5290
        %5292 = vmatmul.bf16.gmra.mxu0 %v4937
        %v5293 = vpop.f32.mrf.mxu0
        %v5294 = vadd.f32 %v5205, %v5293
        %v5295 = vpop.f32.mrf.mxu0
        %v5296 = vadd.f32 %v5207, %v5295
        %5297 = vmatmul.bf16.gmra.mxu0 %v4939
        %v5298 = vpop.f32.mrf.mxu0
        %v5299 = vadd.f32 %v5210, %v5298
        %v5300 = vpop.f32.mrf.mxu0
        %v5301 = vadd.f32 %v5212, %v5300
        %5302 = vmatmul.bf16.gmra.mxu0 %v4941
        %v5303 = vpop.f32.mrf.mxu0
        %v5304 = vadd.f32 %v5215, %v5303
        %v5305 = vpop.f32.mrf.mxu0
        %v5306 = vadd.f32 %v5217, %v5305
        %5307 = vmatmul.bf16.gmra.mxu0 %v4943
        %v5308 = vpop.f32.mrf.mxu0
        %v5309 = vadd.f32 %v5220, %v5308
        %v5310 = vpop.f32.mrf.mxu0
        %v5311 = vadd.f32 %v5222, %v5310
        %5312 = vmatmul.bf16.gmra.mxu0 %v4945
        %v5313 = vpop.f32.mrf.mxu0
        %v5314 = vadd.f32 %v5225, %v5313
        %v5315 = vpop.f32.mrf.mxu0
        %v5316 = vadd.f32 %v5227, %v5315
        %5317 = vmatmul.bf16.gmra.mxu0 %v4947
        %v5318 = vpop.f32.mrf.mxu0
        %v5319 = vadd.f32 %v5230, %v5318
        %v5320 = vpop.f32.mrf.mxu0
        %v5321 = vadd.f32 %v5232, %v5320
        %5322 = vmatmul.bf16.gmra.mxu0 %v4949
        %v5323 = vpop.f32.mrf.mxu0
        %v5324 = vadd.f32 %v5235, %v5323
        %v5325 = vpop.f32.mrf.mxu0
        %v5326 = vadd.f32 %v5237, %v5325
        %5327 = vdwg.mxu0
        %5328 = vmatpush.bf16.msra.mxu0 %v5101
        %5329 = vmatpush.bf16.msra.mxu0 %v5099
        %5330 = vmatpush.bf16.msra.mxu0 %v5097
        %5331 = vmatpush.bf16.msra.mxu0 %v5095
        %5332 = vmatpush.bf16.msra.mxu0 %v5093
        %5333 = vmatpush.bf16.msra.mxu0 %v5091
        %5334 = vmatpush.bf16.msra.mxu0 %v5089
        %5335 = vmatpush.bf16.msra.mxu0 %v5087
        %5336 = vmatmul.bf16.gmra.mxu0 %v4918
        %v5337 = vpop.f32.mrf.mxu0
        %v5338 = vadd.f32 %v4987, %v5337
        %v5339 = vpop.f32.mrf.mxu0
        %v5340 = vadd.f32 %v4987, %v5339
        %5341 = vmatmul.bf16.gmra.mxu0 %v4920
        %v5342 = vpop.f32.mrf.mxu0
        %v5343 = vadd.f32 %v4987, %v5342
        %v5344 = vpop.f32.mrf.mxu0
        %v5345 = vadd.f32 %v4987, %v5344
        %5346 = vmatmul.bf16.gmra.mxu0 %v4922
        %v5347 = vpop.f32.mrf.mxu0
        %v5348 = vadd.f32 %v4987, %v5347
        %v5349 = vpop.f32.mrf.mxu0
        %v5350 = vadd.f32 %v4987, %v5349
        %5351 = vmatmul.bf16.gmra.mxu0 %v4924
        %v5352 = vpop.f32.mrf.mxu0
        %v5353 = vadd.f32 %v4987, %v5352
        %v5354 = vpop.f32.mrf.mxu0
        %v5355 = vadd.f32 %v4987, %v5354
        %5356 = vmatmul.bf16.gmra.mxu0 %v4926
        %v5357 = vpop.f32.mrf.mxu0
        %v5358 = vadd.f32 %v4987, %v5357
        %v5359 = vpop.f32.mrf.mxu0
        %v5360 = vadd.f32 %v4987, %v5359
        %5361 = vmatmul.bf16.gmra.mxu0 %v4928
        %v5362 = vpop.f32.mrf.mxu0
        %v5363 = vadd.f32 %v4987, %v5362
        %v5364 = vpop.f32.mrf.mxu0
        %v5365 = vadd.f32 %v4987, %v5364
        %5366 = vmatmul.bf16.gmra.mxu0 %v4930
        %v5367 = vpop.f32.mrf.mxu0
        %v5368 = vadd.f32 %v4987, %v5367
        %v5369 = vpop.f32.mrf.mxu0
        %v5370 = vadd.f32 %v4987, %v5369
        %5371 = vmatmul.bf16.gmra.mxu0 %v4932
        %v5372 = vpop.f32.mrf.mxu0
        %v5373 = vadd.f32 %v4987, %v5372
        %v5374 = vpop.f32.mrf.mxu0
        %v5375 = vadd.f32 %v4987, %v5374
        %5376 = vmatmul.bf16.gmra.mxu0 %v4934
        %v5377 = vpop.f32.mrf.mxu0
        %v5378 = vadd.f32 %v4987, %v5377
        %v5379 = vpop.f32.mrf.mxu0
        %v5380 = vadd.f32 %v4987, %v5379
        %5381 = vmatmul.bf16.gmra.mxu0 %v4936
        %v5382 = vpop.f32.mrf.mxu0
        %v5383 = vadd.f32 %v4987, %v5382
        %v5384 = vpop.f32.mrf.mxu0
        %v5385 = vadd.f32 %v4987, %v5384
        %5386 = vmatmul.bf16.gmra.mxu0 %v4938
        %v5387 = vpop.f32.mrf.mxu0
        %v5388 = vadd.f32 %v4987, %v5387
        %v5389 = vpop.f32.mrf.mxu0
        %v5390 = vadd.f32 %v4987, %v5389
        %5391 = vmatmul.bf16.gmra.mxu0 %v4940
        %v5392 = vpop.f32.mrf.mxu0
        %v5393 = vadd.f32 %v4987, %v5392
        %v5394 = vpop.f32.mrf.mxu0
        %v5395 = vadd.f32 %v4987, %v5394
        %5396 = vmatmul.bf16.gmra.mxu0 %v4942
        %v5397 = vpop.f32.mrf.mxu0
        %v5398 = vadd.f32 %v4987, %v5397
        %v5399 = vpop.f32.mrf.mxu0
        %v5400 = vadd.f32 %v4987, %v5399
        %5401 = vmatmul.bf16.gmra.mxu0 %v4944
        %v5402 = vpop.f32.mrf.mxu0
        %v5403 = vadd.f32 %v4987, %v5402
        %v5404 = vpop.f32.mrf.mxu0
        %v5405 = vadd.f32 %v4987, %v5404
        %5406 = vmatmul.bf16.gmra.mxu0 %v4946
        %v5407 = vpop.f32.mrf.mxu0
        %v5408 = vadd.f32 %v4987, %v5407
        %v5409 = vpop.f32.mrf.mxu0
        %v5410 = vadd.f32 %v4987, %v5409
        %5411 = vmatmul.bf16.gmra.mxu0 %v4948
        %v5412 = vpop.f32.mrf.mxu0
        %v5413 = vadd.f32 %v4987, %v5412
        %v5414 = vpop.f32.mrf.mxu0
        %v5415 = vadd.f32 %v4987, %v5414
        %5416 = vdwg.mxu0
        %5417 = vmatpush.bf16.msra.mxu0 %v5117
        %5418 = vmatpush.bf16.msra.mxu0 %v5115
        %5419 = vmatpush.bf16.msra.mxu0 %v5113
        %5420 = vmatpush.bf16.msra.mxu0 %v5111
        %5421 = vmatpush.bf16.msra.mxu0 %v5109
        %5422 = vmatpush.bf16.msra.mxu0 %v5107
        %5423 = vmatpush.bf16.msra.mxu0 %v5105
        %5424 = vmatpush.bf16.msra.mxu0 %v5103
        %5425 = vmatmul.bf16.gmra.mxu0 %v4919
        %v5426 = vpop.f32.mrf.mxu0
        %v5427 = vadd.f32 %v5338, %v5426
        %v5428 = vpop.f32.mrf.mxu0
        %v5429 = vadd.f32 %v5340, %v5428
        %5430 = vmatmul.bf16.gmra.mxu0 %v4921
        %v5431 = vpop.f32.mrf.mxu0
        %v5432 = vadd.f32 %v5343, %v5431
        %v5433 = vpop.f32.mrf.mxu0
        %v5434 = vadd.f32 %v5345, %v5433
        %5435 = vmatmul.bf16.gmra.mxu0 %v4923
        %v5436 = vpop.f32.mrf.mxu0
        %v5437 = vadd.f32 %v5348, %v5436
        %v5438 = vpop.f32.mrf.mxu0
        %v5439 = vadd.f32 %v5350, %v5438
        %5440 = vmatmul.bf16.gmra.mxu0 %v4925
        %v5441 = vpop.f32.mrf.mxu0
        %v5442 = vadd.f32 %v5353, %v5441
        %v5443 = vpop.f32.mrf.mxu0
        %v5444 = vadd.f32 %v5355, %v5443
        %5445 = vmatmul.bf16.gmra.mxu0 %v4927
        %v5446 = vpop.f32.mrf.mxu0
        %v5447 = vadd.f32 %v5358, %v5446
        %v5448 = vpop.f32.mrf.mxu0
        %v5449 = vadd.f32 %v5360, %v5448
        %5450 = vmatmul.bf16.gmra.mxu0 %v4929
        %v5451 = vpop.f32.mrf.mxu0
        %v5452 = vadd.f32 %v5363, %v5451
        %v5453 = vpop.f32.mrf.mxu0
        %v5454 = vadd.f32 %v5365, %v5453
        %5455 = vmatmul.bf16.gmra.mxu0 %v4931
        %v5456 = vpop.f32.mrf.mxu0
        %v5457 = vadd.f32 %v5368, %v5456
        %v5458 = vpop.f32.mrf.mxu0
        %v5459 = vadd.f32 %v5370, %v5458
        %5460 = vmatmul.bf16.gmra.mxu0 %v4933
        %v5461 = vpop.f32.mrf.mxu0
        %v5462 = vadd.f32 %v5373, %v5461
        %v5463 = vpop.f32.mrf.mxu0
        %v5464 = vadd.f32 %v5375, %v5463
        %5465 = vmatmul.bf16.gmra.mxu0 %v4935
        %v5466 = vpop.f32.mrf.mxu0
        %v5467 = vadd.f32 %v5378, %v5466
        %v5468 = vpop.f32.mrf.mxu0
        %v5469 = vadd.f32 %v5380, %v5468
        %5470 = vmatmul.bf16.gmra.mxu0 %v4937
        %v5471 = vpop.f32.mrf.mxu0
        %v5472 = vadd.f32 %v5383, %v5471
        %v5473 = vpop.f32.mrf.mxu0
        %v5474 = vadd.f32 %v5385, %v5473
        %5475 = vmatmul.bf16.gmra.mxu0 %v4939
        %v5476 = vpop.f32.mrf.mxu0
        %v5477 = vadd.f32 %v5388, %v5476
        %v5478 = vpop.f32.mrf.mxu0
        %v5479 = vadd.f32 %v5390, %v5478
        %5480 = vmatmul.bf16.gmra.mxu0 %v4941
        %v5481 = vpop.f32.mrf.mxu0
        %v5482 = vadd.f32 %v5393, %v5481
        %v5483 = vpop.f32.mrf.mxu0
        %v5484 = vadd.f32 %v5395, %v5483
        %5485 = vmatmul.bf16.gmra.mxu0 %v4943
        %v5486 = vpop.f32.mrf.mxu0
        %v5487 = vadd.f32 %v5398, %v5486
        %v5488 = vpop.f32.mrf.mxu0
        %v5489 = vadd.f32 %v5400, %v5488
        %5490 = vmatmul.bf16.gmra.mxu0 %v4945
        %v5491 = vpop.f32.mrf.mxu0
        %v5492 = vadd.f32 %v5403, %v5491
        %v5493 = vpop.f32.mrf.mxu0
        %v5494 = vadd.f32 %v5405, %v5493
        %5495 = vmatmul.bf16.gmra.mxu0 %v4947
        %v5496 = vpop.f32.mrf.mxu0
        %v5497 = vadd.f32 %v5408, %v5496
        %v5498 = vpop.f32.mrf.mxu0
        %v5499 = vadd.f32 %v5410, %v5498
        %5500 = vmatmul.bf16.gmra.mxu0 %v4949
        %v5501 = vpop.f32.mrf.mxu0
        %v5502 = vadd.f32 %v5413, %v5501
        %v5503 = vpop.f32.mrf.mxu0
        %v5504 = vadd.f32 %v5415, %v5503
        %5505 = vdwg.mxu0
        %v5506 = vmax.f32 %v5249, 0.0
        %v5507 = vmax.f32 %v5427, 0.0
        %v5508 = vmax.f32 %v5251, 0.0
        %v5509 = vmax.f32 %v5429, 0.0
        %v5510 = vmax.f32 %v5254, 0.0
        %v5511 = vmax.f32 %v5432, 0.0
        %v5512 = vmax.f32 %v5256, 0.0
        %v5513 = vmax.f32 %v5434, 0.0
        %v5514 = vmax.f32 %v5259, 0.0
        %v5515 = vmax.f32 %v5437, 0.0
        %v5516 = vmax.f32 %v5261, 0.0
        %v5517 = vmax.f32 %v5439, 0.0
        %v5518 = vmax.f32 %v5264, 0.0
        %v5519 = vmax.f32 %v5442, 0.0
        %v5520 = vmax.f32 %v5266, 0.0
        %v5521 = vmax.f32 %v5444, 0.0
        %v5522 = vmax.f32 %v5269, 0.0
        %v5523 = vmax.f32 %v5447, 0.0
        %v5524 = vmax.f32 %v5271, 0.0
        %v5525 = vmax.f32 %v5449, 0.0
        %v5526 = vmax.f32 %v5274, 0.0
        %v5527 = vmax.f32 %v5452, 0.0
        %v5528 = vmax.f32 %v5276, 0.0
        %v5529 = vmax.f32 %v5454, 0.0
        %v5530 = vmax.f32 %v5279, 0.0
        %v5531 = vmax.f32 %v5457, 0.0
        %v5532 = vmax.f32 %v5281, 0.0
        %v5533 = vmax.f32 %v5459, 0.0
        %v5534 = vmax.f32 %v5284, 0.0
        %v5535 = vmax.f32 %v5462, 0.0
        %v5536 = vmax.f32 %v5286, 0.0
        %v5537 = vmax.f32 %v5464, 0.0
        %v5538 = vmax.f32 %v5289, 0.0
        %v5539 = vmax.f32 %v5467, 0.0
        %v5540 = vmax.f32 %v5291, 0.0
        %v5541 = vmax.f32 %v5469, 0.0
        %v5542 = vmax.f32 %v5294, 0.0
        %v5543 = vmax.f32 %v5472, 0.0
        %v5544 = vmax.f32 %v5296, 0.0
        %v5545 = vmax.f32 %v5474, 0.0
        %v5546 = vmax.f32 %v5299, 0.0
        %v5547 = vmax.f32 %v5477, 0.0
        %v5548 = vmax.f32 %v5301, 0.0
        %v5549 = vmax.f32 %v5479, 0.0
        %v5550 = vmax.f32 %v5304, 0.0
        %v5551 = vmax.f32 %v5482, 0.0
        %v5552 = vmax.f32 %v5306, 0.0
        %v5553 = vmax.f32 %v5484, 0.0
        %v5554 = vmax.f32 %v5309, 0.0
        %v5555 = vmax.f32 %v5487, 0.0
        %v5556 = vmax.f32 %v5311, 0.0
        %v5557 = vmax.f32 %v5489, 0.0
        %v5558 = vmax.f32 %v5314, 0.0
        %v5559 = vmax.f32 %v5492, 0.0
        %v5560 = vmax.f32 %v5316, 0.0
        %v5561 = vmax.f32 %v5494, 0.0
        %v5562 = vmax.f32 %v5319, 0.0
        %v5563 = vmax.f32 %v5497, 0.0
        %v5564 = vmax.f32 %v5321, 0.0
        %v5565 = vmax.f32 %v5499, 0.0
        %v5566 = vmax.f32 %v5324, 0.0
        %v5567 = vmax.f32 %v5502, 0.0
        %v5568 = vmax.f32 %v5326, 0.0
        %v5569 = vmax.f32 %v5504, 0.0
        %v5570 = vpack.c.bf16 %v5508, %v5506
        %v5571 = vpack.c.bf16 %v5509, %v5507
        %v5572 = vpack.c.bf16 %v5512, %v5510
        %v5573 = vpack.c.bf16 %v5513, %v5511
        %v5574 = vpack.c.bf16 %v5516, %v5514
        %v5575 = vpack.c.bf16 %v5517, %v5515
        %v5576 = vpack.c.bf16 %v5520, %v5518
        %v5577 = vpack.c.bf16 %v5521, %v5519
        %v5578 = vpack.c.bf16 %v5524, %v5522
        %v5579 = vpack.c.bf16 %v5525, %v5523
        %v5580 = vpack.c.bf16 %v5528, %v5526
        %v5581 = vpack.c.bf16 %v5529, %v5527
        %v5582 = vpack.c.bf16 %v5532, %v5530
        %v5583 = vpack.c.bf16 %v5533, %v5531
        %v5584 = vpack.c.bf16 %v5536, %v5534
        %v5585 = vpack.c.bf16 %v5537, %v5535
        %v5586 = vpack.c.bf16 %v5540, %v5538
        %v5587 = vpack.c.bf16 %v5541, %v5539
        %v5588 = vpack.c.bf16 %v5544, %v5542
        %v5589 = vpack.c.bf16 %v5545, %v5543
        %v5590 = vpack.c.bf16 %v5548, %v5546
        %v5591 = vpack.c.bf16 %v5549, %v5547
        %v5592 = vpack.c.bf16 %v5552, %v5550
        %v5593 = vpack.c.bf16 %v5553, %v5551
        %v5594 = vpack.c.bf16 %v5556, %v5554
        %v5595 = vpack.c.bf16 %v5557, %v5555
        %v5596 = vpack.c.bf16 %v5560, %v5558
        %v5597 = vpack.c.bf16 %v5561, %v5559
        %v5598 = vpack.c.bf16 %v5564, %v5562
        %v5599 = vpack.c.bf16 %v5565, %v5563
        %v5600 = vpack.c.bf16 %v5568, %v5566
        %v5601 = vpack.c.bf16 %v5569, %v5567
        %v5602 = vld [vmem:[%s4] sm:$0xf]
        %v5603 = vld [vmem:[%s4 + $0x4] sm:$0xf]
        %v5604 = vld [vmem:[%s4 + $0x8] sm:$0xf]
        %v5605 = vld [vmem:[%s4 + $0xc] sm:$0xf]
        %v5606 = vld [vmem:[%s4 + $0x10] sm:$0xf]
        %v5607 = vld [vmem:[%s4 + $0x14] sm:$0xf]
        %v5608 = vld [vmem:[%s4 + $0x18] sm:$0xf]
        %v5609 = vld [vmem:[%s4 + $0x1c] sm:$0xf]
        %v5610 = vld [vmem:[%s4 + $0x20] sm:$0xf]
        %v5611 = vld [vmem:[%s4 + $0x24] sm:$0xf]
        %v5612 = vld [vmem:[%s4 + $0x28] sm:$0xf]
        %v5613 = vld [vmem:[%s4 + $0x2c] sm:$0xf]
        %v5614 = vld [vmem:[%s4 + $0x30] sm:$0xf]
        %v5615 = vld [vmem:[%s4 + $0x34] sm:$0xf]
        %v5616 = vld [vmem:[%s4 + $0x38] sm:$0xf]
        %v5617 = vld [vmem:[%s4 + $0x3c] sm:$0xf]
        %v5618 = vld [vmem:[%s4 + $0x40] sm:$0xf]
        %v5619 = vld [vmem:[%s4 + $0x44] sm:$0xf]
        %v5620 = vld [vmem:[%s4 + $0x48] sm:$0xf]
        %v5621 = vld [vmem:[%s4 + $0x4c] sm:$0xf]
        %v5622 = vld [vmem:[%s4 + $0x50] sm:$0xf]
        %v5623 = vld [vmem:[%s4 + $0x54] sm:$0xf]
        %v5624 = vld [vmem:[%s4 + $0x58] sm:$0xf]
        %v5625 = vld [vmem:[%s4 + $0x5c] sm:$0xf]
        %v5626 = vld [vmem:[%s4 + $0x60] sm:$0xf]
        %v5627 = vld [vmem:[%s4 + $0x64] sm:$0xf]
        %v5628 = vld [vmem:[%s4 + $0x68] sm:$0xf]
        %v5629 = vld [vmem:[%s4 + $0x6c] sm:$0xf]
        %v5630 = vld [vmem:[%s4 + $0x70] sm:$0xf]
        %v5631 = vld [vmem:[%s4 + $0x74] sm:$0xf]
        %v5632 = vld [vmem:[%s4 + $0x78] sm:$0xf]
        %v5633 = vld [vmem:[%s4 + $0x7c] sm:$0xf]
        %v5634 = vld [vmem:[%s5] sm:$0x1]
        %v5636 = vperm.slane %v5634, 0
        %v5670 = vunpack.c.l.b16 %v5602
        %v5671 = vunpack.c.l.b16 %v5603
        %v5672 = vunpack.c.l.b16 %v5604
        %v5673 = vunpack.c.l.b16 %v5605
        %v5674 = vunpack.c.l.b16 %v5606
        %v5675 = vunpack.c.l.b16 %v5607
        %v5676 = vunpack.c.l.b16 %v5608
        %v5677 = vunpack.c.l.b16 %v5609
        %v5678 = vunpack.c.l.b16 %v5610
        %v5679 = vunpack.c.l.b16 %v5611
        %v5680 = vunpack.c.l.b16 %v5612
        %v5681 = vunpack.c.l.b16 %v5613
        %v5682 = vunpack.c.l.b16 %v5614
        %v5683 = vunpack.c.l.b16 %v5615
        %v5684 = vunpack.c.l.b16 %v5616
        %v5685 = vunpack.c.l.b16 %v5617
        %v5686 = vunpack.c.l.b16 %v5618
        %v5687 = vunpack.c.l.b16 %v5619
        %v5688 = vunpack.c.l.b16 %v5620
        %v5689 = vunpack.c.l.b16 %v5621
        %v5690 = vunpack.c.l.b16 %v5622
        %v5691 = vunpack.c.l.b16 %v5623
        %v5692 = vunpack.c.l.b16 %v5624
        %v5693 = vunpack.c.l.b16 %v5625
        %v5694 = vunpack.c.l.b16 %v5626
        %v5695 = vunpack.c.l.b16 %v5627
        %v5696 = vunpack.c.l.b16 %v5628
        %v5697 = vunpack.c.l.b16 %v5629
        %v5698 = vunpack.c.l.b16 %v5630
        %v5699 = vunpack.c.l.b16 %v5631
        %v5700 = vunpack.c.l.b16 %v5632
        %v5701 = vunpack.c.l.b16 %v5633
        %v5702 = vpack.c.b16 %v5671, %v5670
        %v5703 = vpack.c.b16 %v5673, %v5672
        %v5704 = vpack.c.b16 %v5675, %v5674
        %v5705 = vpack.c.b16 %v5677, %v5676
        %v5706 = vpack.c.b16 %v5679, %v5678
        %v5707 = vpack.c.b16 %v5681, %v5680
        %v5708 = vpack.c.b16 %v5683, %v5682
        %v5709 = vpack.c.b16 %v5685, %v5684
        %v5710 = vpack.c.b16 %v5687, %v5686
        %v5711 = vpack.c.b16 %v5689, %v5688
        %v5712 = vpack.c.b16 %v5691, %v5690
        %v5713 = vpack.c.b16 %v5693, %v5692
        %v5714 = vpack.c.b16 %v5695, %v5694
        %v5715 = vpack.c.b16 %v5697, %v5696
        %v5716 = vpack.c.b16 %v5699, %v5698
        %v5717 = vpack.c.b16 %v5701, %v5700
        %5734 = vmatpush.bf16.msra.mxu0 %v5709
        %5735 = vmatpush.bf16.msra.mxu0 %v5708
        %5736 = vmatpush.bf16.msra.mxu0 %v5707
        %5737 = vmatpush.bf16.msra.mxu0 %v5706
        %5738 = vmatpush.bf16.msra.mxu0 %v5705
        %5739 = vmatpush.bf16.msra.mxu0 %v5704
        %5740 = vmatpush.bf16.msra.mxu0 %v5703
        %5741 = vmatpush.bf16.msra.mxu0 %v5702
        %5742 = vmatmul.bf16.gmra.mxu0 %v5570
        %v5743 = vpop.f32.mrf.mxu0
        %v5744 = vadd.f32 %v5636, %v5743
        %v5745 = vpop.f32.mrf.mxu0
        %v5746 = vadd.f32 %v5636, %v5745
        %5747 = vmatmul.bf16.gmra.mxu0 %v5572
        %v5748 = vpop.f32.mrf.mxu0
        %v5749 = vadd.f32 %v5636, %v5748
        %v5750 = vpop.f32.mrf.mxu0
        %v5751 = vadd.f32 %v5636, %v5750
        %5752 = vmatmul.bf16.gmra.mxu0 %v5574
        %v5753 = vpop.f32.mrf.mxu0
        %v5754 = vadd.f32 %v5636, %v5753
        %v5755 = vpop.f32.mrf.mxu0
        %v5756 = vadd.f32 %v5636, %v5755
        %5757 = vmatmul.bf16.gmra.mxu0 %v5576
        %v5758 = vpop.f32.mrf.mxu0
        %v5759 = vadd.f32 %v5636, %v5758
        %v5760 = vpop.f32.mrf.mxu0
        %v5761 = vadd.f32 %v5636, %v5760
        %5762 = vmatmul.bf16.gmra.mxu0 %v5578
        %v5763 = vpop.f32.mrf.mxu0
        %v5764 = vadd.f32 %v5636, %v5763
        %v5765 = vpop.f32.mrf.mxu0
        %v5766 = vadd.f32 %v5636, %v5765
        %5767 = vmatmul.bf16.gmra.mxu0 %v5580
        %v5768 = vpop.f32.mrf.mxu0
        %v5769 = vadd.f32 %v5636, %v5768
        %v5770 = vpop.f32.mrf.mxu0
        %v5771 = vadd.f32 %v5636, %v5770
        %5772 = vmatmul.bf16.gmra.mxu0 %v5582
        %v5773 = vpop.f32.mrf.mxu0
        %v5774 = vadd.f32 %v5636, %v5773
        %v5775 = vpop.f32.mrf.mxu0
        %v5776 = vadd.f32 %v5636, %v5775
        %5777 = vmatmul.bf16.gmra.mxu0 %v5584
        %v5778 = vpop.f32.mrf.mxu0
        %v5779 = vadd.f32 %v5636, %v5778
        %v5780 = vpop.f32.mrf.mxu0
        %v5781 = vadd.f32 %v5636, %v5780
        %5782 = vmatmul.bf16.gmra.mxu0 %v5586
        %v5783 = vpop.f32.mrf.mxu0
        %v5784 = vadd.f32 %v5636, %v5783
        %v5785 = vpop.f32.mrf.mxu0
        %v5786 = vadd.f32 %v5636, %v5785
        %5787 = vmatmul.bf16.gmra.mxu0 %v5588
        %v5788 = vpop.f32.mrf.mxu0
        %v5789 = vadd.f32 %v5636, %v5788
        %v5790 = vpop.f32.mrf.mxu0
        %v5791 = vadd.f32 %v5636, %v5790
        %5792 = vmatmul.bf16.gmra.mxu0 %v5590
        %v5793 = vpop.f32.mrf.mxu0
        %v5794 = vadd.f32 %v5636, %v5793
        %v5795 = vpop.f32.mrf.mxu0
        %v5796 = vadd.f32 %v5636, %v5795
        %5797 = vmatmul.bf16.gmra.mxu0 %v5592
        %v5798 = vpop.f32.mrf.mxu0
        %v5799 = vadd.f32 %v5636, %v5798
        %v5800 = vpop.f32.mrf.mxu0
        %v5801 = vadd.f32 %v5636, %v5800
        %5802 = vmatmul.bf16.gmra.mxu0 %v5594
        %v5803 = vpop.f32.mrf.mxu0
        %v5804 = vadd.f32 %v5636, %v5803
        %v5805 = vpop.f32.mrf.mxu0
        %v5806 = vadd.f32 %v5636, %v5805
        %5807 = vmatmul.bf16.gmra.mxu0 %v5596
        %v5808 = vpop.f32.mrf.mxu0
        %v5809 = vadd.f32 %v5636, %v5808
        %v5810 = vpop.f32.mrf.mxu0
        %v5811 = vadd.f32 %v5636, %v5810
        %5812 = vmatmul.bf16.gmra.mxu0 %v5598
        %v5813 = vpop.f32.mrf.mxu0
        %v5814 = vadd.f32 %v5636, %v5813
        %v5815 = vpop.f32.mrf.mxu0
        %v5816 = vadd.f32 %v5636, %v5815
        %5817 = vmatmul.bf16.gmra.mxu0 %v5600
        %v5818 = vpop.f32.mrf.mxu0
        %v5819 = vadd.f32 %v5636, %v5818
        %v5820 = vpop.f32.mrf.mxu0
        %v5821 = vadd.f32 %v5636, %v5820
        %5822 = vdwg.mxu0
        %5823 = vmatpush.bf16.msra.mxu0 %v5717
        %5824 = vmatpush.bf16.msra.mxu0 %v5716
        %5825 = vmatpush.bf16.msra.mxu0 %v5715
        %5826 = vmatpush.bf16.msra.mxu0 %v5714
        %5827 = vmatpush.bf16.msra.mxu0 %v5713
        %5828 = vmatpush.bf16.msra.mxu0 %v5712
        %5829 = vmatpush.bf16.msra.mxu0 %v5711
        %5830 = vmatpush.bf16.msra.mxu0 %v5710
        %5831 = vmatmul.bf16.gmra.mxu0 %v5571
        %v5832 = vpop.f32.mrf.mxu0
        %v5833 = vadd.f32 %v5744, %v5832
        %v5834 = vpop.f32.mrf.mxu0
        %v5835 = vadd.f32 %v5746, %v5834
        %5836 = vmatmul.bf16.gmra.mxu0 %v5573
        %v5837 = vpop.f32.mrf.mxu0
        %v5838 = vadd.f32 %v5749, %v5837
        %v5839 = vpop.f32.mrf.mxu0
        %v5840 = vadd.f32 %v5751, %v5839
        %5841 = vmatmul.bf16.gmra.mxu0 %v5575
        %v5842 = vpop.f32.mrf.mxu0
        %v5843 = vadd.f32 %v5754, %v5842
        %v5844 = vpop.f32.mrf.mxu0
        %v5845 = vadd.f32 %v5756, %v5844
        %5846 = vmatmul.bf16.gmra.mxu0 %v5577
        %v5847 = vpop.f32.mrf.mxu0
        %v5848 = vadd.f32 %v5759, %v5847
        %v5849 = vpop.f32.mrf.mxu0
        %v5850 = vadd.f32 %v5761, %v5849
        %5851 = vmatmul.bf16.gmra.mxu0 %v5579
        %v5852 = vpop.f32.mrf.mxu0
        %v5853 = vadd.f32 %v5764, %v5852
        %v5854 = vpop.f32.mrf.mxu0
        %v5855 = vadd.f32 %v5766, %v5854
        %5856 = vmatmul.bf16.gmra.mxu0 %v5581
        %v5857 = vpop.f32.mrf.mxu0
        %v5858 = vadd.f32 %v5769, %v5857
        %v5859 = vpop.f32.mrf.mxu0
        %v5860 = vadd.f32 %v5771, %v5859
        %5861 = vmatmul.bf16.gmra.mxu0 %v5583
        %v5862 = vpop.f32.mrf.mxu0
        %v5863 = vadd.f32 %v5774, %v5862
        %v5864 = vpop.f32.mrf.mxu0
        %v5865 = vadd.f32 %v5776, %v5864
        %5866 = vmatmul.bf16.gmra.mxu0 %v5585
        %v5867 = vpop.f32.mrf.mxu0
        %v5868 = vadd.f32 %v5779, %v5867
        %v5869 = vpop.f32.mrf.mxu0
        %v5870 = vadd.f32 %v5781, %v5869
        %5871 = vmatmul.bf16.gmra.mxu0 %v5587
        %v5872 = vpop.f32.mrf.mxu0
        %v5873 = vadd.f32 %v5784, %v5872
        %v5874 = vpop.f32.mrf.mxu0
        %v5875 = vadd.f32 %v5786, %v5874
        %5876 = vmatmul.bf16.gmra.mxu0 %v5589
        %v5877 = vpop.f32.mrf.mxu0
        %v5878 = vadd.f32 %v5789, %v5877
        %v5879 = vpop.f32.mrf.mxu0
        %v5880 = vadd.f32 %v5791, %v5879
        %5881 = vmatmul.bf16.gmra.mxu0 %v5591
        %v5882 = vpop.f32.mrf.mxu0
        %v5883 = vadd.f32 %v5794, %v5882
        %v5884 = vpop.f32.mrf.mxu0
        %v5885 = vadd.f32 %v5796, %v5884
        %5886 = vmatmul.bf16.gmra.mxu0 %v5593
        %v5887 = vpop.f32.mrf.mxu0
        %v5888 = vadd.f32 %v5799, %v5887
        %v5889 = vpop.f32.mrf.mxu0
        %v5890 = vadd.f32 %v5801, %v5889
        %5891 = vmatmul.bf16.gmra.mxu0 %v5595
        %v5892 = vpop.f32.mrf.mxu0
        %v5893 = vadd.f32 %v5804, %v5892
        %v5894 = vpop.f32.mrf.mxu0
        %v5895 = vadd.f32 %v5806, %v5894
        %5896 = vmatmul.bf16.gmra.mxu0 %v5597
        %v5897 = vpop.f32.mrf.mxu0
        %v5898 = vadd.f32 %v5809, %v5897
        %v5899 = vpop.f32.mrf.mxu0
        %v5900 = vadd.f32 %v5811, %v5899
        %5901 = vmatmul.bf16.gmra.mxu0 %v5599
        %v5902 = vpop.f32.mrf.mxu0
        %v5903 = vadd.f32 %v5814, %v5902
        %v5904 = vpop.f32.mrf.mxu0
        %v5905 = vadd.f32 %v5816, %v5904
        %5906 = vmatmul.bf16.gmra.mxu0 %v5601
        %v5907 = vpop.f32.mrf.mxu0
        %v5908 = vadd.f32 %v5819, %v5907
        %v5909 = vpop.f32.mrf.mxu0
        %v5910 = vadd.f32 %v5821, %v5909
        %5911 = vdwg.mxu0
        %v5912 = vxor.u32 %v5833, 2147483648
        %v5913 = vxor.u32 %v5835, 2147483648
        %v5914 = vxor.u32 %v5838, 2147483648
        %v5915 = vxor.u32 %v5840, 2147483648
        %v5916 = vxor.u32 %v5843, 2147483648
        %v5917 = vxor.u32 %v5845, 2147483648
        %v5918 = vxor.u32 %v5848, 2147483648
        %v5919 = vxor.u32 %v5850, 2147483648
        %v5920 = vxor.u32 %v5853, 2147483648
        %v5921 = vxor.u32 %v5855, 2147483648
        %v5922 = vxor.u32 %v5858, 2147483648
        %v5923 = vxor.u32 %v5860, 2147483648
        %v5924 = vxor.u32 %v5863, 2147483648
        %v5925 = vxor.u32 %v5865, 2147483648
        %v5926 = vxor.u32 %v5868, 2147483648
        %v5927 = vxor.u32 %v5870, 2147483648
        %v5928 = vxor.u32 %v5873, 2147483648
        %v5929 = vxor.u32 %v5875, 2147483648
        %v5930 = vxor.u32 %v5878, 2147483648
        %v5931 = vxor.u32 %v5880, 2147483648
        %v5932 = vxor.u32 %v5883, 2147483648
        %v5933 = vxor.u32 %v5885, 2147483648
        %v5934 = vxor.u32 %v5888, 2147483648
        %v5935 = vxor.u32 %v5890, 2147483648
        %v5936 = vxor.u32 %v5893, 2147483648
        %v5937 = vxor.u32 %v5895, 2147483648
        %v5938 = vxor.u32 %v5898, 2147483648
        %v5939 = vxor.u32 %v5900, 2147483648
        %v5940 = vxor.u32 %v5903, 2147483648
        %v5941 = vxor.u32 %v5905, 2147483648
        %v5942 = vxor.u32 %v5908, 2147483648
        %v5943 = vxor.u32 %v5910, 2147483648
        %v5944 = vmul.f32 %v5912, 1.442695
        %v5945 = vpow.pop %v5944
        %v5946 = vmul.f32 %v5913, 1.442695
        %v5947 = vpow.pop %v5946
        %v5948 = vmul.f32 %v5914, 1.442695
        %v5949 = vpow.pop %v5948
        %v5950 = vmul.f32 %v5915, 1.442695
        %v5951 = vpow.pop %v5950
        %v5952 = vmul.f32 %v5916, 1.442695
        %v5953 = vpow.pop %v5952
        %v5954 = vmul.f32 %v5917, 1.442695
        %v5955 = vpow.pop %v5954
        %v5956 = vmul.f32 %v5918, 1.442695
        %v5957 = vpow.pop %v5956
        %v5958 = vmul.f32 %v5919, 1.442695
        %v5959 = vpow.pop %v5958
        %v5960 = vmul.f32 %v5920, 1.442695
        %v5961 = vpow.pop %v5960
        %v5962 = vmul.f32 %v5921, 1.442695
        %v5963 = vpow.pop %v5962
        %v5964 = vmul.f32 %v5922, 1.442695
        %v5965 = vpow.pop %v5964
        %v5966 = vmul.f32 %v5923, 1.442695
        %v5967 = vpow.pop %v5966
        %v5968 = vmul.f32 %v5924, 1.442695
        %v5969 = vpow.pop %v5968
        %v5970 = vmul.f32 %v5925, 1.442695
        %v5971 = vpow.pop %v5970
        %v5972 = vmul.f32 %v5926, 1.442695
        %v5973 = vpow.pop %v5972
        %v5974 = vmul.f32 %v5927, 1.442695
        %v5975 = vpow.pop %v5974
        %v5976 = vmul.f32 %v5928, 1.442695
        %v5977 = vpow.pop %v5976
        %v5978 = vmul.f32 %v5929, 1.442695
        %v5979 = vpow.pop %v5978
        %v5980 = vmul.f32 %v5930, 1.442695
        %v5981 = vpow.pop %v5980
        %v5982 = vmul.f32 %v5931, 1.442695
        %v5983 = vpow.pop %v5982
        %v5984 = vmul.f32 %v5932, 1.442695
        %v5985 = vpow.pop %v5984
        %v5986 = vmul.f32 %v5933, 1.442695
        %v5987 = vpow.pop %v5986
        %v5988 = vmul.f32 %v5934, 1.442695
        %v5989 = vpow.pop %v5988
        %v5990 = vmul.f32 %v5935, 1.442695
        %v5991 = vpow.pop %v5990
        %v5992 = vmul.f32 %v5936, 1.442695
        %v5993 = vpow.pop %v5992
        %v5994 = vmul.f32 %v5937, 1.442695
        %v5995 = vpow.pop %v5994
        %v5996 = vmul.f32 %v5938, 1.442695
        %v5997 = vpow.pop %v5996
        %v5998 = vmul.f32 %v5939, 1.442695
        %v5999 = vpow.pop %v5998
        %v6000 = vmul.f32 %v5940, 1.442695
        %v6001 = vpow.pop %v6000
        %v6002 = vmul.f32 %v5941, 1.442695
        %v6003 = vpow.pop %v6002
        %v6004 = vmul.f32 %v5942, 1.442695
        %v6005 = vpow.pop %v6004
        %v6006 = vmul.f32 %v5943, 1.442695
        %v6007 = vpow.pop %v6006
        %v6008 = vadd.f32 %v5945, 1.0
        %v6009 = vadd.f32 %v5947, 1.0
        %v6010 = vadd.f32 %v5949, 1.0
        %v6011 = vadd.f32 %v5951, 1.0
        %v6012 = vadd.f32 %v5953, 1.0
        %v6013 = vadd.f32 %v5955, 1.0
        %v6014 = vadd.f32 %v5957, 1.0
        %v6015 = vadd.f32 %v5959, 1.0
        %v6016 = vadd.f32 %v5961, 1.0
        %v6017 = vadd.f32 %v5963, 1.0
        %v6018 = vadd.f32 %v5965, 1.0
        %v6019 = vadd.f32 %v5967, 1.0
        %v6020 = vadd.f32 %v5969, 1.0
        %v6021 = vadd.f32 %v5971, 1.0
        %v6022 = vadd.f32 %v5973, 1.0
        %v6023 = vadd.f32 %v5975, 1.0
        %v6024 = vadd.f32 %v5977, 1.0
        %v6025 = vadd.f32 %v5979, 1.0
        %v6026 = vadd.f32 %v5981, 1.0
        %v6027 = vadd.f32 %v5983, 1.0
        %v6028 = vadd.f32 %v5985, 1.0
        %v6029 = vadd.f32 %v5987, 1.0
        %v6030 = vadd.f32 %v5989, 1.0
        %v6031 = vadd.f32 %v5991, 1.0
        %v6032 = vadd.f32 %v5993, 1.0
        %v6033 = vadd.f32 %v5995, 1.0
        %v6034 = vadd.f32 %v5997, 1.0
        %v6035 = vadd.f32 %v5999, 1.0
        %v6036 = vadd.f32 %v6001, 1.0
        %v6037 = vadd.f32 %v6003, 1.0
        %v6038 = vadd.f32 %v6005, 1.0
        %v6039 = vadd.f32 %v6007, 1.0
        %v6040 = vrcp.pop %v6008
        %v6041 = vmul.f32 %v6008, %v6040
        %v6042 = vsub.f32 1.0, %v6041
        %v6043 = vmul.f32 %v6040, %v6042
        %v6044 = vadd.f32 %v6040, %v6043
        %vm6045 = vweird.f32 %v6008
        %vm6046 = vweird.f32 %v6040
        %vm6047 = vmor %vm6045, %vm6046
        %v6048 = vsel %vm6047, %v6040, %v6044
        %v6049 = vand.u32 2147483647, %v6008
        %vm6050 = vcmp.eq.f32.partialorder %v6049, 8.507059e+37
        %v6051 = vand.u32 %v6008, 2147483648
        %v6052 = vor.u32 1.1754944e-38, %v6051
        %v6053 = vsel %vm6050, %v6052, %v6048
        %v6054 = vmul.f32 1.0, %v6053
        %v6055 = vrcp.pop %v6009
        %v6056 = vmul.f32 %v6009, %v6055
        %v6057 = vsub.f32 1.0, %v6056
        %v6058 = vmul.f32 %v6055, %v6057
        %v6059 = vadd.f32 %v6055, %v6058
        %vm6060 = vweird.f32 %v6009
        %vm6061 = vweird.f32 %v6055
        %vm6062 = vmor %vm6060, %vm6061
        %v6063 = vsel %vm6062, %v6055, %v6059
        %v6064 = vand.u32 2147483647, %v6009
        %vm6065 = vcmp.eq.f32.partialorder %v6064, 8.507059e+37
        %v6066 = vand.u32 %v6009, 2147483648
        %v6067 = vor.u32 1.1754944e-38, %v6066
        %v6068 = vsel %vm6065, %v6067, %v6063
        %v6069 = vmul.f32 1.0, %v6068
        %v6070 = vrcp.pop %v6010
        %v6071 = vmul.f32 %v6010, %v6070
        %v6072 = vsub.f32 1.0, %v6071
        %v6073 = vmul.f32 %v6070, %v6072
        %v6074 = vadd.f32 %v6070, %v6073
        %vm6075 = vweird.f32 %v6010
        %vm6076 = vweird.f32 %v6070
        %vm6077 = vmor %vm6075, %vm6076
        %v6078 = vsel %vm6077, %v6070, %v6074
        %v6079 = vand.u32 2147483647, %v6010
        %vm6080 = vcmp.eq.f32.partialorder %v6079, 8.507059e+37
        %v6081 = vand.u32 %v6010, 2147483648
        %v6082 = vor.u32 1.1754944e-38, %v6081
        %v6083 = vsel %vm6080, %v6082, %v6078
        %v6084 = vmul.f32 1.0, %v6083
        %v6085 = vrcp.pop %v6011
        %v6086 = vmul.f32 %v6011, %v6085
        %v6087 = vsub.f32 1.0, %v6086
        %v6088 = vmul.f32 %v6085, %v6087
        %v6089 = vadd.f32 %v6085, %v6088
        %vm6090 = vweird.f32 %v6011
        %vm6091 = vweird.f32 %v6085
        %vm6092 = vmor %vm6090, %vm6091
        %v6093 = vsel %vm6092, %v6085, %v6089
        %v6094 = vand.u32 2147483647, %v6011
        %vm6095 = vcmp.eq.f32.partialorder %v6094, 8.507059e+37
        %v6096 = vand.u32 %v6011, 2147483648
        %v6097 = vor.u32 1.1754944e-38, %v6096
        %v6098 = vsel %vm6095, %v6097, %v6093
        %v6099 = vmul.f32 1.0, %v6098
        %v6100 = vrcp.pop %v6012
        %v6101 = vmul.f32 %v6012, %v6100
        %v6102 = vsub.f32 1.0, %v6101
        %v6103 = vmul.f32 %v6100, %v6102
        %v6104 = vadd.f32 %v6100, %v6103
        %vm6105 = vweird.f32 %v6012
        %vm6106 = vweird.f32 %v6100
        %vm6107 = vmor %vm6105, %vm6106
        %v6108 = vsel %vm6107, %v6100, %v6104
        %v6109 = vand.u32 2147483647, %v6012
        %vm6110 = vcmp.eq.f32.partialorder %v6109, 8.507059e+37
        %v6111 = vand.u32 %v6012, 2147483648
        %v6112 = vor.u32 1.1754944e-38, %v6111
        %v6113 = vsel %vm6110, %v6112, %v6108
        %v6114 = vmul.f32 1.0, %v6113
        %v6115 = vrcp.pop %v6013
        %v6116 = vmul.f32 %v6013, %v6115
        %v6117 = vsub.f32 1.0, %v6116
        %v6118 = vmul.f32 %v6115, %v6117
        %v6119 = vadd.f32 %v6115, %v6118
        %vm6120 = vweird.f32 %v6013
        %vm6121 = vweird.f32 %v6115
        %vm6122 = vmor %vm6120, %vm6121
        %v6123 = vsel %vm6122, %v6115, %v6119
        %v6124 = vand.u32 2147483647, %v6013
        %vm6125 = vcmp.eq.f32.partialorder %v6124, 8.507059e+37
        %v6126 = vand.u32 %v6013, 2147483648
        %v6127 = vor.u32 1.1754944e-38, %v6126
        %v6128 = vsel %vm6125, %v6127, %v6123
        %v6129 = vmul.f32 1.0, %v6128
        %v6130 = vrcp.pop %v6014
        %v6131 = vmul.f32 %v6014, %v6130
        %v6132 = vsub.f32 1.0, %v6131
        %v6133 = vmul.f32 %v6130, %v6132
        %v6134 = vadd.f32 %v6130, %v6133
        %vm6135 = vweird.f32 %v6014
        %vm6136 = vweird.f32 %v6130
        %vm6137 = vmor %vm6135, %vm6136
        %v6138 = vsel %vm6137, %v6130, %v6134
        %v6139 = vand.u32 2147483647, %v6014
        %vm6140 = vcmp.eq.f32.partialorder %v6139, 8.507059e+37
        %v6141 = vand.u32 %v6014, 2147483648
        %v6142 = vor.u32 1.1754944e-38, %v6141
        %v6143 = vsel %vm6140, %v6142, %v6138
        %v6144 = vmul.f32 1.0, %v6143
        %v6145 = vrcp.pop %v6015
        %v6146 = vmul.f32 %v6015, %v6145
        %v6147 = vsub.f32 1.0, %v6146
        %v6148 = vmul.f32 %v6145, %v6147
        %v6149 = vadd.f32 %v6145, %v6148
        %vm6150 = vweird.f32 %v6015
        %vm6151 = vweird.f32 %v6145
        %vm6152 = vmor %vm6150, %vm6151
        %v6153 = vsel %vm6152, %v6145, %v6149
        %v6154 = vand.u32 2147483647, %v6015
        %vm6155 = vcmp.eq.f32.partialorder %v6154, 8.507059e+37
        %v6156 = vand.u32 %v6015, 2147483648
        %v6157 = vor.u32 1.1754944e-38, %v6156
        %v6158 = vsel %vm6155, %v6157, %v6153
        %v6159 = vmul.f32 1.0, %v6158
        %v6160 = vrcp.pop %v6016
        %v6161 = vmul.f32 %v6016, %v6160
        %v6162 = vsub.f32 1.0, %v6161
        %v6163 = vmul.f32 %v6160, %v6162
        %v6164 = vadd.f32 %v6160, %v6163
        %vm6165 = vweird.f32 %v6016
        %vm6166 = vweird.f32 %v6160
        %vm6167 = vmor %vm6165, %vm6166
        %v6168 = vsel %vm6167, %v6160, %v6164
        %v6169 = vand.u32 2147483647, %v6016
        %vm6170 = vcmp.eq.f32.partialorder %v6169, 8.507059e+37
        %v6171 = vand.u32 %v6016, 2147483648
        %v6172 = vor.u32 1.1754944e-38, %v6171
        %v6173 = vsel %vm6170, %v6172, %v6168
        %v6174 = vmul.f32 1.0, %v6173
        %v6175 = vrcp.pop %v6017
        %v6176 = vmul.f32 %v6017, %v6175
        %v6177 = vsub.f32 1.0, %v6176
        %v6178 = vmul.f32 %v6175, %v6177
        %v6179 = vadd.f32 %v6175, %v6178
        %vm6180 = vweird.f32 %v6017
        %vm6181 = vweird.f32 %v6175
        %vm6182 = vmor %vm6180, %vm6181
        %v6183 = vsel %vm6182, %v6175, %v6179
        %v6184 = vand.u32 2147483647, %v6017
        %vm6185 = vcmp.eq.f32.partialorder %v6184, 8.507059e+37
        %v6186 = vand.u32 %v6017, 2147483648
        %v6187 = vor.u32 1.1754944e-38, %v6186
        %v6188 = vsel %vm6185, %v6187, %v6183
        %v6189 = vmul.f32 1.0, %v6188
        %v6190 = vrcp.pop %v6018
        %v6191 = vmul.f32 %v6018, %v6190
        %v6192 = vsub.f32 1.0, %v6191
        %v6193 = vmul.f32 %v6190, %v6192
        %v6194 = vadd.f32 %v6190, %v6193
        %vm6195 = vweird.f32 %v6018
        %vm6196 = vweird.f32 %v6190
        %vm6197 = vmor %vm6195, %vm6196
        %v6198 = vsel %vm6197, %v6190, %v6194
        %v6199 = vand.u32 2147483647, %v6018
        %vm6200 = vcmp.eq.f32.partialorder %v6199, 8.507059e+37
        %v6201 = vand.u32 %v6018, 2147483648
        %v6202 = vor.u32 1.1754944e-38, %v6201
        %v6203 = vsel %vm6200, %v6202, %v6198
        %v6204 = vmul.f32 1.0, %v6203
        %v6205 = vrcp.pop %v6019
        %v6206 = vmul.f32 %v6019, %v6205
        %v6207 = vsub.f32 1.0, %v6206
        %v6208 = vmul.f32 %v6205, %v6207
        %v6209 = vadd.f32 %v6205, %v6208
        %vm6210 = vweird.f32 %v6019
        %vm6211 = vweird.f32 %v6205
        %vm6212 = vmor %vm6210, %vm6211
        %v6213 = vsel %vm6212, %v6205, %v6209
        %v6214 = vand.u32 2147483647, %v6019
        %vm6215 = vcmp.eq.f32.partialorder %v6214, 8.507059e+37
        %v6216 = vand.u32 %v6019, 2147483648
        %v6217 = vor.u32 1.1754944e-38, %v6216
        %v6218 = vsel %vm6215, %v6217, %v6213
        %v6219 = vmul.f32 1.0, %v6218
        %v6220 = vrcp.pop %v6020
        %v6221 = vmul.f32 %v6020, %v6220
        %v6222 = vsub.f32 1.0, %v6221
        %v6223 = vmul.f32 %v6220, %v6222
        %v6224 = vadd.f32 %v6220, %v6223
        %vm6225 = vweird.f32 %v6020
        %vm6226 = vweird.f32 %v6220
        %vm6227 = vmor %vm6225, %vm6226
        %v6228 = vsel %vm6227, %v6220, %v6224
        %v6229 = vand.u32 2147483647, %v6020
        %vm6230 = vcmp.eq.f32.partialorder %v6229, 8.507059e+37
        %v6231 = vand.u32 %v6020, 2147483648
        %v6232 = vor.u32 1.1754944e-38, %v6231
        %v6233 = vsel %vm6230, %v6232, %v6228
        %v6234 = vmul.f32 1.0, %v6233
        %v6235 = vrcp.pop %v6021
        %v6236 = vmul.f32 %v6021, %v6235
        %v6237 = vsub.f32 1.0, %v6236
        %v6238 = vmul.f32 %v6235, %v6237
        %v6239 = vadd.f32 %v6235, %v6238
        %vm6240 = vweird.f32 %v6021
        %vm6241 = vweird.f32 %v6235
        %vm6242 = vmor %vm6240, %vm6241
        %v6243 = vsel %vm6242, %v6235, %v6239
        %v6244 = vand.u32 2147483647, %v6021
        %vm6245 = vcmp.eq.f32.partialorder %v6244, 8.507059e+37
        %v6246 = vand.u32 %v6021, 2147483648
        %v6247 = vor.u32 1.1754944e-38, %v6246
        %v6248 = vsel %vm6245, %v6247, %v6243
        %v6249 = vmul.f32 1.0, %v6248
        %v6250 = vrcp.pop %v6022
        %v6251 = vmul.f32 %v6022, %v6250
        %v6252 = vsub.f32 1.0, %v6251
        %v6253 = vmul.f32 %v6250, %v6252
        %v6254 = vadd.f32 %v6250, %v6253
        %vm6255 = vweird.f32 %v6022
        %vm6256 = vweird.f32 %v6250
        %vm6257 = vmor %vm6255, %vm6256
        %v6258 = vsel %vm6257, %v6250, %v6254
        %v6259 = vand.u32 2147483647, %v6022
        %vm6260 = vcmp.eq.f32.partialorder %v6259, 8.507059e+37
        %v6261 = vand.u32 %v6022, 2147483648
        %v6262 = vor.u32 1.1754944e-38, %v6261
        %v6263 = vsel %vm6260, %v6262, %v6258
        %v6264 = vmul.f32 1.0, %v6263
        %v6265 = vrcp.pop %v6023
        %v6266 = vmul.f32 %v6023, %v6265
        %v6267 = vsub.f32 1.0, %v6266
        %v6268 = vmul.f32 %v6265, %v6267
        %v6269 = vadd.f32 %v6265, %v6268
        %vm6270 = vweird.f32 %v6023
        %vm6271 = vweird.f32 %v6265
        %vm6272 = vmor %vm6270, %vm6271
        %v6273 = vsel %vm6272, %v6265, %v6269
        %v6274 = vand.u32 2147483647, %v6023
        %vm6275 = vcmp.eq.f32.partialorder %v6274, 8.507059e+37
        %v6276 = vand.u32 %v6023, 2147483648
        %v6277 = vor.u32 1.1754944e-38, %v6276
        %v6278 = vsel %vm6275, %v6277, %v6273
        %v6279 = vmul.f32 1.0, %v6278
        %v6280 = vrcp.pop %v6024
        %v6281 = vmul.f32 %v6024, %v6280
        %v6282 = vsub.f32 1.0, %v6281
        %v6283 = vmul.f32 %v6280, %v6282
        %v6284 = vadd.f32 %v6280, %v6283
        %vm6285 = vweird.f32 %v6024
        %vm6286 = vweird.f32 %v6280
        %vm6287 = vmor %vm6285, %vm6286
        %v6288 = vsel %vm6287, %v6280, %v6284
        %v6289 = vand.u32 2147483647, %v6024
        %vm6290 = vcmp.eq.f32.partialorder %v6289, 8.507059e+37
        %v6291 = vand.u32 %v6024, 2147483648
        %v6292 = vor.u32 1.1754944e-38, %v6291
        %v6293 = vsel %vm6290, %v6292, %v6288
        %v6294 = vmul.f32 1.0, %v6293
        %v6295 = vrcp.pop %v6025
        %v6296 = vmul.f32 %v6025, %v6295
        %v6297 = vsub.f32 1.0, %v6296
        %v6298 = vmul.f32 %v6295, %v6297
        %v6299 = vadd.f32 %v6295, %v6298
        %vm6300 = vweird.f32 %v6025
        %vm6301 = vweird.f32 %v6295
        %vm6302 = vmor %vm6300, %vm6301
        %v6303 = vsel %vm6302, %v6295, %v6299
        %v6304 = vand.u32 2147483647, %v6025
        %vm6305 = vcmp.eq.f32.partialorder %v6304, 8.507059e+37
        %v6306 = vand.u32 %v6025, 2147483648
        %v6307 = vor.u32 1.1754944e-38, %v6306
        %v6308 = vsel %vm6305, %v6307, %v6303
        %v6309 = vmul.f32 1.0, %v6308
        %v6310 = vrcp.pop %v6026
        %v6311 = vmul.f32 %v6026, %v6310
        %v6312 = vsub.f32 1.0, %v6311
        %v6313 = vmul.f32 %v6310, %v6312
        %v6314 = vadd.f32 %v6310, %v6313
        %vm6315 = vweird.f32 %v6026
        %vm6316 = vweird.f32 %v6310
        %vm6317 = vmor %vm6315, %vm6316
        %v6318 = vsel %vm6317, %v6310, %v6314
        %v6319 = vand.u32 2147483647, %v6026
        %vm6320 = vcmp.eq.f32.partialorder %v6319, 8.507059e+37
        %v6321 = vand.u32 %v6026, 2147483648
        %v6322 = vor.u32 1.1754944e-38, %v6321
        %v6323 = vsel %vm6320, %v6322, %v6318
        %v6324 = vmul.f32 1.0, %v6323
        %v6325 = vrcp.pop %v6027
        %v6326 = vmul.f32 %v6027, %v6325
        %v6327 = vsub.f32 1.0, %v6326
        %v6328 = vmul.f32 %v6325, %v6327
        %v6329 = vadd.f32 %v6325, %v6328
        %vm6330 = vweird.f32 %v6027
        %vm6331 = vweird.f32 %v6325
        %vm6332 = vmor %vm6330, %vm6331
        %v6333 = vsel %vm6332, %v6325, %v6329
        %v6334 = vand.u32 2147483647, %v6027
        %vm6335 = vcmp.eq.f32.partialorder %v6334, 8.507059e+37
        %v6336 = vand.u32 %v6027, 2147483648
        %v6337 = vor.u32 1.1754944e-38, %v6336
        %v6338 = vsel %vm6335, %v6337, %v6333
        %v6339 = vmul.f32 1.0, %v6338
        %v6340 = vrcp.pop %v6028
        %v6341 = vmul.f32 %v6028, %v6340
        %v6342 = vsub.f32 1.0, %v6341
        %v6343 = vmul.f32 %v6340, %v6342
        %v6344 = vadd.f32 %v6340, %v6343
        %vm6345 = vweird.f32 %v6028
        %vm6346 = vweird.f32 %v6340
        %vm6347 = vmor %vm6345, %vm6346
        %v6348 = vsel %vm6347, %v6340, %v6344
        %v6349 = vand.u32 2147483647, %v6028
        %vm6350 = vcmp.eq.f32.partialorder %v6349, 8.507059e+37
        %v6351 = vand.u32 %v6028, 2147483648
        %v6352 = vor.u32 1.1754944e-38, %v6351
        %v6353 = vsel %vm6350, %v6352, %v6348
        %v6354 = vmul.f32 1.0, %v6353
        %v6355 = vrcp.pop %v6029
        %v6356 = vmul.f32 %v6029, %v6355
        %v6357 = vsub.f32 1.0, %v6356
        %v6358 = vmul.f32 %v6355, %v6357
        %v6359 = vadd.f32 %v6355, %v6358
        %vm6360 = vweird.f32 %v6029
        %vm6361 = vweird.f32 %v6355
        %vm6362 = vmor %vm6360, %vm6361
        %v6363 = vsel %vm6362, %v6355, %v6359
        %v6364 = vand.u32 2147483647, %v6029
        %vm6365 = vcmp.eq.f32.partialorder %v6364, 8.507059e+37
        %v6366 = vand.u32 %v6029, 2147483648
        %v6367 = vor.u32 1.1754944e-38, %v6366
        %v6368 = vsel %vm6365, %v6367, %v6363
        %v6369 = vmul.f32 1.0, %v6368
        %v6370 = vrcp.pop %v6030
        %v6371 = vmul.f32 %v6030, %v6370
        %v6372 = vsub.f32 1.0, %v6371
        %v6373 = vmul.f32 %v6370, %v6372
        %v6374 = vadd.f32 %v6370, %v6373
        %vm6375 = vweird.f32 %v6030
        %vm6376 = vweird.f32 %v6370
        %vm6377 = vmor %vm6375, %vm6376
        %v6378 = vsel %vm6377, %v6370, %v6374
        %v6379 = vand.u32 2147483647, %v6030
        %vm6380 = vcmp.eq.f32.partialorder %v6379, 8.507059e+37
        %v6381 = vand.u32 %v6030, 2147483648
        %v6382 = vor.u32 1.1754944e-38, %v6381
        %v6383 = vsel %vm6380, %v6382, %v6378
        %v6384 = vmul.f32 1.0, %v6383
        %v6385 = vrcp.pop %v6031
        %v6386 = vmul.f32 %v6031, %v6385
        %v6387 = vsub.f32 1.0, %v6386
        %v6388 = vmul.f32 %v6385, %v6387
        %v6389 = vadd.f32 %v6385, %v6388
        %vm6390 = vweird.f32 %v6031
        %vm6391 = vweird.f32 %v6385
        %vm6392 = vmor %vm6390, %vm6391
        %v6393 = vsel %vm6392, %v6385, %v6389
        %v6394 = vand.u32 2147483647, %v6031
        %vm6395 = vcmp.eq.f32.partialorder %v6394, 8.507059e+37
        %v6396 = vand.u32 %v6031, 2147483648
        %v6397 = vor.u32 1.1754944e-38, %v6396
        %v6398 = vsel %vm6395, %v6397, %v6393
        %v6399 = vmul.f32 1.0, %v6398
        %v6400 = vrcp.pop %v6032
        %v6401 = vmul.f32 %v6032, %v6400
        %v6402 = vsub.f32 1.0, %v6401
        %v6403 = vmul.f32 %v6400, %v6402
        %v6404 = vadd.f32 %v6400, %v6403
        %vm6405 = vweird.f32 %v6032
        %vm6406 = vweird.f32 %v6400
        %vm6407 = vmor %vm6405, %vm6406
        %v6408 = vsel %vm6407, %v6400, %v6404
        %v6409 = vand.u32 2147483647, %v6032
        %vm6410 = vcmp.eq.f32.partialorder %v6409, 8.507059e+37
        %v6411 = vand.u32 %v6032, 2147483648
        %v6412 = vor.u32 1.1754944e-38, %v6411
        %v6413 = vsel %vm6410, %v6412, %v6408
        %v6414 = vmul.f32 1.0, %v6413
        %v6415 = vrcp.pop %v6033
        %v6416 = vmul.f32 %v6033, %v6415
        %v6417 = vsub.f32 1.0, %v6416
        %v6418 = vmul.f32 %v6415, %v6417
        %v6419 = vadd.f32 %v6415, %v6418
        %vm6420 = vweird.f32 %v6033
        %vm6421 = vweird.f32 %v6415
        %vm6422 = vmor %vm6420, %vm6421
        %v6423 = vsel %vm6422, %v6415, %v6419
        %v6424 = vand.u32 2147483647, %v6033
        %vm6425 = vcmp.eq.f32.partialorder %v6424, 8.507059e+37
        %v6426 = vand.u32 %v6033, 2147483648
        %v6427 = vor.u32 1.1754944e-38, %v6426
        %v6428 = vsel %vm6425, %v6427, %v6423
        %v6429 = vmul.f32 1.0, %v6428
        %v6430 = vrcp.pop %v6034
        %v6431 = vmul.f32 %v6034, %v6430
        %v6432 = vsub.f32 1.0, %v6431
        %v6433 = vmul.f32 %v6430, %v6432
        %v6434 = vadd.f32 %v6430, %v6433
        %vm6435 = vweird.f32 %v6034
        %vm6436 = vweird.f32 %v6430
        %vm6437 = vmor %vm6435, %vm6436
        %v6438 = vsel %vm6437, %v6430, %v6434
        %v6439 = vand.u32 2147483647, %v6034
        %vm6440 = vcmp.eq.f32.partialorder %v6439, 8.507059e+37
        %v6441 = vand.u32 %v6034, 2147483648
        %v6442 = vor.u32 1.1754944e-38, %v6441
        %v6443 = vsel %vm6440, %v6442, %v6438
        %v6444 = vmul.f32 1.0, %v6443
        %v6445 = vrcp.pop %v6035
        %v6446 = vmul.f32 %v6035, %v6445
        %v6447 = vsub.f32 1.0, %v6446
        %v6448 = vmul.f32 %v6445, %v6447
        %v6449 = vadd.f32 %v6445, %v6448
        %vm6450 = vweird.f32 %v6035
        %vm6451 = vweird.f32 %v6445
        %vm6452 = vmor %vm6450, %vm6451
        %v6453 = vsel %vm6452, %v6445, %v6449
        %v6454 = vand.u32 2147483647, %v6035
        %vm6455 = vcmp.eq.f32.partialorder %v6454, 8.507059e+37
        %v6456 = vand.u32 %v6035, 2147483648
        %v6457 = vor.u32 1.1754944e-38, %v6456
        %v6458 = vsel %vm6455, %v6457, %v6453
        %v6459 = vmul.f32 1.0, %v6458
        %v6460 = vrcp.pop %v6036
        %v6461 = vmul.f32 %v6036, %v6460
        %v6462 = vsub.f32 1.0, %v6461
        %v6463 = vmul.f32 %v6460, %v6462
        %v6464 = vadd.f32 %v6460, %v6463
        %vm6465 = vweird.f32 %v6036
        %vm6466 = vweird.f32 %v6460
        %vm6467 = vmor %vm6465, %vm6466
        %v6468 = vsel %vm6467, %v6460, %v6464
        %v6469 = vand.u32 2147483647, %v6036
        %vm6470 = vcmp.eq.f32.partialorder %v6469, 8.507059e+37
        %v6471 = vand.u32 %v6036, 2147483648
        %v6472 = vor.u32 1.1754944e-38, %v6471
        %v6473 = vsel %vm6470, %v6472, %v6468
        %v6474 = vmul.f32 1.0, %v6473
        %v6475 = vrcp.pop %v6037
        %v6476 = vmul.f32 %v6037, %v6475
        %v6477 = vsub.f32 1.0, %v6476
        %v6478 = vmul.f32 %v6475, %v6477
        %v6479 = vadd.f32 %v6475, %v6478
        %vm6480 = vweird.f32 %v6037
        %vm6481 = vweird.f32 %v6475
        %vm6482 = vmor %vm6480, %vm6481
        %v6483 = vsel %vm6482, %v6475, %v6479
        %v6484 = vand.u32 2147483647, %v6037
        %vm6485 = vcmp.eq.f32.partialorder %v6484, 8.507059e+37
        %v6486 = vand.u32 %v6037, 2147483648
        %v6487 = vor.u32 1.1754944e-38, %v6486
        %v6488 = vsel %vm6485, %v6487, %v6483
        %v6489 = vmul.f32 1.0, %v6488
        %v6490 = vrcp.pop %v6038
        %v6491 = vmul.f32 %v6038, %v6490
        %v6492 = vsub.f32 1.0, %v6491
        %v6493 = vmul.f32 %v6490, %v6492
        %v6494 = vadd.f32 %v6490, %v6493
        %vm6495 = vweird.f32 %v6038
        %vm6496 = vweird.f32 %v6490
        %vm6497 = vmor %vm6495, %vm6496
        %v6498 = vsel %vm6497, %v6490, %v6494
        %v6499 = vand.u32 2147483647, %v6038
        %vm6500 = vcmp.eq.f32.partialorder %v6499, 8.507059e+37
        %v6501 = vand.u32 %v6038, 2147483648
        %v6502 = vor.u32 1.1754944e-38, %v6501
        %v6503 = vsel %vm6500, %v6502, %v6498
        %v6504 = vmul.f32 1.0, %v6503
        %v6505 = vrcp.pop %v6039
        %v6506 = vmul.f32 %v6039, %v6505
        %v6507 = vsub.f32 1.0, %v6506
        %v6508 = vmul.f32 %v6505, %v6507
        %v6509 = vadd.f32 %v6505, %v6508
        %vm6510 = vweird.f32 %v6039
        %vm6511 = vweird.f32 %v6505
        %vm6512 = vmor %vm6510, %vm6511
        %v6513 = vsel %vm6512, %v6505, %v6509
        %v6514 = vand.u32 2147483647, %v6039
        %vm6515 = vcmp.eq.f32.partialorder %v6514, 8.507059e+37
        %v6516 = vand.u32 %v6039, 2147483648
        %v6517 = vor.u32 1.1754944e-38, %v6516
        %v6518 = vsel %vm6515, %v6517, %v6513
        %v6519 = vmul.f32 1.0, %v6518
        %vm6520 = vcmask 23552
        %6521 = vst.msk [vmem:[%s274] sm:$0xff] %vm6520, %v6054
        %6522 = vst.msk [vmem:[%s274 + $0x8] sm:$0xff] %vm6520, %v6069
        %6523 = vst.msk [vmem:[%s274 + $0x10] sm:$0xff] %vm6520, %v6084
        %6524 = vst.msk [vmem:[%s274 + $0x18] sm:$0xff] %vm6520, %v6099
        %6525 = vst.msk [vmem:[%s274 + $0x20] sm:$0xff] %vm6520, %v6114
        %6526 = vst.msk [vmem:[%s274 + $0x28] sm:$0xff] %vm6520, %v6129
        %6527 = vst.msk [vmem:[%s274 + $0x30] sm:$0xff] %vm6520, %v6144
        %6528 = vst.msk [vmem:[%s274 + $0x38] sm:$0xff] %vm6520, %v6159
        %6529 = vst.msk [vmem:[%s274 + $0x40] sm:$0xff] %vm6520, %v6174
        %6530 = vst.msk [vmem:[%s274 + $0x48] sm:$0xff] %vm6520, %v6189
        %6531 = vst.msk [vmem:[%s274 + $0x50] sm:$0xff] %vm6520, %v6204
        %6532 = vst.msk [vmem:[%s274 + $0x58] sm:$0xff] %vm6520, %v6219
        %6533 = vst.msk [vmem:[%s274 + $0x60] sm:$0xff] %vm6520, %v6234
        %6534 = vst.msk [vmem:[%s274 + $0x68] sm:$0xff] %vm6520, %v6249
        %6535 = vst.msk [vmem:[%s274 + $0x70] sm:$0xff] %vm6520, %v6264
        %6536 = vst.msk [vmem:[%s274 + $0x78] sm:$0xff] %vm6520, %v6279
        %6537 = vst.msk [vmem:[%s274 + $0x80] sm:$0xff] %vm6520, %v6294
        %6538 = vst.msk [vmem:[%s274 + $0x88] sm:$0xff] %vm6520, %v6309
        %6539 = vst.msk [vmem:[%s274 + $0x90] sm:$0xff] %vm6520, %v6324
        %6540 = vst.msk [vmem:[%s274 + $0x98] sm:$0xff] %vm6520, %v6339
        %6541 = vst.msk [vmem:[%s274 + $0xa0] sm:$0xff] %vm6520, %v6354
        %6542 = vst.msk [vmem:[%s274 + $0xa8] sm:$0xff] %vm6520, %v6369
        %6543 = vst.msk [vmem:[%s274 + $0xb0] sm:$0xff] %vm6520, %v6384
        %6544 = vst.msk [vmem:[%s274 + $0xb8] sm:$0xff] %vm6520, %v6399
        %6545 = vst.msk [vmem:[%s274 + $0xc0] sm:$0xff] %vm6520, %v6414
        %6546 = vst.msk [vmem:[%s274 + $0xc8] sm:$0xff] %vm6520, %v6429
        %6547 = vst.msk [vmem:[%s274 + $0xd0] sm:$0xff] %vm6520, %v6444
        %6548 = vst.msk [vmem:[%s274 + $0xd8] sm:$0xff] %vm6520, %v6459
        %6549 = vst.msk [vmem:[%s274 + $0xe0] sm:$0xff] %vm6520, %v6474
        %6550 = vst.msk [vmem:[%s274 + $0xe8] sm:$0xff] %vm6520, %v6489
        %6551 = vst.msk [vmem:[%s274 + $0xf0] sm:$0xff] %vm6520, %v6504
        %6552 = vst.msk [vmem:[%s274 + $0xf8] sm:$0xff] %vm6520, %v6519
        %s6553 = smul.u32 32, %s20
        %p6554 = scmp.lt.s32.totalorder %s6553, 127
        %s6555 = scalar_select %p6554, %s6553, 127
        %s6556 = smul.addr %s6555, 8
        %s6557 = scalar_lea.vmem %s6, %s6556
        // Predicated region
        $region49: #{visit_pallas.1} parent=43 // pred_check
          %p6558 = pneg %p169
        $region50: #{visit_pallas.1} parent=43 // pred_check_branch
          %6560 = sbr.rel (%p6558) target = $region52
        $region51: #{visit_pallas.1} parent=43 // pred_region
          %s6561 = smul.u32 32, %s20
        $region52: #{visit_pallas.1} parent=43 // pred_fallthru
          _
      $region44: #{visit_pallas.1} parent=5 // pred_fallthru
        _
      %p6562 = scmp.le.s32.totalorder 2, %s15
      // Predicated region
      $region53: #{visit_pallas.1} parent=5 // pred_check
        %p6563 = pneg %p6562
      $region54: #{visit_pallas.1} parent=5 // pred_check_branch
        %6565 = sbr.rel (%p6563) target = $region56
      $region55: #{visit_pallas.1} parent=5 // pred_region
        %s6566 = ssub.s32 %s15, 2
        // Predicated region
        $region57: #{visit_pallas.1} parent=55 // pred_check
          %p6567 = pneg %p175
        $region58: #{visit_pallas.1} parent=55 // pred_check_branch
          %6569 = sbr.rel (%p6567) target = $region60
        $region59: #{visit_pallas.1} parent=55 // pred_region
          %s6570 = smul.u32 32, %s21
          %p6571 = scmp.lt.s32.totalorder %s6570, 127
          %s6572 = scalar_select %p6571, %s6570, 127
          %s6573 = smul.addr %s6572, 8
          %s6574 = scalar_lea.vmem %s6, %s6573
        $region60: #{visit_pallas.1} parent=55 // pred_fallthru
          _
      $region56: #{visit_pallas.1} parent=5 // pred_fallthru
        _
    $region6: #{visit_pallas.1} parent=1 // loop_footer
      %s19 = sadd.s32 1, %s15
    $region7: #{visit_pallas.1} parent=1 // loop_footer_branch
      %14 = sbr.rel target = $region3
    $region8: #{visit_pallas.1} parent=1 // loop_exit
      _
    %6575 = vsyncpa [#allocation3], 1
    %s6576 = scalar_lea.sflag [#allocation3], 1
    %6577 = vsyncpa %s6576, 1

</llo_original>
